<compile_context>
chip_gen: v6e
topology: v6e:2x2x1
jax: 0.10.0
libtpu: 0.0.40
codegen_flags: <defaults>
</compile_context>

<pallas_src>
import numpy as np
import jax
import jax.numpy as jnp
from jax.experimental import pallas as pl
from jax.experimental.pallas import tpu as pltpu

EPS = 1e-5
LANE = 128


def _round_up(x, m):
    return (x + m - 1) // m * m


def _pick_tile_m(m, bytes_per_row, fixed_bytes=0, budget=8 << 20):
    """Largest M tile (multiple of 8, divisor of m) fitting a VMEM budget.

    Budget is conservative (8 MiB) so double-buffered tiles fit v7x's smaller
    scoped-VMEM default as well as v5e/v6e.
    """
    avail = max(budget - fixed_bytes, 8 * bytes_per_row)
    for t in (2048, 1024, 512, 256, 128, 64, 32, 16, 8):
        if m % t == 0 and t * bytes_per_row <= avail:
            return t
    return m  # fallback: whole array (block == full dim is always legal)


# ---------------------------------------------------------------------------
# Pallas kernels
# ---------------------------------------------------------------------------
def _matmul_stats_kernel(x_ref, w_ref, o_ref, sum_ref, sq_ref):
    # bf16 MXU matmul with f32 accumulation + fused per-tile BN statistics.
    y = jnp.dot(x_ref[...].astype(jnp.bfloat16),
                w_ref[...].astype(jnp.bfloat16),
                preferred_element_type=jnp.float32)
    o_ref[...] = y
    s = jnp.sum(y, axis=0, keepdims=True)
    q = jnp.sum(y * y, axis=0, keepdims=True)
    sum_ref[...] = s[None]
    sq_ref[...] = q[None]


def _bnrelu_matmul_stats_kernel(x_ref, sc_ref, sh_ref, w_ref,
                                o_ref, sum_ref, sq_ref):
    # Fused BN-apply + ReLU prologue (VPU, hides under MXU), then matmul + stats.
    x = jnp.maximum(x_ref[...] * sc_ref[...] + sh_ref[...], 0.0)
    y = jnp.dot(x.astype(jnp.bfloat16),
                w_ref[...].astype(jnp.bfloat16),
                preferred_element_type=jnp.float32)
    o_ref[...] = y
    s = jnp.sum(y, axis=0, keepdims=True)
    q = jnp.sum(y * y, axis=0, keepdims=True)
    sum_ref[...] = s[None]
    sq_ref[...] = q[None]


def _bn2_add_relu_kernel(a_ref, a_sc_ref, a_sh_ref,
                         b_ref, b_sc_ref, b_sh_ref, o_ref):
    a = a_ref[...] * a_sc_ref[...] + a_sh_ref[...]
    b = b_ref[...] * b_sc_ref[...] + b_sh_ref[...]
    o_ref[...] = jnp.maximum(a + b, 0.0)


# ---------------------------------------------------------------------------
# Pallas wrappers
# ---------------------------------------------------------------------------
def matmul_stats_pallas(x, w):
    m, k = x.shape
    _, n = w.shape
    tm = _pick_tile_m(m, 2 * (k + n) * 4, fixed_bytes=2 * k * n * 4)
    nt = m // tm
    y, s, q = pl.pallas_call(
        _matmul_stats_kernel,
        out_shape=(jax.ShapeDtypeStruct((m, n), jnp.float32),
                   jax.ShapeDtypeStruct((nt, 1, n), jnp.float32),
                   jax.ShapeDtypeStruct((nt, 1, n), jnp.float32)),
        grid=(nt,),
        in_specs=[pl.BlockSpec((tm, k), lambda i: (i, 0)),
                  pl.BlockSpec((k, n), lambda i: (0, 0))],
        out_specs=(pl.BlockSpec((tm, n), lambda i: (i, 0)),
                   pl.BlockSpec((1, 1, n), lambda i: (i, 0, 0)),
                   pl.BlockSpec((1, 1, n), lambda i: (i, 0, 0))),
        compiler_params=pltpu.CompilerParams(
            dimension_semantics=("parallel",)),
    )(x, w)
    return y, s.sum(axis=(0, 1)), q.sum(axis=(0, 1))


def bnrelu_matmul_stats_pallas(x, scale, shift, w):
    m, k = x.shape
    _, n = w.shape
    tm = _pick_tile_m(m, 2 * (k + n) * 4, fixed_bytes=2 * k * n * 4)
    nt = m // tm
    y, s, q = pl.pallas_call(
        _bnrelu_matmul_stats_kernel,
        out_shape=(jax.ShapeDtypeStruct((m, n), jnp.float32),
                   jax.ShapeDtypeStruct((nt, 1, n), jnp.float32),
                   jax.ShapeDtypeStruct((nt, 1, n), jnp.float32)),
        grid=(nt,),
        in_specs=[pl.BlockSpec((tm, k), lambda i: (i, 0)),
                  pl.BlockSpec((1, k), lambda i: (0, 0)),
                  pl.BlockSpec((1, k), lambda i: (0, 0)),
                  pl.BlockSpec((k, n), lambda i: (0, 0))],
        out_specs=(pl.BlockSpec((tm, n), lambda i: (i, 0)),
                   pl.BlockSpec((1, 1, n), lambda i: (i, 0, 0)),
                   pl.BlockSpec((1, 1, n), lambda i: (i, 0, 0))),
        compiler_params=pltpu.CompilerParams(
            dimension_semantics=("parallel",)),
    )(x, scale, shift, w)
    return y, s.sum(axis=(0, 1)), q.sum(axis=(0, 1))


def bn2_add_relu_pallas(a, a_scale, a_shift, b, b_scale, b_shift):
    m, c = a.shape
    tm = _pick_tile_m(m, 2 * 3 * c * 4)
    return pl.pallas_call(
        _bn2_add_relu_kernel,
        out_shape=jax.ShapeDtypeStruct((m, c), jnp.float32),
        grid=(m // tm,),
        in_specs=[pl.BlockSpec((tm, c), lambda i: (i, 0)),
                  pl.BlockSpec((1, c), lambda i: (0, 0)),
                  pl.BlockSpec((1, c), lambda i: (0, 0)),
                  pl.BlockSpec((tm, c), lambda i: (i, 0)),
                  pl.BlockSpec((1, c), lambda i: (0, 0)),
                  pl.BlockSpec((1, c), lambda i: (0, 0))],
        out_specs=pl.BlockSpec((tm, c), lambda i: (i, 0)),
        compiler_params=pltpu.CompilerParams(
            dimension_semantics=("parallel",)),
    )(a, a_scale, a_shift, b, b_scale, b_shift)


# ---------------------------------------------------------------------------
# Tiny JAX glue: BN stat folding (per-channel scalars)
# ---------------------------------------------------------------------------
def bn_fold(total_sum, total_sq, count, gamma, beta):
    """Fold training-mode BatchNorm (batch stats) into per-channel scale/shift."""
    mean = total_sum / count
    var = jnp.maximum(total_sq / count - mean * mean, 0.0)  # biased var, clamped
    scale = gamma / jnp.sqrt(var + EPS)
    shift = beta - mean * scale
    return scale.reshape(1, -1), shift.reshape(1, -1)


# ---------------------------------------------------------------------------
# Full EncoderBlock forward
# ---------------------------------------------------------------------------
def encoder_block_forward(x_nchw, p):
    n, cin, h, w = x_nchw.shape
    cbp = p["w1m"].shape[1]        # padded bottleneck channels
    cop = p["w3m"].shape[1]        # padded out channels
    cout = p["w3"].shape[0]        # true out channels (static)
    ho, wo = h // 2, w // 2

    x = jnp.transpose(x_nchw, (0, 2, 3, 1)).reshape(n * h * w, cin)   # NHWC rows

    # ---- decode path ----
    # conv1x1 + fused BN stats
    y1, s1, q1 = matmul_stats_pallas(x, p["w1m"])
    sc1, sh1 = bn_fold(s1, q1, y1.shape[0], p["g1p"], p["b1p"])

    # BN+ReLU folded into the im2col expression (single fused pass over y1).
    # TODO(synk): in-kernel 9-tap accumulation would avoid materializing the
    # 9x im2col matrix in HBM; not implemented here.
    a1 = jnp.maximum(y1.reshape(n, h, w, cbp) * sc1.reshape(1, 1, 1, cbp)
                     + sh1.reshape(1, 1, 1, cbp), 0.0)
    ap = jnp.pad(a1, ((0, 0), (1, 1), (1, 1), (0, 0)))
    cols = jnp.concatenate(
        [ap[:, kh:kh + 2 * ho:2, kw:kw + 2 * wo:2, :]
         for kh in range(3) for kw in range(3)],
        axis=-1).reshape(n * ho * wo, 9 * cbp)

    # conv3x3 stride 2 (as matmul over im2col) + fused BN stats
    y2, s2, q2 = matmul_stats_pallas(cols, p["w2m"])
    sc2, sh2 = bn_fold(s2, q2, y2.shape[0], p["g2p"], p["b2p"])

    # conv1x1 with fused BN+ReLU prologue + fused BN stats
    y3, s3, q3 = bnrelu_matmul_stats_pallas(y2, sc2, sh2, p["w3m"])
    sc3, sh3 = bn_fold(s3, q3, y3.shape[0], p["g3p"], p["b3p"])

    # ---- skip path (conv1x1 stride 2): stride-2 sampling fused with NCHW->NHWC copy
    xs = jnp.transpose(x_nchw[:, :, ::2, ::2], (0, 2, 3, 1)).reshape(n * ho * wo, cin)
    ys, ss, qs = matmul_stats_pallas(xs, p["wsm"])
    scs, shs = bn_fold(ss, qs, ys.shape[0], p["gsp"], p["bsp"])

    # ---- fused BN(decode) + BN(skip) + add + ReLU ----
    out = bn2_add_relu_pallas(y3, sc3, sh3, ys, scs, shs)

    out = out.reshape(n, ho, wo, cop)[:, :, :, :cout]
    return jnp.transpose(out, (0, 3, 1, 2))           # back to NCHW
    # TODO(synk): BatchNorm running_mean/running_var buffer updates (training-
    # mode side effect) are not reproduced; they do not affect the output math.


# ---------------------------------------------------------------------------
# Pure-JAX reference (mirrors PyTorch training-mode forward)
# ---------------------------------------------------------------------------
def reference_forward(x, p):
    def conv(x, w, s, pad):
        return jax.lax.conv_general_dilated(
            x, w, window_strides=(s, s), padding=((pad, pad), (pad, pad)),
            dimension_numbers=("NCHW", "OIHW", "NCHW"))

    def bn(x, g, b):
        m = x.mean(axis=(0, 2, 3), keepdims=True)
        v = ((x - m) ** 2).mean(axis=(0, 2, 3), keepdims=True)
        return (x - m) / jnp.sqrt(v + EPS) * g.reshape(1, -1, 1, 1) \
            + b.reshape(1, -1, 1, 1)

    d = jax.nn.relu(bn(conv(x, p["w1"], 1, 0), p["g1"], p["b1"]))
    d = jax.nn.relu(bn(conv(d, p["w2"], 2, 1), p["g2"], p["b2"]))
    d = bn(conv(d, p["w3"], 1, 0), p["g3"], p["b3"])
    s = bn(conv(x, p["ws"], 2, 0), p["gs"], p["bs"])
    return jax.nn.relu(d + s)


# ---------------------------------------------------------------------------
# Deterministic parameter init (shapes from EncoderBlock.__init__)
# ---------------------------------------------------------------------------
def init_params(key, in_channels, out_channels):
    cb = in_channels // 4
    cbp = _round_up(cb, LANE)
    cop = _round_up(out_channels, LANE)
    ks = jax.random.split(key, 12)

    def conv_w(k, o, i, kh, kw):
        bound = 1.0 / np.sqrt(i * kh * kw)            # kaiming-uniform-ish
        return jax.random.uniform(k, (o, i, kh, kw), jnp.float32,
                                  minval=-bound, maxval=bound)

    p = {}
    p["w1"] = conv_w(ks[0], cb, in_channels, 1, 1)
    p["w2"] = conv_w(ks[1], cb, cb, 3, 3)
    p["w3"] = conv_w(ks[2], out_channels, cb, 1, 1)
    p["ws"] = conv_w(ks[3], out_channels, in_channels, 1, 1)

    # BN affine params (randomized to exercise the affine path; deterministic)
    for name, kg, kb, c, cpad in (("1", ks[4], ks[5], cb, cbp),
                                  ("2", ks[6], ks[7], cb, cbp),
                                  ("3", ks[8], ks[9], out_channels, cop),
                                  ("s", ks[10], ks[11], out_channels, cop)):
        g = 1.0 + 0.1 * jax.random.normal(kg, (c,), jnp.float32)
        b = 0.1 * jax.random.normal(kb, (c,), jnp.float32)
        p["g" + name] = g
        p["b" + name] = b
        # lane-dense padded versions (identity affine on padded channels)
        p["g" + name + "p"] = jnp.pad(g, (0, cpad - c), constant_values=1.0)
        p["b" + name + "p"] = jnp.pad(b, (0, cpad - c))

    # lane-dense (channels padded to multiples of 128) matrix forms for the MXU
    p["w1m"] = jnp.pad(p["w1"][:, :, 0, 0].T, ((0, 0), (0, cbp - cb)))
    w2t = jnp.transpose(p["w2"], (2, 3, 1, 0))                        # (3,3,I,O)
    w2t = jnp.pad(w2t, ((0, 0), (0, 0), (0, cbp - cb), (0, cbp - cb)))
    p["w2m"] = w2t.reshape(9 * cbp, cbp)                              # (kh,kw,c) order
    p["w3m"] = jnp.pad(p["w3"][:, :, 0, 0].T,
                       ((0, cbp - cb), (0, cop - out_channels)))
    p["wsm"] = jnp.pad(p["ws"][:, :, 0, 0].T, ((0, 0), (0, cop - out_channels)))
    return p


if __name__ == "__main__":
    N, C_IN, C_OUT, H, W = 2, 8, 16, 16, 16           # bottleneck = 2
    key = jax.random.PRNGKey(0)
    kx, kp = jax.random.split(key)
    x = jax.random.normal(kx, (N, C_IN, H, W), jnp.float32)
    params = init_params(kp, C_IN, C_OUT)

    out = jax.jit(encoder_block_forward)(x, params)
    out = jax.block_until_ready(out)

    ref = reference_forward(x, params)
    assert out.shape == (N, C_OUT, H // 2, W // 2), out.shape
    if not np.allclose(np.asarray(out), np.asarray(ref), rtol=2e-2, atol=2e-2):
        raise AssertionError(
            "mismatch vs reference, max abs diff = "
            f"{float(np.max(np.abs(np.asarray(out) - np.asarray(ref))))}")
    print("KERNEL_OK")
</pallas_src>

<mosaic_0001>
module attributes {stable_mosaic.version = 11 : i64} {
  func.func @_matmul_stats_kernel(%arg0: i32, %arg1: memref<512x8xf32, #tpu.memory_space<vmem>>, %arg2: memref<8x128xf32, #tpu.memory_space<vmem>>, %arg3: memref<512x128xf32, #tpu.memory_space<vmem>>, %arg4: memref<1x1x128xf32, #tpu.memory_space<vmem>>, %arg5: memref<1x1x128xf32, #tpu.memory_space<vmem>>) attributes {dimension_semantics = [#tpu.dimension_semantics<parallel>], iteration_bounds = array<i64: 1>, scalar_prefetch = 0 : i64, scratch_operands = 0 : i64, tpu.core_type = #tpu.core_type<tc>, window_params = [{transform_indices = @transform_0, window_bounds = array<i64: 512, 8>}, {pipeline_mode = #tpu.pipeline_mode<synchronous>, transform_indices = @transform_1, window_bounds = array<i64: 8, 128>}, {transform_indices = @transform_2, window_bounds = array<i64: 512, 128>}, {transform_indices = @transform_3, window_bounds = array<i64: 1, 1, 128>}, {transform_indices = @transform_4, window_bounds = array<i64: 1, 1, 128>}]} {
    %c0 = arith.constant 0 : index
    %c0_0 = arith.constant 0 : index
    %0 = vector.load %arg1[%c0, %c0_0] : memref<512x8xf32, #tpu.memory_space<vmem>>, vector<512x8xf32>
    %1 = arith.truncf %0 : vector<512x8xf32> to vector<512x8xbf16>
    %c0_1 = arith.constant 0 : index
    %c0_2 = arith.constant 0 : index
    %2 = vector.load %arg2[%c0_1, %c0_2] : memref<8x128xf32, #tpu.memory_space<vmem>>, vector<8x128xf32>
    %3 = arith.truncf %2 : vector<8x128xf32> to vector<8x128xbf16>
    %cst = arith.constant dense<0.000000e+00> : vector<512x128xf32>
    %4 = tpu.matmul %1, %3, %cst {dimension_numbers = #tpu.dot_dimension_numbers<[1], [0], [0], [1], [0, 0, 1, 1], [], []>} : vector<512x8xbf16>, vector<8x128xbf16>, vector<512x128xf32> -> vector<512x128xf32>
    %c0_3 = arith.constant 0 : index
    %c0_4 = arith.constant 0 : index
    %5 = vector.load %arg3[%c0_3, %c0_4] : memref<512x128xf32, #tpu.memory_space<vmem>>, vector<512x128xf32>
    tpu.vector_store %arg3[%c0_3, %c0_4], %4 {strides = array<i32>} : memref<512x128xf32, #tpu.memory_space<vmem>>, vector<512x128xf32>,
    %cst_5 = arith.constant dense<0.000000e+00> : vector<128xf32>
    %6 = vector.multi_reduction <add>, %4, %cst_5 [0] : vector<512x128xf32> to vector<128xf32>
    %7 = vector.shape_cast %6 : vector<128xf32> to vector<1x128xf32>
    %8 = arith.mulf %4, %4 : vector<512x128xf32>
    %cst_6 = arith.constant dense<0.000000e+00> : vector<128xf32>
    %9 = vector.multi_reduction <add>, %8, %cst_6 [0] : vector<512x128xf32> to vector<128xf32>
    %10 = vector.shape_cast %9 : vector<128xf32> to vector<1x128xf32>
    %11 = vector.shape_cast %7 : vector<1x128xf32> to vector<1x1x128xf32>
    %c0_7 = arith.constant 0 : index
    %c0_8 = arith.constant 0 : index
    %c0_9 = arith.constant 0 : index
    %12 = vector.load %arg4[%c0_7, %c0_8, %c0_9] : memref<1x1x128xf32, #tpu.memory_space<vmem>>, vector<1x1x128xf32>
    tpu.vector_store %arg4[%c0_7, %c0_8, %c0_9], %11 {strides = array<i32>} : memref<1x1x128xf32, #tpu.memory_space<vmem>>, vector<1x1x128xf32>,
    %13 = vector.shape_cast %10 : vector<1x128xf32> to vector<1x1x128xf32>
    %c0_10 = arith.constant 0 : index
    %c0_11 = arith.constant 0 : index
    %c0_12 = arith.constant 0 : index
    %14 = vector.load %arg5[%c0_10, %c0_11, %c0_12] : memref<1x1x128xf32, #tpu.memory_space<vmem>>, vector<1x1x128xf32>
    tpu.vector_store %arg5[%c0_10, %c0_11, %c0_12], %13 {strides = array<i32>} : memref<1x1x128xf32, #tpu.memory_space<vmem>>, vector<1x1x128xf32>,
    return
  }
  func.func @transform_0(%arg0: i32) -> (i32, i32) {
    %c0_i32 = arith.constant 0 : i32
    %c0_i32_0 = arith.constant 0 : i32
    return %arg0, %c0_i32 : i32, i32
  }
  func.func @transform_1(%arg0: i32) -> (i32, i32) {
    %c0_i32 = arith.constant 0 : i32
    %c0_i32_0 = arith.constant 0 : i32
    %c0_i32_1 = arith.constant 0 : i32
    return %c0_i32, %c0_i32_0 : i32, i32
  }
  func.func @transform_2(%arg0: i32) -> (i32, i32) {
    %c0_i32 = arith.constant 0 : i32
    %c0_i32_0 = arith.constant 0 : i32
    return %arg0, %c0_i32 : i32, i32
  }
  func.func @transform_3(%arg0: i32) -> (i32, i32, i32) {
    %c0_i32 = arith.constant 0 : i32
    %c0_i32_0 = arith.constant 0 : i32
    %c0_i32_1 = arith.constant 0 : i32
    return %arg0, %c0_i32, %c0_i32_0 : i32, i32, i32
  }
  func.func @transform_4(%arg0: i32) -> (i32, i32, i32) {
    %c0_i32 = arith.constant 0 : i32
    %c0_i32_0 = arith.constant 0 : i32
    %c0_i32_1 = arith.constant 0 : i32
    return %arg0, %c0_i32, %c0_i32_0 : i32, i32, i32
  }
}

module attributes {stable_mosaic.version = 11 : i64} {
  func.func @_matmul_stats_kernel(%arg0: i32, %arg1: memref<128x1152xf32, #tpu.memory_space<vmem>>, %arg2: memref<1152x128xf32, #tpu.memory_space<vmem>>, %arg3: memref<128x128xf32, #tpu.memory_space<vmem>>, %arg4: memref<1x1x128xf32, #tpu.memory_space<vmem>>, %arg5: memref<1x1x128xf32, #tpu.memory_space<vmem>>) attributes {dimension_semantics = [#tpu.dimension_semantics<parallel>], iteration_bounds = array<i64: 1>, scalar_prefetch = 0 : i64, scratch_operands = 0 : i64, tpu.core_type = #tpu.core_type<tc>, window_params = [{transform_indices = @transform_0, window_bounds = array<i64: 128, 1152>}, {pipeline_mode = #tpu.pipeline_mode<synchronous>, transform_indices = @transform_1, window_bounds = array<i64: 1152, 128>}, {transform_indices = @transform_2, window_bounds = array<i64: 128, 128>}, {transform_indices = @transform_3, window_bounds = array<i64: 1, 1, 128>}, {transform_indices = @transform_4, window_bounds = array<i64: 1, 1, 128>}]} {
    %c0 = arith.constant 0 : index
    %c0_0 = arith.constant 0 : index
    %0 = vector.load %arg1[%c0, %c0_0] : memref<128x1152xf32, #tpu.memory_space<vmem>>, vector<128x1152xf32>
    %1 = arith.truncf %0 : vector<128x1152xf32> to vector<128x1152xbf16>
    %c0_1 = arith.constant 0 : index
    %c0_2 = arith.constant 0 : index
    %2 = vector.load %arg2[%c0_1, %c0_2] : memref<1152x128xf32, #tpu.memory_space<vmem>>, vector<1152x128xf32>
    %3 = arith.truncf %2 : vector<1152x128xf32> to vector<1152x128xbf16>
    %cst = arith.constant dense<0.000000e+00> : vector<128x128xf32>
    %4 = tpu.matmul %1, %3, %cst {dimension_numbers = #tpu.dot_dimension_numbers<[1], [0], [0], [1], [0, 0, 1, 1], [], []>} : vector<128x1152xbf16>, vector<1152x128xbf16>, vector<128x128xf32> -> vector<128x128xf32>
    %c0_3 = arith.constant 0 : index
    %c0_4 = arith.constant 0 : index
    %5 = vector.load %arg3[%c0_3, %c0_4] : memref<128x128xf32, #tpu.memory_space<vmem>>, vector<128x128xf32>
    tpu.vector_store %arg3[%c0_3, %c0_4], %4 {strides = array<i32>} : memref<128x128xf32, #tpu.memory_space<vmem>>, vector<128x128xf32>,
    %cst_5 = arith.constant dense<0.000000e+00> : vector<128xf32>
    %6 = vector.multi_reduction <add>, %4, %cst_5 [0] : vector<128x128xf32> to vector<128xf32>
    %7 = vector.shape_cast %6 : vector<128xf32> to vector<1x128xf32>
    %8 = arith.mulf %4, %4 : vector<128x128xf32>
    %cst_6 = arith.constant dense<0.000000e+00> : vector<128xf32>
    %9 = vector.multi_reduction <add>, %8, %cst_6 [0] : vector<128x128xf32> to vector<128xf32>
    %10 = vector.shape_cast %9 : vector<128xf32> to vector<1x128xf32>
    %11 = vector.shape_cast %7 : vector<1x128xf32> to vector<1x1x128xf32>
    %c0_7 = arith.constant 0 : index
    %c0_8 = arith.constant 0 : index
    %c0_9 = arith.constant 0 : index
    %12 = vector.load %arg4[%c0_7, %c0_8, %c0_9] : memref<1x1x128xf32, #tpu.memory_space<vmem>>, vector<1x1x128xf32>
    tpu.vector_store %arg4[%c0_7, %c0_8, %c0_9], %11 {strides = array<i32>} : memref<1x1x128xf32, #tpu.memory_space<vmem>>, vector<1x1x128xf32>,
    %13 = vector.shape_cast %10 : vector<1x128xf32> to vector<1x1x128xf32>
    %c0_10 = arith.constant 0 : index
    %c0_11 = arith.constant 0 : index
    %c0_12 = arith.constant 0 : index
    %14 = vector.load %arg5[%c0_10, %c0_11, %c0_12] : memref<1x1x128xf32, #tpu.memory_space<vmem>>, vector<1x1x128xf32>
    tpu.vector_store %arg5[%c0_10, %c0_11, %c0_12], %13 {strides = array<i32>} : memref<1x1x128xf32, #tpu.memory_space<vmem>>, vector<1x1x128xf32>,
    return
  }
  func.func @transform_0(%arg0: i32) -> (i32, i32) {
    %c0_i32 = arith.constant 0 : i32
    %c0_i32_0 = arith.constant 0 : i32
    return %arg0, %c0_i32 : i32, i32
  }
  func.func @transform_1(%arg0: i32) -> (i32, i32) {
    %c0_i32 = arith.constant 0 : i32
    %c0_i32_0 = arith.constant 0 : i32
    %c0_i32_1 = arith.constant 0 : i32
    return %c0_i32, %c0_i32_0 : i32, i32
  }
  func.func @transform_2(%arg0: i32) -> (i32, i32) {
    %c0_i32 = arith.constant 0 : i32
    %c0_i32_0 = arith.constant 0 : i32
    return %arg0, %c0_i32 : i32, i32
  }
  func.func @transform_3(%arg0: i32) -> (i32, i32, i32) {
    %c0_i32 = arith.constant 0 : i32
    %c0_i32_0 = arith.constant 0 : i32
    %c0_i32_1 = arith.constant 0 : i32
    return %arg0, %c0_i32, %c0_i32_0 : i32, i32, i32
  }
  func.func @transform_4(%arg0: i32) -> (i32, i32, i32) {
    %c0_i32 = arith.constant 0 : i32
    %c0_i32_0 = arith.constant 0 : i32
    %c0_i32_1 = arith.constant 0 : i32
    return %arg0, %c0_i32, %c0_i32_0 : i32, i32, i32
  }
}

module attributes {stable_mosaic.version = 11 : i64} {
  func.func @_bnrelu_matmul_stats_kernel(%arg0: i32, %arg1: memref<128x128xf32, #tpu.memory_space<vmem>>, %arg2: memref<1x128xf32, #tpu.memory_space<vmem>>, %arg3: memref<1x128xf32, #tpu.memory_space<vmem>>, %arg4: memref<128x128xf32, #tpu.memory_space<vmem>>, %arg5: memref<128x128xf32, #tpu.memory_space<vmem>>, %arg6: memref<1x1x128xf32, #tpu.memory_space<vmem>>, %arg7: memref<1x1x128xf32, #tpu.memory_space<vmem>>) attributes {dimension_semantics = [#tpu.dimension_semantics<parallel>], iteration_bounds = array<i64: 1>, scalar_prefetch = 0 : i64, scratch_operands = 0 : i64, tpu.core_type = #tpu.core_type<tc>, window_params = [{transform_indices = @transform_0, window_bounds = array<i64: 128, 128>}, {pipeline_mode = #tpu.pipeline_mode<synchronous>, transform_indices = @transform_1, window_bounds = array<i64: 1, 128>}, {pipeline_mode = #tpu.pipeline_mode<synchronous>, transform_indices = @transform_2, window_bounds = array<i64: 1, 128>}, {pipeline_mode = #tpu.pipeline_mode<synchronous>, transform_indices = @transform_3, window_bounds = array<i64: 128, 128>}, {transform_indices = @transform_4, window_bounds = array<i64: 128, 128>}, {transform_indices = @transform_5, window_bounds = array<i64: 1, 1, 128>}, {transform_indices = @transform_6, window_bounds = array<i64: 1, 1, 128>}]} {
    %c0 = arith.constant 0 : index
    %c0_0 = arith.constant 0 : index
    %0 = vector.load %arg1[%c0, %c0_0] : memref<128x128xf32, #tpu.memory_space<vmem>>, vector<128x128xf32>
    %c0_1 = arith.constant 0 : index
    %c0_2 = arith.constant 0 : index
    %1 = vector.load %arg2[%c0_1, %c0_2] : memref<1x128xf32, #tpu.memory_space<vmem>>, vector<1x128xf32>
    %2 = vector.broadcast %1 : vector<1x128xf32> to vector<128x128xf32>
    %3 = arith.mulf %0, %2 : vector<128x128xf32>
    %c0_3 = arith.constant 0 : index
    %c0_4 = arith.constant 0 : index
    %4 = vector.load %arg3[%c0_3, %c0_4] : memref<1x128xf32, #tpu.memory_space<vmem>>, vector<1x128xf32>
    %5 = vector.broadcast %4 : vector<1x128xf32> to vector<128x128xf32>
    %6 = arith.addf %3, %5 : vector<128x128xf32>
    %cst = arith.constant 0.000000e+00 : f32
    %7 = vector.broadcast %cst : f32 to vector<128x128xf32>
    %8 = arith.maximumf %6, %7 : vector<128x128xf32>
    %9 = arith.truncf %8 : vector<128x128xf32> to vector<128x128xbf16>
    %c0_5 = arith.constant 0 : index
    %c0_6 = arith.constant 0 : index
    %10 = vector.load %arg4[%c0_5, %c0_6] : memref<128x128xf32, #tpu.memory_space<vmem>>, vector<128x128xf32>
    %11 = arith.truncf %10 : vector<128x128xf32> to vector<128x128xbf16>
    %cst_7 = arith.constant dense<0.000000e+00> : vector<128x128xf32>
    %12 = tpu.matmul %9, %11, %cst_7 {dimension_numbers = #tpu.dot_dimension_numbers<[1], [0], [0], [1], [0, 0, 1, 1], [], []>} : vector<128x128xbf16>, vector<128x128xbf16>, vector<128x128xf32> -> vector<128x128xf32>
    %c0_8 = arith.constant 0 : index
    %c0_9 = arith.constant 0 : index
    %13 = vector.load %arg5[%c0_8, %c0_9] : memref<128x128xf32, #tpu.memory_space<vmem>>, vector<128x128xf32>
    tpu.vector_store %arg5[%c0_8, %c0_9], %12 {strides = array<i32>} : memref<128x128xf32, #tpu.memory_space<vmem>>, vector<128x128xf32>,
    %cst_10 = arith.constant dense<0.000000e+00> : vector<128xf32>
    %14 = vector.multi_reduction <add>, %12, %cst_10 [0] : vector<128x128xf32> to vector<128xf32>
    %15 = vector.shape_cast %14 : vector<128xf32> to vector<1x128xf32>
    %16 = arith.mulf %12, %12 : vector<128x128xf32>
    %cst_11 = arith.constant dense<0.000000e+00> : vector<128xf32>
    %17 = vector.multi_reduction <add>, %16, %cst_11 [0] : vector<128x128xf32> to vector<128xf32>
    %18 = vector.shape_cast %17 : vector<128xf32> to vector<1x128xf32>
    %19 = vector.shape_cast %15 : vector<1x128xf32> to vector<1x1x128xf32>
    %c0_12 = arith.constant 0 : index
    %c0_13 = arith.constant 0 : index
    %c0_14 = arith.constant 0 : index
    %20 = vector.load %arg6[%c0_12, %c0_13, %c0_14] : memref<1x1x128xf32, #tpu.memory_space<vmem>>, vector<1x1x128xf32>
    tpu.vector_store %arg6[%c0_12, %c0_13, %c0_14], %19 {strides = array<i32>} : memref<1x1x128xf32, #tpu.memory_space<vmem>>, vector<1x1x128xf32>,
    %21 = vector.shape_cast %18 : vector<1x128xf32> to vector<1x1x128xf32>
    %c0_15 = arith.constant 0 : index
    %c0_16 = arith.constant 0 : index
    %c0_17 = arith.constant 0 : index
    %22 = vector.load %arg7[%c0_15, %c0_16, %c0_17] : memref<1x1x128xf32, #tpu.memory_space<vmem>>, vector<1x1x128xf32>
    tpu.vector_store %arg7[%c0_15, %c0_16, %c0_17], %21 {strides = array<i32>} : memref<1x1x128xf32, #tpu.memory_space<vmem>>, vector<1x1x128xf32>,
    return
  }
  func.func @transform_0(%arg0: i32) -> (i32, i32) {
    %c0_i32 = arith.constant 0 : i32
    %c0_i32_0 = arith.constant 0 : i32
    return %arg0, %c0_i32 : i32, i32
  }
  func.func @transform_1(%arg0: i32) -> (i32, i32) {
    %c0_i32 = arith.constant 0 : i32
    %c0_i32_0 = arith.constant 0 : i32
    %c0_i32_1 = arith.constant 0 : i32
    return %c0_i32, %c0_i32_0 : i32, i32
  }
  func.func @transform_2(%arg0: i32) -> (i32, i32) {
    %c0_i32 = arith.constant 0 : i32
    %c0_i32_0 = arith.constant 0 : i32
    %c0_i32_1 = arith.constant 0 : i32
    return %c0_i32, %c0_i32_0 : i32, i32
  }
  func.func @transform_3(%arg0: i32) -> (i32, i32) {
    %c0_i32 = arith.constant 0 : i32
    %c0_i32_0 = arith.constant 0 : i32
    %c0_i32_1 = arith.constant 0 : i32
    return %c0_i32, %c0_i32_0 : i32, i32
  }
  func.func @transform_4(%arg0: i32) -> (i32, i32) {
    %c0_i32 = arith.constant 0 : i32
    %c0_i32_0 = arith.constant 0 : i32
    return %arg0, %c0_i32 : i32, i32
  }
  func.func @transform_5(%arg0: i32) -> (i32, i32, i32) {
    %c0_i32 = arith.constant 0 : i32
    %c0_i32_0 = arith.constant 0 : i32
    %c0_i32_1 = arith.constant 0 : i32
    return %arg0, %c0_i32, %c0_i32_0 : i32, i32, i32
  }
  func.func @transform_6(%arg0: i32) -> (i32, i32, i32) {
    %c0_i32 = arith.constant 0 : i32
    %c0_i32_0 = arith.constant 0 : i32
    %c0_i32_1 = arith.constant 0 : i32
    return %arg0, %c0_i32, %c0_i32_0 : i32, i32, i32
  }
}

module attributes {stable_mosaic.version = 11 : i64} {
  func.func @_matmul_stats_kernel(%arg0: i32, %arg1: memref<128x8xf32, #tpu.memory_space<vmem>>, %arg2: memref<8x128xf32, #tpu.memory_space<vmem>>, %arg3: memref<128x128xf32, #tpu.memory_space<vmem>>, %arg4: memref<1x1x128xf32, #tpu.memory_space<vmem>>, %arg5: memref<1x1x128xf32, #tpu.memory_space<vmem>>) attributes {dimension_semantics = [#tpu.dimension_semantics<parallel>], iteration_bounds = array<i64: 1>, scalar_prefetch = 0 : i64, scratch_operands = 0 : i64, tpu.core_type = #tpu.core_type<tc>, window_params = [{transform_indices = @transform_0, window_bounds = array<i64: 128, 8>}, {pipeline_mode = #tpu.pipeline_mode<synchronous>, transform_indices = @transform_1, window_bounds = array<i64: 8, 128>}, {transform_indices = @transform_2, window_bounds = array<i64: 128, 128>}, {transform_indices = @transform_3, window_bounds = array<i64: 1, 1, 128>}, {transform_indices = @transform_4, window_bounds = array<i64: 1, 1, 128>}]} {
    %c0 = arith.constant 0 : index
    %c0_0 = arith.constant 0 : index
    %0 = vector.load %arg1[%c0, %c0_0] : memref<128x8xf32, #tpu.memory_space<vmem>>, vector<128x8xf32>
    %1 = arith.truncf %0 : vector<128x8xf32> to vector<128x8xbf16>
    %c0_1 = arith.constant 0 : index
    %c0_2 = arith.constant 0 : index
    %2 = vector.load %arg2[%c0_1, %c0_2] : memref<8x128xf32, #tpu.memory_space<vmem>>, vector<8x128xf32>
    %3 = arith.truncf %2 : vector<8x128xf32> to vector<8x128xbf16>
    %cst = arith.constant dense<0.000000e+00> : vector<128x128xf32>
    %4 = tpu.matmul %1, %3, %cst {dimension_numbers = #tpu.dot_dimension_numbers<[1], [0], [0], [1], [0, 0, 1, 1], [], []>} : vector<128x8xbf16>, vector<8x128xbf16>, vector<128x128xf32> -> vector<128x128xf32>
    %c0_3 = arith.constant 0 : index
    %c0_4 = arith.constant 0 : index
    %5 = vector.load %arg3[%c0_3, %c0_4] : memref<128x128xf32, #tpu.memory_space<vmem>>, vector<128x128xf32>
    tpu.vector_store %arg3[%c0_3, %c0_4], %4 {strides = array<i32>} : memref<128x128xf32, #tpu.memory_space<vmem>>, vector<128x128xf32>,
    %cst_5 = arith.constant dense<0.000000e+00> : vector<128xf32>
    %6 = vector.multi_reduction <add>, %4, %cst_5 [0] : vector<128x128xf32> to vector<128xf32>
    %7 = vector.shape_cast %6 : vector<128xf32> to vector<1x128xf32>
    %8 = arith.mulf %4, %4 : vector<128x128xf32>
    %cst_6 = arith.constant dense<0.000000e+00> : vector<128xf32>
    %9 = vector.multi_reduction <add>, %8, %cst_6 [0] : vector<128x128xf32> to vector<128xf32>
    %10 = vector.shape_cast %9 : vector<128xf32> to vector<1x128xf32>
    %11 = vector.shape_cast %7 : vector<1x128xf32> to vector<1x1x128xf32>
    %c0_7 = arith.constant 0 : index
    %c0_8 = arith.constant 0 : index
    %c0_9 = arith.constant 0 : index
    %12 = vector.load %arg4[%c0_7, %c0_8, %c0_9] : memref<1x1x128xf32, #tpu.memory_space<vmem>>, vector<1x1x128xf32>
    tpu.vector_store %arg4[%c0_7, %c0_8, %c0_9], %11 {strides = array<i32>} : memref<1x1x128xf32, #tpu.memory_space<vmem>>, vector<1x1x128xf32>,
    %13 = vector.shape_cast %10 : vector<1x128xf32> to vector<1x1x128xf32>
    %c0_10 = arith.constant 0 : index
    %c0_11 = arith.constant 0 : index
    %c0_12 = arith.constant 0 : index
    %14 = vector.load %arg5[%c0_10, %c0_11, %c0_12] : memref<1x1x128xf32, #tpu.memory_space<vmem>>, vector<1x1x128xf32>
    tpu.vector_store %arg5[%c0_10, %c0_11, %c0_12], %13 {strides = array<i32>} : memref<1x1x128xf32, #tpu.memory_space<vmem>>, vector<1x1x128xf32>,
    return
  }
  func.func @transform_0(%arg0: i32) -> (i32, i32) {
    %c0_i32 = arith.constant 0 : i32
    %c0_i32_0 = arith.constant 0 : i32
    return %arg0, %c0_i32 : i32, i32
  }
  func.func @transform_1(%arg0: i32) -> (i32, i32) {
    %c0_i32 = arith.constant 0 : i32
    %c0_i32_0 = arith.constant 0 : i32
    %c0_i32_1 = arith.constant 0 : i32
    return %c0_i32, %c0_i32_0 : i32, i32
  }
  func.func @transform_2(%arg0: i32) -> (i32, i32) {
    %c0_i32 = arith.constant 0 : i32
    %c0_i32_0 = arith.constant 0 : i32
    return %arg0, %c0_i32 : i32, i32
  }
  func.func @transform_3(%arg0: i32) -> (i32, i32, i32) {
    %c0_i32 = arith.constant 0 : i32
    %c0_i32_0 = arith.constant 0 : i32
    %c0_i32_1 = arith.constant 0 : i32
    return %arg0, %c0_i32, %c0_i32_0 : i32, i32, i32
  }
  func.func @transform_4(%arg0: i32) -> (i32, i32, i32) {
    %c0_i32 = arith.constant 0 : i32
    %c0_i32_0 = arith.constant 0 : i32
    %c0_i32_1 = arith.constant 0 : i32
    return %arg0, %c0_i32, %c0_i32_0 : i32, i32, i32
  }
}

module attributes {stable_mosaic.version = 11 : i64} {
  func.func @_bn2_add_relu_kernel(%arg0: i32, %arg1: memref<128x128xf32, #tpu.memory_space<vmem>>, %arg2: memref<1x128xf32, #tpu.memory_space<vmem>>, %arg3: memref<1x128xf32, #tpu.memory_space<vmem>>, %arg4: memref<128x128xf32, #tpu.memory_space<vmem>>, %arg5: memref<1x128xf32, #tpu.memory_space<vmem>>, %arg6: memref<1x128xf32, #tpu.memory_space<vmem>>, %arg7: memref<128x128xf32, #tpu.memory_space<vmem>>) attributes {dimension_semantics = [#tpu.dimension_semantics<parallel>], iteration_bounds = array<i64: 1>, scalar_prefetch = 0 : i64, scratch_operands = 0 : i64, tpu.core_type = #tpu.core_type<tc>, window_params = [{transform_indices = @transform_0, window_bounds = array<i64: 128, 128>}, {pipeline_mode = #tpu.pipeline_mode<synchronous>, transform_indices = @transform_1, window_bounds = array<i64: 1, 128>}, {pipeline_mode = #tpu.pipeline_mode<synchronous>, transform_indices = @transform_2, window_bounds = array<i64: 1, 128>}, {transform_indices = @transform_3, window_bounds = array<i64: 128, 128>}, {pipeline_mode = #tpu.pipeline_mode<synchronous>, transform_indices = @transform_4, window_bounds = array<i64: 1, 128>}, {pipeline_mode = #tpu.pipeline_mode<synchronous>, transform_indices = @transform_5, window_bounds = array<i64: 1, 128>}, {transform_indices = @transform_6, window_bounds = array<i64: 128, 128>}]} {
    %c0 = arith.constant 0 : index
    %c0_0 = arith.constant 0 : index
    %0 = vector.load %arg1[%c0, %c0_0] : memref<128x128xf32, #tpu.memory_space<vmem>>, vector<128x128xf32>
    %c0_1 = arith.constant 0 : index
    %c0_2 = arith.constant 0 : index
    %1 = vector.load %arg2[%c0_1, %c0_2] : memref<1x128xf32, #tpu.memory_space<vmem>>, vector<1x128xf32>
    %2 = vector.broadcast %1 : vector<1x128xf32> to vector<128x128xf32>
    %3 = arith.mulf %0, %2 : vector<128x128xf32>
    %c0_3 = arith.constant 0 : index
    %c0_4 = arith.constant 0 : index
    %4 = vector.load %arg3[%c0_3, %c0_4] : memref<1x128xf32, #tpu.memory_space<vmem>>, vector<1x128xf32>
    %5 = vector.broadcast %4 : vector<1x128xf32> to vector<128x128xf32>
    %6 = arith.addf %3, %5 : vector<128x128xf32>
    %c0_5 = arith.constant 0 : index
    %c0_6 = arith.constant 0 : index
    %7 = vector.load %arg4[%c0_5, %c0_6] : memref<128x128xf32, #tpu.memory_space<vmem>>, vector<128x128xf32>
    %c0_7 = arith.constant 0 : index
    %c0_8 = arith.constant 0 : index
    %8 = vector.load %arg5[%c0_7, %c0_8] : memref<1x128xf32, #tpu.memory_space<vmem>>, vector<1x128xf32>
    %9 = vector.broadcast %8 : vector<1x128xf32> to vector<128x128xf32>
    %10 = arith.mulf %7, %9 : vector<128x128xf32>
    %c0_9 = arith.constant 0 : index
    %c0_10 = arith.constant 0 : index
    %11 = vector.load %arg6[%c0_9, %c0_10] : memref<1x128xf32, #tpu.memory_space<vmem>>, vector<1x128xf32>
    %12 = vector.broadcast %11 : vector<1x128xf32> to vector<128x128xf32>
    %13 = arith.addf %10, %12 : vector<128x128xf32>
    %14 = arith.addf %6, %13 : vector<128x128xf32>
    %cst = arith.constant 0.000000e+00 : f32
    %15 = vector.broadcast %cst : f32 to vector<128x128xf32>
    %16 = arith.maximumf %14, %15 : vector<128x128xf32>
    %c0_11 = arith.constant 0 : index
    %c0_12 = arith.constant 0 : index
    %17 = vector.load %arg7[%c0_11, %c0_12] : memref<128x128xf32, #tpu.memory_space<vmem>>, vector<128x128xf32>
    tpu.vector_store %arg7[%c0_11, %c0_12], %16 {strides = array<i32>} : memref<128x128xf32, #tpu.memory_space<vmem>>, vector<128x128xf32>,
    return
  }
  func.func @transform_0(%arg0: i32) -> (i32, i32) {
    %c0_i32 = arith.constant 0 : i32
    %c0_i32_0 = arith.constant 0 : i32
    return %arg0, %c0_i32 : i32, i32
  }
  func.func @transform_1(%arg0: i32) -> (i32, i32) {
    %c0_i32 = arith.constant 0 : i32
    %c0_i32_0 = arith.constant 0 : i32
    %c0_i32_1 = arith.constant 0 : i32
    return %c0_i32, %c0_i32_0 : i32, i32
  }
  func.func @transform_2(%arg0: i32) -> (i32, i32) {
    %c0_i32 = arith.constant 0 : i32
    %c0_i32_0 = arith.constant 0 : i32
    %c0_i32_1 = arith.constant 0 : i32
    return %c0_i32, %c0_i32_0 : i32, i32
  }
  func.func @transform_3(%arg0: i32) -> (i32, i32) {
    %c0_i32 = arith.constant 0 : i32
    %c0_i32_0 = arith.constant 0 : i32
    return %arg0, %c0_i32 : i32, i32
  }
  func.func @transform_4(%arg0: i32) -> (i32, i32) {
    %c0_i32 = arith.constant 0 : i32
    %c0_i32_0 = arith.constant 0 : i32
    %c0_i32_1 = arith.constant 0 : i32
    return %c0_i32, %c0_i32_0 : i32, i32
  }
  func.func @transform_5(%arg0: i32) -> (i32, i32) {
    %c0_i32 = arith.constant 0 : i32
    %c0_i32_0 = arith.constant 0 : i32
    %c0_i32_1 = arith.constant 0 : i32
    return %c0_i32, %c0_i32_0 : i32, i32
  }
  func.func @transform_6(%arg0: i32) -> (i32, i32) {
    %c0_i32 = arith.constant 0 : i32
    %c0_i32_0 = arith.constant 0 : i32
    return %arg0, %c0_i32 : i32, i32
  }
}

</mosaic_0001>

<llo_original>
// kernel: encoder_block_forward.5
$region0: #{encoder_block_forward.5}
  #allocation0 [shape = 'u32[]', space=smem, size = 0x4, offset = 0x4, fixed_abs, tag = 'smem constant byte address 0x4 - core index']
  #allocation1 [shape = 'u32[144,128]{1,0:T(1,128)}', space=vmem, size = 0x12000, scoped, tag = 'internal scratch']
  %s0 = inlined_call_operand.vmem [shape: f32[512,8], index: 0, kind: input, shape index: {}]
  %s1 = inlined_call_operand.vmem [shape: f32[8,128], index: 1, kind: input, shape index: {}]
  %s2 = inlined_call_operand.vmem [shape: f32[512,128], index: 2, kind: output, shape index: {0}]
  %s3 = inlined_call_operand.vmem [shape: f32[1,1,128], index: 3, kind: output, shape index: {1}]
  %s4 = inlined_call_operand.vmem [shape: f32[1,1,128], index: 4, kind: output, shape index: {2}]
  %5 = xla_tuple %s2, %s3, %s4
  %s6 = sld [smem:[#allocation0]]
  $region34: #{encoder_block_forward.5} parent=0
    _
  %s8 = ssub.s32 1, %s6
  %s9 = scalar_select 0, %s8, %s6
  // Predicated region
  $region2: #{encoder_block_forward.5} parent=0 // pred_check
    _
  $region3: #{encoder_block_forward.5} parent=0 // pred_check_branch
    %11 = sbr.rel (0) target = $region5
  $region4: #{encoder_block_forward.5} parent=0 // pred_region
    _
  $region5: #{encoder_block_forward.5} parent=0 // pred_fallthru
    _
  // Predicated region
  $region6: #{encoder_block_forward.5} parent=0 // pred_check
    _
  $region7: #{encoder_block_forward.5} parent=0 // pred_check_branch
    %13 = sbr.rel (0) target = $region9
  $region8: #{encoder_block_forward.5} parent=0 // pred_region
    _
  $region9: #{encoder_block_forward.5} parent=0 // pred_fallthru
    _
  %v15 = vld [vmem:[%s0] sm:$0xff]
  %v16 = vld [vmem:[%s0 + $0x8] sm:$0xff]
  %v17 = vld [vmem:[%s0 + $0x10] sm:$0xff]
  %v18 = vld [vmem:[%s0 + $0x18] sm:$0xff]
  %v19 = vld [vmem:[%s0 + $0x20] sm:$0xff]
  %v20 = vld [vmem:[%s0 + $0x28] sm:$0xff]
  %v21 = vld [vmem:[%s0 + $0x30] sm:$0xff]
  %v22 = vld [vmem:[%s0 + $0x38] sm:$0xff]
  %v23 = vld [vmem:[%s0 + $0x40] sm:$0xff]
  %v24 = vld [vmem:[%s0 + $0x48] sm:$0xff]
  %v25 = vld [vmem:[%s0 + $0x50] sm:$0xff]
  %v26 = vld [vmem:[%s0 + $0x58] sm:$0xff]
  %v27 = vld [vmem:[%s0 + $0x60] sm:$0xff]
  %v28 = vld [vmem:[%s0 + $0x68] sm:$0xff]
  %v29 = vld [vmem:[%s0 + $0x70] sm:$0xff]
  %v30 = vld [vmem:[%s0 + $0x78] sm:$0xff]
  %v31 = vld [vmem:[%s0 + $0x80] sm:$0xff]
  %v32 = vld [vmem:[%s0 + $0x88] sm:$0xff]
  %v33 = vld [vmem:[%s0 + $0x90] sm:$0xff]
  %v34 = vld [vmem:[%s0 + $0x98] sm:$0xff]
  %v35 = vld [vmem:[%s0 + $0xa0] sm:$0xff]
  %v36 = vld [vmem:[%s0 + $0xa8] sm:$0xff]
  %v37 = vld [vmem:[%s0 + $0xb0] sm:$0xff]
  %v38 = vld [vmem:[%s0 + $0xb8] sm:$0xff]
  %v39 = vld [vmem:[%s0 + $0xc0] sm:$0xff]
  %v40 = vld [vmem:[%s0 + $0xc8] sm:$0xff]
  %v41 = vld [vmem:[%s0 + $0xd0] sm:$0xff]
  %v42 = vld [vmem:[%s0 + $0xd8] sm:$0xff]
  %v43 = vld [vmem:[%s0 + $0xe0] sm:$0xff]
  %v44 = vld [vmem:[%s0 + $0xe8] sm:$0xff]
  %v45 = vld [vmem:[%s0 + $0xf0] sm:$0xff]
  %v46 = vld [vmem:[%s0 + $0xf8] sm:$0xff]
  %v47 = vld [vmem:[%s0 + $0x100] sm:$0xff]
  %v48 = vld [vmem:[%s0 + $0x108] sm:$0xff]
  %v49 = vld [vmem:[%s0 + $0x110] sm:$0xff]
  %v50 = vld [vmem:[%s0 + $0x118] sm:$0xff]
  %v51 = vld [vmem:[%s0 + $0x120] sm:$0xff]
  %v52 = vld [vmem:[%s0 + $0x128] sm:$0xff]
  %v53 = vld [vmem:[%s0 + $0x130] sm:$0xff]
  %v54 = vld [vmem:[%s0 + $0x138] sm:$0xff]
  %v55 = vld [vmem:[%s0 + $0x140] sm:$0xff]
  %v56 = vld [vmem:[%s0 + $0x148] sm:$0xff]
  %v57 = vld [vmem:[%s0 + $0x150] sm:$0xff]
  %v58 = vld [vmem:[%s0 + $0x158] sm:$0xff]
  %v59 = vld [vmem:[%s0 + $0x160] sm:$0xff]
  %v60 = vld [vmem:[%s0 + $0x168] sm:$0xff]
  %v61 = vld [vmem:[%s0 + $0x170] sm:$0xff]
  %v62 = vld [vmem:[%s0 + $0x178] sm:$0xff]
  %v63 = vld [vmem:[%s0 + $0x180] sm:$0xff]
  %v64 = vld [vmem:[%s0 + $0x188] sm:$0xff]
  %v65 = vld [vmem:[%s0 + $0x190] sm:$0xff]
  %v66 = vld [vmem:[%s0 + $0x198] sm:$0xff]
  %v67 = vld [vmem:[%s0 + $0x1a0] sm:$0xff]
  %v68 = vld [vmem:[%s0 + $0x1a8] sm:$0xff]
  %v69 = vld [vmem:[%s0 + $0x1b0] sm:$0xff]
  %v70 = vld [vmem:[%s0 + $0x1b8] sm:$0xff]
  %v71 = vld [vmem:[%s0 + $0x1c0] sm:$0xff]
  %v72 = vld [vmem:[%s0 + $0x1c8] sm:$0xff]
  %v73 = vld [vmem:[%s0 + $0x1d0] sm:$0xff]
  %v74 = vld [vmem:[%s0 + $0x1d8] sm:$0xff]
  %v75 = vld [vmem:[%s0 + $0x1e0] sm:$0xff]
  %v76 = vld [vmem:[%s0 + $0x1e8] sm:$0xff]
  %v77 = vld [vmem:[%s0 + $0x1f0] sm:$0xff]
  %v78 = vld [vmem:[%s0 + $0x1f8] sm:$0xff]
  %v79 = vpack.c.bf16 %v16, %v15
  %v80 = vpack.c.bf16 %v18, %v17
  %v81 = vpack.c.bf16 %v20, %v19
  %v82 = vpack.c.bf16 %v22, %v21
  %v83 = vpack.c.bf16 %v24, %v23
  %v84 = vpack.c.bf16 %v26, %v25
  %v85 = vpack.c.bf16 %v28, %v27
  %v86 = vpack.c.bf16 %v30, %v29
  %v87 = vpack.c.bf16 %v32, %v31
  %v88 = vpack.c.bf16 %v34, %v33
  %v89 = vpack.c.bf16 %v36, %v35
  %v90 = vpack.c.bf16 %v38, %v37
  %v91 = vpack.c.bf16 %v40, %v39
  %v92 = vpack.c.bf16 %v42, %v41
  %v93 = vpack.c.bf16 %v44, %v43
  %v94 = vpack.c.bf16 %v46, %v45
  %v95 = vpack.c.bf16 %v48, %v47
  %v96 = vpack.c.bf16 %v50, %v49
  %v97 = vpack.c.bf16 %v52, %v51
  %v98 = vpack.c.bf16 %v54, %v53
  %v99 = vpack.c.bf16 %v56, %v55
  %v100 = vpack.c.bf16 %v58, %v57
  %v101 = vpack.c.bf16 %v60, %v59
  %v102 = vpack.c.bf16 %v62, %v61
  %v103 = vpack.c.bf16 %v64, %v63
  %v104 = vpack.c.bf16 %v66, %v65
  %v105 = vpack.c.bf16 %v68, %v67
  %v106 = vpack.c.bf16 %v70, %v69
  %v107 = vpack.c.bf16 %v72, %v71
  %v108 = vpack.c.bf16 %v74, %v73
  %v109 = vpack.c.bf16 %v76, %v75
  %v110 = vpack.c.bf16 %v78, %v77
  %v111 = vld [vmem:[%s1] sm:$0xff]
  %v112 = vpack.c.bf16 %v111, %v111
  %vm113 = vcmask 64512
  %v115 = vsel %vm113, %v79, 0
  %v118 = vsel %vm113, %v80, 0
  %v121 = vsel %vm113, %v81, 0
  %v124 = vsel %vm113, %v82, 0
  %v127 = vsel %vm113, %v83, 0
  %v130 = vsel %vm113, %v84, 0
  %v133 = vsel %vm113, %v85, 0
  %v136 = vsel %vm113, %v86, 0
  %v139 = vsel %vm113, %v87, 0
  %v142 = vsel %vm113, %v88, 0
  %v145 = vsel %vm113, %v89, 0
  %v148 = vsel %vm113, %v90, 0
  %v151 = vsel %vm113, %v91, 0
  %v154 = vsel %vm113, %v92, 0
  %v157 = vsel %vm113, %v93, 0
  %v160 = vsel %vm113, %v94, 0
  %v163 = vsel %vm113, %v95, 0
  %v166 = vsel %vm113, %v96, 0
  %v169 = vsel %vm113, %v97, 0
  %v172 = vsel %vm113, %v98, 0
  %v175 = vsel %vm113, %v99, 0
  %v178 = vsel %vm113, %v100, 0
  %v181 = vsel %vm113, %v101, 0
  %v184 = vsel %vm113, %v102, 0
  %v187 = vsel %vm113, %v103, 0
  %v190 = vsel %vm113, %v104, 0
  %v193 = vsel %vm113, %v105, 0
  %v196 = vsel %vm113, %v106, 0
  %v199 = vsel %vm113, %v107, 0
  %v202 = vsel %vm113, %v108, 0
  %v205 = vsel %vm113, %v109, 0
  %v208 = vsel %vm113, %v110, 0
  %vm210 = vcmask 1043456
  %v212 = vsel %vm210, %v112, 0
  %214 = vmatprep.subr.bf16.mxu0 0
  %215 = vmatpush1.bf16.msra.mxu0 0
  %216 = vmatprep.subr.bf16.mxu0 0
  %217 = vmatpush1.bf16.msra.mxu0 0
  %218 = vmatprep.subr.bf16.mxu0 0
  %219 = vmatpush1.bf16.msra.mxu0 0
  %220 = vmatprep.subr.bf16.mxu0 0
  %221 = vmatpush1.bf16.msra.mxu0 0
  %222 = vmatprep.subr.bf16.mxu0 0
  %223 = vmatpush1.bf16.msra.mxu0 0
  %224 = vmatprep.subr.bf16.mxu0 0
  %225 = vmatpush1.bf16.msra.mxu0 0
  %226 = vmatprep.subr.bf16.mxu0 0
  %227 = vmatpush1.bf16.msra.mxu0 0
  %228 = vmatprep.subr.bf16.mxu0 0
  %229 = vmatpush1.bf16.msra.mxu0 %v212
  %230 = vmatprep.subr.bf16.mxu0 0
  %231 = vmatpush2.bf16.msra.mxu0 0
  %232 = vmatprep.subr.bf16.mxu0 0
  %233 = vmatpush2.bf16.msra.mxu0 0
  %234 = vmatprep.subr.bf16.mxu0 0
  %235 = vmatpush2.bf16.msra.mxu0 0
  %236 = vmatprep.subr.bf16.mxu0 0
  %237 = vmatpush2.bf16.msra.mxu0 0
  %238 = vmatprep.subr.bf16.mxu0 0
  %239 = vmatpush2.bf16.msra.mxu0 0
  %240 = vmatprep.subr.bf16.mxu0 0
  %241 = vmatpush2.bf16.msra.mxu0 0
  %242 = vmatprep.subr.bf16.mxu0 0
  %243 = vmatpush2.bf16.msra.mxu0 0
  %244 = vmatprep.subr.bf16.mxu0 0
  %245 = vmatpush2.bf16.msra.mxu0 0
  %246 = vmatprep.mubr.bf16.mxu0 0
  %247 = vmatmul.mubr.bf16.gmra.mxu0 %v115
  %v248 = vpop.f32.mrf.mxu0
  %v249 = vadd.f32 0.0, %v248
  %v250 = vpop.f32.mrf.mxu0
  %v251 = vpop.f32.mrf.mxu0
  %v252 = vadd.f32 0.0, %v251
  %v253 = vpop.f32.mrf.mxu0
  %254 = vmatprep.mubr.bf16.mxu0 0
  %255 = vmatmul.mubr.bf16.gmra.mxu0 %v118
  %v256 = vpop.f32.mrf.mxu0
  %v257 = vadd.f32 0.0, %v256
  %v258 = vpop.f32.mrf.mxu0
  %v259 = vpop.f32.mrf.mxu0
  %v260 = vadd.f32 0.0, %v259
  %v261 = vpop.f32.mrf.mxu0
  %262 = vmatprep.mubr.bf16.mxu0 0
  %263 = vmatmul.mubr.bf16.gmra.mxu0 %v121
  %v264 = vpop.f32.mrf.mxu0
  %v265 = vadd.f32 0.0, %v264
  %v266 = vpop.f32.mrf.mxu0
  %v267 = vpop.f32.mrf.mxu0
  %v268 = vadd.f32 0.0, %v267
  %v269 = vpop.f32.mrf.mxu0
  %270 = vmatprep.mubr.bf16.mxu0 0
  %271 = vmatmul.mubr.bf16.gmra.mxu0 %v124
  %v272 = vpop.f32.mrf.mxu0
  %v273 = vadd.f32 0.0, %v272
  %v274 = vpop.f32.mrf.mxu0
  %v275 = vpop.f32.mrf.mxu0
  %v276 = vadd.f32 0.0, %v275
  %v277 = vpop.f32.mrf.mxu0
  %278 = vmatprep.mubr.bf16.mxu0 0
  %279 = vmatmul.mubr.bf16.gmra.mxu0 %v127
  %v280 = vpop.f32.mrf.mxu0
  %v281 = vadd.f32 0.0, %v280
  %v282 = vpop.f32.mrf.mxu0
  %v283 = vpop.f32.mrf.mxu0
  %v284 = vadd.f32 0.0, %v283
  %v285 = vpop.f32.mrf.mxu0
  %286 = vmatprep.mubr.bf16.mxu0 0
  %287 = vmatmul.mubr.bf16.gmra.mxu0 %v130
  %v288 = vpop.f32.mrf.mxu0
  %v289 = vadd.f32 0.0, %v288
  %v290 = vpop.f32.mrf.mxu0
  %v291 = vpop.f32.mrf.mxu0
  %v292 = vadd.f32 0.0, %v291
  %v293 = vpop.f32.mrf.mxu0
  %294 = vmatprep.mubr.bf16.mxu0 0
  %295 = vmatmul.mubr.bf16.gmra.mxu0 %v133
  %v296 = vpop.f32.mrf.mxu0
  %v297 = vadd.f32 0.0, %v296
  %v298 = vpop.f32.mrf.mxu0
  %v299 = vpop.f32.mrf.mxu0
  %v300 = vadd.f32 0.0, %v299
  %v301 = vpop.f32.mrf.mxu0
  %302 = vmatprep.mubr.bf16.mxu0 0
  %303 = vmatmul.mubr.bf16.gmra.mxu0 %v136
  %v304 = vpop.f32.mrf.mxu0
  %v305 = vadd.f32 0.0, %v304
  %v306 = vpop.f32.mrf.mxu0
  %v307 = vpop.f32.mrf.mxu0
  %v308 = vadd.f32 0.0, %v307
  %v309 = vpop.f32.mrf.mxu0
  %310 = vmatprep.mubr.bf16.mxu0 0
  %311 = vmatmul.mubr.bf16.gmra.mxu0 %v139
  %v312 = vpop.f32.mrf.mxu0
  %v313 = vadd.f32 0.0, %v312
  %v314 = vpop.f32.mrf.mxu0
  %v315 = vpop.f32.mrf.mxu0
  %v316 = vadd.f32 0.0, %v315
  %v317 = vpop.f32.mrf.mxu0
  %318 = vmatprep.mubr.bf16.mxu0 0
  %319 = vmatmul.mubr.bf16.gmra.mxu0 %v142
  %v320 = vpop.f32.mrf.mxu0
  %v321 = vadd.f32 0.0, %v320
  %v322 = vpop.f32.mrf.mxu0
  %v323 = vpop.f32.mrf.mxu0
  %v324 = vadd.f32 0.0, %v323
  %v325 = vpop.f32.mrf.mxu0
  %326 = vmatprep.mubr.bf16.mxu0 0
  %327 = vmatmul.mubr.bf16.gmra.mxu0 %v145
  %v328 = vpop.f32.mrf.mxu0
  %v329 = vadd.f32 0.0, %v328
  %v330 = vpop.f32.mrf.mxu0
  %v331 = vpop.f32.mrf.mxu0
  %v332 = vadd.f32 0.0, %v331
  %v333 = vpop.f32.mrf.mxu0
  %334 = vmatprep.mubr.bf16.mxu0 0
  %335 = vmatmul.mubr.bf16.gmra.mxu0 %v148
  %v336 = vpop.f32.mrf.mxu0
  %v337 = vadd.f32 0.0, %v336
  %v338 = vpop.f32.mrf.mxu0
  %v339 = vpop.f32.mrf.mxu0
  %v340 = vadd.f32 0.0, %v339
  %v341 = vpop.f32.mrf.mxu0
  %342 = vmatprep.mubr.bf16.mxu0 0
  %343 = vmatmul.mubr.bf16.gmra.mxu0 %v151
  %v344 = vpop.f32.mrf.mxu0
  %v345 = vadd.f32 0.0, %v344
  %v346 = vpop.f32.mrf.mxu0
  %v347 = vpop.f32.mrf.mxu0
  %v348 = vadd.f32 0.0, %v347
  %v349 = vpop.f32.mrf.mxu0
  %350 = vmatprep.mubr.bf16.mxu0 0
  %351 = vmatmul.mubr.bf16.gmra.mxu0 %v154
  %v352 = vpop.f32.mrf.mxu0
  %v353 = vadd.f32 0.0, %v352
  %v354 = vpop.f32.mrf.mxu0
  %v355 = vpop.f32.mrf.mxu0
  %v356 = vadd.f32 0.0, %v355
  %v357 = vpop.f32.mrf.mxu0
  %358 = vmatprep.mubr.bf16.mxu0 0
  %359 = vmatmul.mubr.bf16.gmra.mxu0 %v157
  %v360 = vpop.f32.mrf.mxu0
  %v361 = vadd.f32 0.0, %v360
  %v362 = vpop.f32.mrf.mxu0
  %v363 = vpop.f32.mrf.mxu0
  %v364 = vadd.f32 0.0, %v363
  %v365 = vpop.f32.mrf.mxu0
  %366 = vmatprep.mubr.bf16.mxu0 0
  %367 = vmatmul.mubr.bf16.gmra.mxu0 %v160
  %v368 = vpop.f32.mrf.mxu0
  %v369 = vadd.f32 0.0, %v368
  %v370 = vpop.f32.mrf.mxu0
  %v371 = vpop.f32.mrf.mxu0
  %v372 = vadd.f32 0.0, %v371
  %v373 = vpop.f32.mrf.mxu0
  %374 = vmatprep.mubr.bf16.mxu0 0
  %375 = vmatmul.mubr.bf16.gmra.mxu0 %v163
  %v376 = vpop.f32.mrf.mxu0
  %v377 = vadd.f32 0.0, %v376
  %v378 = vpop.f32.mrf.mxu0
  %v379 = vpop.f32.mrf.mxu0
  %v380 = vadd.f32 0.0, %v379
  %v381 = vpop.f32.mrf.mxu0
  %382 = vmatprep.mubr.bf16.mxu0 0
  %383 = vmatmul.mubr.bf16.gmra.mxu0 %v166
  %v384 = vpop.f32.mrf.mxu0
  %v385 = vadd.f32 0.0, %v384
  %v386 = vpop.f32.mrf.mxu0
  %v387 = vpop.f32.mrf.mxu0
  %v388 = vadd.f32 0.0, %v387
  %v389 = vpop.f32.mrf.mxu0
  %390 = vmatprep.mubr.bf16.mxu0 0
  %391 = vmatmul.mubr.bf16.gmra.mxu0 %v169
  %v392 = vpop.f32.mrf.mxu0
  %v393 = vadd.f32 0.0, %v392
  %v394 = vpop.f32.mrf.mxu0
  %v395 = vpop.f32.mrf.mxu0
  %v396 = vadd.f32 0.0, %v395
  %v397 = vpop.f32.mrf.mxu0
  %398 = vmatprep.mubr.bf16.mxu0 0
  %399 = vmatmul.mubr.bf16.gmra.mxu0 %v172
  %v400 = vpop.f32.mrf.mxu0
  %v401 = vadd.f32 0.0, %v400
  %v402 = vpop.f32.mrf.mxu0
  %v403 = vpop.f32.mrf.mxu0
  %v404 = vadd.f32 0.0, %v403
  %v405 = vpop.f32.mrf.mxu0
  %406 = vmatprep.mubr.bf16.mxu0 0
  %407 = vmatmul.mubr.bf16.gmra.mxu0 %v175
  %v408 = vpop.f32.mrf.mxu0
  %v409 = vadd.f32 0.0, %v408
  %v410 = vpop.f32.mrf.mxu0
  %v411 = vpop.f32.mrf.mxu0
  %v412 = vadd.f32 0.0, %v411
  %v413 = vpop.f32.mrf.mxu0
  %414 = vmatprep.mubr.bf16.mxu0 0
  %415 = vmatmul.mubr.bf16.gmra.mxu0 %v178
  %v416 = vpop.f32.mrf.mxu0
  %v417 = vadd.f32 0.0, %v416
  %v418 = vpop.f32.mrf.mxu0
  %v419 = vpop.f32.mrf.mxu0
  %v420 = vadd.f32 0.0, %v419
  %v421 = vpop.f32.mrf.mxu0
  %422 = vmatprep.mubr.bf16.mxu0 0
  %423 = vmatmul.mubr.bf16.gmra.mxu0 %v181
  %v424 = vpop.f32.mrf.mxu0
  %v425 = vadd.f32 0.0, %v424
  %v426 = vpop.f32.mrf.mxu0
  %v427 = vpop.f32.mrf.mxu0
  %v428 = vadd.f32 0.0, %v427
  %v429 = vpop.f32.mrf.mxu0
  %430 = vmatprep.mubr.bf16.mxu0 0
  %431 = vmatmul.mubr.bf16.gmra.mxu0 %v184
  %v432 = vpop.f32.mrf.mxu0
  %v433 = vadd.f32 0.0, %v432
  %v434 = vpop.f32.mrf.mxu0
  %v435 = vpop.f32.mrf.mxu0
  %v436 = vadd.f32 0.0, %v435
  %v437 = vpop.f32.mrf.mxu0
  %438 = vmatprep.mubr.bf16.mxu0 0
  %439 = vmatmul.mubr.bf16.gmra.mxu0 %v187
  %v440 = vpop.f32.mrf.mxu0
  %v441 = vadd.f32 0.0, %v440
  %v442 = vpop.f32.mrf.mxu0
  %v443 = vpop.f32.mrf.mxu0
  %v444 = vadd.f32 0.0, %v443
  %v445 = vpop.f32.mrf.mxu0
  %446 = vmatprep.mubr.bf16.mxu0 0
  %447 = vmatmul.mubr.bf16.gmra.mxu0 %v190
  %v448 = vpop.f32.mrf.mxu0
  %v449 = vadd.f32 0.0, %v448
  %v450 = vpop.f32.mrf.mxu0
  %v451 = vpop.f32.mrf.mxu0
  %v452 = vadd.f32 0.0, %v451
  %v453 = vpop.f32.mrf.mxu0
  %454 = vmatprep.mubr.bf16.mxu0 0
  %455 = vmatmul.mubr.bf16.gmra.mxu0 %v193
  %v456 = vpop.f32.mrf.mxu0
  %v457 = vadd.f32 0.0, %v456
  %v458 = vpop.f32.mrf.mxu0
  %v459 = vpop.f32.mrf.mxu0
  %v460 = vadd.f32 0.0, %v459
  %v461 = vpop.f32.mrf.mxu0
  %462 = vmatprep.mubr.bf16.mxu0 0
  %463 = vmatmul.mubr.bf16.gmra.mxu0 %v196
  %v464 = vpop.f32.mrf.mxu0
  %v465 = vadd.f32 0.0, %v464
  %v466 = vpop.f32.mrf.mxu0
  %v467 = vpop.f32.mrf.mxu0
  %v468 = vadd.f32 0.0, %v467
  %v469 = vpop.f32.mrf.mxu0
  %470 = vmatprep.mubr.bf16.mxu0 0
  %471 = vmatmul.mubr.bf16.gmra.mxu0 %v199
  %v472 = vpop.f32.mrf.mxu0
  %v473 = vadd.f32 0.0, %v472
  %v474 = vpop.f32.mrf.mxu0
  %v475 = vpop.f32.mrf.mxu0
  %v476 = vadd.f32 0.0, %v475
  %v477 = vpop.f32.mrf.mxu0
  %478 = vmatprep.mubr.bf16.mxu0 0
  %479 = vmatmul.mubr.bf16.gmra.mxu0 %v202
  %v480 = vpop.f32.mrf.mxu0
  %v481 = vadd.f32 0.0, %v480
  %v482 = vpop.f32.mrf.mxu0
  %v483 = vpop.f32.mrf.mxu0
  %v484 = vadd.f32 0.0, %v483
  %v485 = vpop.f32.mrf.mxu0
  %486 = vmatprep.mubr.bf16.mxu0 0
  %487 = vmatmul.mubr.bf16.gmra.mxu0 %v205
  %v488 = vpop.f32.mrf.mxu0
  %v489 = vadd.f32 0.0, %v488
  %v490 = vpop.f32.mrf.mxu0
  %v491 = vpop.f32.mrf.mxu0
  %v492 = vadd.f32 0.0, %v491
  %v493 = vpop.f32.mrf.mxu0
  %494 = vmatprep.mubr.bf16.mxu0 0
  %495 = vmatmul.mubr.bf16.gmra.mxu0 %v208
  %v496 = vpop.f32.mrf.mxu0
  %v497 = vadd.f32 0.0, %v496
  %v498 = vpop.f32.mrf.mxu0
  %v499 = vpop.f32.mrf.mxu0
  %v500 = vadd.f32 0.0, %v499
  %v501 = vpop.f32.mrf.mxu0
  %502 = vdwg.mxu0
  %503 = vst [vmem:[%s2] sm:$0xff] %v249
  %504 = vst [vmem:[%s2 + $0x8] sm:$0xff] %v252
  %505 = vst [vmem:[%s2 + $0x10] sm:$0xff] %v257
  %506 = vst [vmem:[%s2 + $0x18] sm:$0xff] %v260
  %507 = vst [vmem:[%s2 + $0x20] sm:$0xff] %v265
  %508 = vst [vmem:[%s2 + $0x28] sm:$0xff] %v268
  %509 = vst [vmem:[%s2 + $0x30] sm:$0xff] %v273
  %510 = vst [vmem:[%s2 + $0x38] sm:$0xff] %v276
  %511 = vst [vmem:[%s2 + $0x40] sm:$0xff] %v281
  %512 = vst [vmem:[%s2 + $0x48] sm:$0xff] %v284
  %513 = vst [vmem:[%s2 + $0x50] sm:$0xff] %v289
  %514 = vst [vmem:[%s2 + $0x58] sm:$0xff] %v292
  %515 = vst [vmem:[%s2 + $0x60] sm:$0xff] %v297
  %516 = vst [vmem:[%s2 + $0x68] sm:$0xff] %v300
  %517 = vst [vmem:[%s2 + $0x70] sm:$0xff] %v305
  %518 = vst [vmem:[%s2 + $0x78] sm:$0xff] %v308
  %519 = vst [vmem:[%s2 + $0x80] sm:$0xff] %v313
  %520 = vst [vmem:[%s2 + $0x88] sm:$0xff] %v316
  %521 = vst [vmem:[%s2 + $0x90] sm:$0xff] %v321
  %522 = vst [vmem:[%s2 + $0x98] sm:$0xff] %v324
  %523 = vst [vmem:[%s2 + $0xa0] sm:$0xff] %v329
  %524 = vst [vmem:[%s2 + $0xa8] sm:$0xff] %v332
  %525 = vst [vmem:[%s2 + $0xb0] sm:$0xff] %v337
  %526 = vst [vmem:[%s2 + $0xb8] sm:$0xff] %v340
  %527 = vst [vmem:[%s2 + $0xc0] sm:$0xff] %v345
  %528 = vst [vmem:[%s2 + $0xc8] sm:$0xff] %v348
  %529 = vst [vmem:[%s2 + $0xd0] sm:$0xff] %v353
  %530 = vst [vmem:[%s2 + $0xd8] sm:$0xff] %v356
  %531 = vst [vmem:[%s2 + $0xe0] sm:$0xff] %v361
  %532 = vst [vmem:[%s2 + $0xe8] sm:$0xff] %v364
  %533 = vst [vmem:[%s2 + $0xf0] sm:$0xff] %v369
  %534 = vst [vmem:[%s2 + $0xf8] sm:$0xff] %v372
  %535 = vst [vmem:[%s2 + $0x100] sm:$0xff] %v377
  %536 = vst [vmem:[%s2 + $0x108] sm:$0xff] %v380
  %537 = vst [vmem:[%s2 + $0x110] sm:$0xff] %v385
  %538 = vst [vmem:[%s2 + $0x118] sm:$0xff] %v388
  %539 = vst [vmem:[%s2 + $0x120] sm:$0xff] %v393
  %540 = vst [vmem:[%s2 + $0x128] sm:$0xff] %v396
  %541 = vst [vmem:[%s2 + $0x130] sm:$0xff] %v401
  %542 = vst [vmem:[%s2 + $0x138] sm:$0xff] %v404
  %543 = vst [vmem:[%s2 + $0x140] sm:$0xff] %v409
  %544 = vst [vmem:[%s2 + $0x148] sm:$0xff] %v412
  %545 = vst [vmem:[%s2 + $0x150] sm:$0xff] %v417
  %546 = vst [vmem:[%s2 + $0x158] sm:$0xff] %v420
  %547 = vst [vmem:[%s2 + $0x160] sm:$0xff] %v425
  %548 = vst [vmem:[%s2 + $0x168] sm:$0xff] %v428
  %549 = vst [vmem:[%s2 + $0x170] sm:$0xff] %v433
  %550 = vst [vmem:[%s2 + $0x178] sm:$0xff] %v436
  %551 = vst [vmem:[%s2 + $0x180] sm:$0xff] %v441
  %552 = vst [vmem:[%s2 + $0x188] sm:$0xff] %v444
  %553 = vst [vmem:[%s2 + $0x190] sm:$0xff] %v449
  %554 = vst [vmem:[%s2 + $0x198] sm:$0xff] %v452
  %555 = vst [vmem:[%s2 + $0x1a0] sm:$0xff] %v457
  %556 = vst [vmem:[%s2 + $0x1a8] sm:$0xff] %v460
  %557 = vst [vmem:[%s2 + $0x1b0] sm:$0xff] %v465
  %558 = vst [vmem:[%s2 + $0x1b8] sm:$0xff] %v468
  %559 = vst [vmem:[%s2 + $0x1c0] sm:$0xff] %v473
  %560 = vst [vmem:[%s2 + $0x1c8] sm:$0xff] %v476
  %561 = vst [vmem:[%s2 + $0x1d0] sm:$0xff] %v481
  %562 = vst [vmem:[%s2 + $0x1d8] sm:$0xff] %v484
  %563 = vst [vmem:[%s2 + $0x1e0] sm:$0xff] %v489
  %564 = vst [vmem:[%s2 + $0x1e8] sm:$0xff] %v492
  %565 = vst [vmem:[%s2 + $0x1f0] sm:$0xff] %v497
  %566 = vst [vmem:[%s2 + $0x1f8] sm:$0xff] %v500
  %v567 = vadd.f32 %v249, %v252
  %v568 = vadd.f32 %v567, %v257
  %v569 = vadd.f32 %v568, %v260
  %v570 = vadd.f32 %v569, %v265
  %v571 = vadd.f32 %v570, %v268
  %v572 = vadd.f32 %v571, %v273
  %v573 = vadd.f32 %v572, %v276
  %v574 = vadd.f32 %v573, %v281
  %v575 = vadd.f32 %v574, %v284
  %v576 = vadd.f32 %v575, %v289
  %v577 = vadd.f32 %v576, %v292
  %v578 = vadd.f32 %v577, %v297
  %v579 = vadd.f32 %v578, %v300
  %v580 = vadd.f32 %v579, %v305
  %v581 = vadd.f32 %v580, %v308
  %v582 = vadd.f32 %v581, %v313
  %v583 = vadd.f32 %v582, %v316
  %v584 = vadd.f32 %v583, %v321
  %v585 = vadd.f32 %v584, %v324
  %v586 = vadd.f32 %v585, %v329
  %v587 = vadd.f32 %v586, %v332
  %v588 = vadd.f32 %v587, %v337
  %v589 = vadd.f32 %v588, %v340
  %v590 = vadd.f32 %v589, %v345
  %v591 = vadd.f32 %v590, %v348
  %v592 = vadd.f32 %v591, %v353
  %v593 = vadd.f32 %v592, %v356
  %v594 = vadd.f32 %v593, %v361
  %v595 = vadd.f32 %v594, %v364
  %v596 = vadd.f32 %v595, %v369
  %v597 = vadd.f32 %v596, %v372
  %v598 = vadd.f32 %v597, %v377
  %v599 = vadd.f32 %v598, %v380
  %v600 = vadd.f32 %v599, %v385
  %v601 = vadd.f32 %v600, %v388
  %v602 = vadd.f32 %v601, %v393
  %v603 = vadd.f32 %v602, %v396
  %v604 = vadd.f32 %v603, %v401
  %v605 = vadd.f32 %v604, %v404
  %v606 = vadd.f32 %v605, %v409
  %v607 = vadd.f32 %v606, %v412
  %v608 = vadd.f32 %v607, %v417
  %v609 = vadd.f32 %v608, %v420
  %v610 = vadd.f32 %v609, %v425
  %v611 = vadd.f32 %v610, %v428
  %v612 = vadd.f32 %v611, %v433
  %v613 = vadd.f32 %v612, %v436
  %v614 = vadd.f32 %v613, %v441
  %v615 = vadd.f32 %v614, %v444
  %v616 = vadd.f32 %v615, %v449
  %v617 = vadd.f32 %v616, %v452
  %v618 = vadd.f32 %v617, %v457
  %v619 = vadd.f32 %v618, %v460
  %v620 = vadd.f32 %v619, %v465
  %v621 = vadd.f32 %v620, %v468
  %v622 = vadd.f32 %v621, %v473
  %v623 = vadd.f32 %v622, %v476
  %v624 = vadd.f32 %v623, %v481
  %v625 = vadd.f32 %v624, %v484
  %v626 = vadd.f32 %v625, %v489
  %v627 = vadd.f32 %v626, %v492
  %v628 = vadd.f32 %v627, %v497
  %v629 = vadd.f32 %v628, %v500
  %v630 = vrot.slane %v629, 4
  %v631 = vadd.f32 %v629, %v630
  %v632 = vrot.slane %v631, 2
  %v633 = vadd.f32 %v631, %v632
  %v634 = vrot.slane %v633, 1
  %v635 = vadd.f32 %v633, %v634
  %v636 = vmul.f32 %v249, %v249
  %v637 = vmul.f32 %v252, %v252
  %v638 = vmul.f32 %v257, %v257
  %v639 = vmul.f32 %v260, %v260
  %v640 = vmul.f32 %v265, %v265
  %v641 = vmul.f32 %v268, %v268
  %v642 = vmul.f32 %v273, %v273
  %v643 = vmul.f32 %v276, %v276
  %v644 = vmul.f32 %v281, %v281
  %v645 = vmul.f32 %v284, %v284
  %v646 = vmul.f32 %v289, %v289
  %v647 = vmul.f32 %v292, %v292
  %v648 = vmul.f32 %v297, %v297
  %v649 = vmul.f32 %v300, %v300
  %v650 = vmul.f32 %v305, %v305
  %v651 = vmul.f32 %v308, %v308
  %v652 = vmul.f32 %v313, %v313
  %v653 = vmul.f32 %v316, %v316
  %v654 = vmul.f32 %v321, %v321
  %v655 = vmul.f32 %v324, %v324
  %v656 = vmul.f32 %v329, %v329
  %v657 = vmul.f32 %v332, %v332
  %v658 = vmul.f32 %v337, %v337
  %v659 = vmul.f32 %v340, %v340
  %v660 = vmul.f32 %v345, %v345
  %v661 = vmul.f32 %v348, %v348
  %v662 = vmul.f32 %v353, %v353
  %v663 = vmul.f32 %v356, %v356
  %v664 = vmul.f32 %v361, %v361
  %v665 = vmul.f32 %v364, %v364
  %v666 = vmul.f32 %v369, %v369
  %v667 = vmul.f32 %v372, %v372
  %v668 = vmul.f32 %v377, %v377
  %v669 = vmul.f32 %v380, %v380
  %v670 = vmul.f32 %v385, %v385
  %v671 = vmul.f32 %v388, %v388
  %v672 = vmul.f32 %v393, %v393
  %v673 = vmul.f32 %v396, %v396
  %v674 = vmul.f32 %v401, %v401
  %v675 = vmul.f32 %v404, %v404
  %v676 = vmul.f32 %v409, %v409
  %v677 = vmul.f32 %v412, %v412
  %v678 = vmul.f32 %v417, %v417
  %v679 = vmul.f32 %v420, %v420
  %v680 = vmul.f32 %v425, %v425
  %v681 = vmul.f32 %v428, %v428
  %v682 = vmul.f32 %v433, %v433
  %v683 = vmul.f32 %v436, %v436
  %v684 = vmul.f32 %v441, %v441
  %v685 = vmul.f32 %v444, %v444
  %v686 = vmul.f32 %v449, %v449
  %v687 = vmul.f32 %v452, %v452
  %v688 = vmul.f32 %v457, %v457
  %v689 = vmul.f32 %v460, %v460
  %v690 = vmul.f32 %v465, %v465
  %v691 = vmul.f32 %v468, %v468
  %v692 = vmul.f32 %v473, %v473
  %v693 = vmul.f32 %v476, %v476
  %v694 = vmul.f32 %v481, %v481
  %v695 = vmul.f32 %v484, %v484
  %v696 = vmul.f32 %v489, %v489
  %v697 = vmul.f32 %v492, %v492
  %v698 = vmul.f32 %v497, %v497
  %v699 = vmul.f32 %v500, %v500
  %v700 = vadd.f32 %v636, %v637
  %v701 = vadd.f32 %v700, %v638
  %v702 = vadd.f32 %v701, %v639
  %v703 = vadd.f32 %v702, %v640
  %v704 = vadd.f32 %v703, %v641
  %v705 = vadd.f32 %v704, %v642
  %v706 = vadd.f32 %v705, %v643
  %v707 = vadd.f32 %v706, %v644
  %v708 = vadd.f32 %v707, %v645
  %v709 = vadd.f32 %v708, %v646
  %v710 = vadd.f32 %v709, %v647
  %v711 = vadd.f32 %v710, %v648
  %v712 = vadd.f32 %v711, %v649
  %v713 = vadd.f32 %v712, %v650
  %v714 = vadd.f32 %v713, %v651
  %v715 = vadd.f32 %v714, %v652
  %v716 = vadd.f32 %v715, %v653
  %v717 = vadd.f32 %v716, %v654
  %v718 = vadd.f32 %v717, %v655
  %v719 = vadd.f32 %v718, %v656
  %v720 = vadd.f32 %v719, %v657
  %v721 = vadd.f32 %v720, %v658
  %v722 = vadd.f32 %v721, %v659
  %v723 = vadd.f32 %v722, %v660
  %v724 = vadd.f32 %v723, %v661
  %v725 = vadd.f32 %v724, %v662
  %v726 = vadd.f32 %v725, %v663
  %v727 = vadd.f32 %v726, %v664
  %v728 = vadd.f32 %v727, %v665
  %v729 = vadd.f32 %v728, %v666
  %v730 = vadd.f32 %v729, %v667
  %v731 = vadd.f32 %v730, %v668
  %v732 = vadd.f32 %v731, %v669
  %v733 = vadd.f32 %v732, %v670
  %v734 = vadd.f32 %v733, %v671
  %v735 = vadd.f32 %v734, %v672
  %v736 = vadd.f32 %v735, %v673
  %v737 = vadd.f32 %v736, %v674
  %v738 = vadd.f32 %v737, %v675
  %v739 = vadd.f32 %v738, %v676
  %v740 = vadd.f32 %v739, %v677
  %v741 = vadd.f32 %v740, %v678
  %v742 = vadd.f32 %v741, %v679
  %v743 = vadd.f32 %v742, %v680
  %v744 = vadd.f32 %v743, %v681
  %v745 = vadd.f32 %v744, %v682
  %v746 = vadd.f32 %v745, %v683
  %v747 = vadd.f32 %v746, %v684
  %v748 = vadd.f32 %v747, %v685
  %v749 = vadd.f32 %v748, %v686
  %v750 = vadd.f32 %v749, %v687
  %v751 = vadd.f32 %v750, %v688
  %v752 = vadd.f32 %v751, %v689
  %v753 = vadd.f32 %v752, %v690
  %v754 = vadd.f32 %v753, %v691
  %v755 = vadd.f32 %v754, %v692
  %v756 = vadd.f32 %v755, %v693
  %v757 = vadd.f32 %v756, %v694
  %v758 = vadd.f32 %v757, %v695
  %v759 = vadd.f32 %v758, %v696
  %v760 = vadd.f32 %v759, %v697
  %v761 = vadd.f32 %v760, %v698
  %v762 = vadd.f32 %v761, %v699
  %v763 = vrot.slane %v762, 4
  %v764 = vadd.f32 %v762, %v763
  %v765 = vrot.slane %v764, 2
  %v766 = vadd.f32 %v764, %v765
  %v767 = vrot.slane %v766, 1
  %v768 = vadd.f32 %v766, %v767
  %769 = vst [vmem:[%s3] sm:$0x1] %v635
  %770 = vst [vmem:[%s4] sm:$0x1] %v768
  // Predicated region
  $region10: #{encoder_block_forward.5} parent=0 // pred_check
    _
  $region11: #{encoder_block_forward.5} parent=0 // pred_check_branch
    %772 = sbr.rel (0) target = $region13
  $region12: #{encoder_block_forward.5} parent=0 // pred_region
    _
  $region13: #{encoder_block_forward.5} parent=0 // pred_fallthru
    _
  // Predicated region
  $region14: #{encoder_block_forward.5} parent=0 // pred_check
    _
  $region15: #{encoder_block_forward.5} parent=0 // pred_check_branch
    %774 = sbr.rel (0) target = $region17
  $region16: #{encoder_block_forward.5} parent=0 // pred_region
    _
  $region17: #{encoder_block_forward.5} parent=0 // pred_fallthru
    _
  // Predicated region
  $region18: #{encoder_block_forward.5} parent=0 // pred_check
    _
  $region19: #{encoder_block_forward.5} parent=0 // pred_check_branch
    %776 = sbr.rel (0) target = $region21
  $region20: #{encoder_block_forward.5} parent=0 // pred_region
    _
  $region21: #{encoder_block_forward.5} parent=0 // pred_fallthru
    _
  // Predicated region
  $region22: #{encoder_block_forward.5} parent=0 // pred_check
    _
  $region23: #{encoder_block_forward.5} parent=0 // pred_check_branch
    %778 = sbr.rel (0) target = $region25
  $region24: #{encoder_block_forward.5} parent=0 // pred_region
    _
  $region25: #{encoder_block_forward.5} parent=0 // pred_fallthru
    _
  // Predicated region
  $region26: #{encoder_block_forward.5} parent=0 // pred_check
    _
  $region27: #{encoder_block_forward.5} parent=0 // pred_check_branch
    %780 = sbr.rel (0) target = $region29
  $region28: #{encoder_block_forward.5} parent=0 // pred_region
    _
  $region29: #{encoder_block_forward.5} parent=0 // pred_fallthru
    _
  // Predicated region
  $region30: #{encoder_block_forward.5} parent=0 // pred_check
    _
  $region31: #{encoder_block_forward.5} parent=0 // pred_check_branch
    %782 = sbr.rel (0) target = $region33
  $region32: #{encoder_block_forward.5} parent=0 // pred_region
    _
  $region33: #{encoder_block_forward.5} parent=0 // pred_fallthru
    _

// kernel: encoder_block_forward.7
$region0: #{encoder_block_forward.7}
  #allocation0 [shape = 'u32[]', space=smem, size = 0x4, offset = 0x4, fixed_abs, tag = 'smem constant byte address 0x4 - core index']
  #allocation1 [shape = 'u32[144,128]{1,0:T(1,128)}', space=vmem, size = 0x12000, scoped, tag = 'internal scratch']
  %s0 = inlined_call_operand.vmem [shape: f32[128,128], index: 0, kind: input, shape index: {}]
  %s1 = inlined_call_operand.vmem [shape: f32[1,128], index: 1, kind: input, shape index: {}]
  %s2 = inlined_call_operand.vmem [shape: f32[1,128], index: 2, kind: input, shape index: {}]
  %s3 = inlined_call_operand.vmem [shape: f32[128,128], index: 3, kind: input, shape index: {}]
  %s4 = inlined_call_operand.vmem [shape: f32[128,128], index: 4, kind: output, shape index: {0}]
  %s5 = inlined_call_operand.vmem [shape: f32[1,1,128], index: 5, kind: output, shape index: {1}]
  %s6 = inlined_call_operand.vmem [shape: f32[1,1,128], index: 6, kind: output, shape index: {2}]
  %7 = xla_tuple %s4, %s5, %s6
  %s8 = sld [smem:[#allocation0]]
  $region42: #{encoder_block_forward.7} parent=0
    _
  %s10 = ssub.s32 1, %s8
  %s11 = scalar_select 0, %s10, %s8
  // Predicated region
  $region2: #{encoder_block_forward.7} parent=0 // pred_check
    _
  $region3: #{encoder_block_forward.7} parent=0 // pred_check_branch
    %13 = sbr.rel (0) target = $region5
  $region4: #{encoder_block_forward.7} parent=0 // pred_region
    _
  $region5: #{encoder_block_forward.7} parent=0 // pred_fallthru
    _
  // Predicated region
  $region6: #{encoder_block_forward.7} parent=0 // pred_check
    _
  $region7: #{encoder_block_forward.7} parent=0 // pred_check_branch
    %15 = sbr.rel (0) target = $region9
  $region8: #{encoder_block_forward.7} parent=0 // pred_region
    _
  $region9: #{encoder_block_forward.7} parent=0 // pred_fallthru
    _
  // Predicated region
  $region10: #{encoder_block_forward.7} parent=0 // pred_check
    _
  $region11: #{encoder_block_forward.7} parent=0 // pred_check_branch
    %17 = sbr.rel (0) target = $region13
  $region12: #{encoder_block_forward.7} parent=0 // pred_region
    _
  $region13: #{encoder_block_forward.7} parent=0 // pred_fallthru
    _
  // Predicated region
  $region14: #{encoder_block_forward.7} parent=0 // pred_check
    _
  $region15: #{encoder_block_forward.7} parent=0 // pred_check_branch
    %19 = sbr.rel (0) target = $region17
  $region16: #{encoder_block_forward.7} parent=0 // pred_region
    _
  $region17: #{encoder_block_forward.7} parent=0 // pred_fallthru
    _
  %v21 = vld [vmem:[%s0] sm:$0xff]
  %v22 = vld [vmem:[%s0 + $0x8] sm:$0xff]
  %v23 = vld [vmem:[%s0 + $0x10] sm:$0xff]
  %v24 = vld [vmem:[%s0 + $0x18] sm:$0xff]
  %v25 = vld [vmem:[%s0 + $0x20] sm:$0xff]
  %v26 = vld [vmem:[%s0 + $0x28] sm:$0xff]
  %v27 = vld [vmem:[%s0 + $0x30] sm:$0xff]
  %v28 = vld [vmem:[%s0 + $0x38] sm:$0xff]
  %v29 = vld [vmem:[%s0 + $0x40] sm:$0xff]
  %v30 = vld [vmem:[%s0 + $0x48] sm:$0xff]
  %v31 = vld [vmem:[%s0 + $0x50] sm:$0xff]
  %v32 = vld [vmem:[%s0 + $0x58] sm:$0xff]
  %v33 = vld [vmem:[%s0 + $0x60] sm:$0xff]
  %v34 = vld [vmem:[%s0 + $0x68] sm:$0xff]
  %v35 = vld [vmem:[%s0 + $0x70] sm:$0xff]
  %v36 = vld [vmem:[%s0 + $0x78] sm:$0xff]
  %v37 = vld [vmem:[%s1] sm:$0x1]
  %v39 = vlaneseq
  %v40 = vshrl.u32 %v39, 7
  %v41 = vsub.s32 0, %v40
  %v42 = vrot.slane %v37, %v41
  %v44 = vmul.f32 %v21, %v42
  %v45 = vmul.f32 %v22, %v42
  %v46 = vmul.f32 %v23, %v42
  %v47 = vmul.f32 %v24, %v42
  %v48 = vmul.f32 %v25, %v42
  %v49 = vmul.f32 %v26, %v42
  %v50 = vmul.f32 %v27, %v42
  %v51 = vmul.f32 %v28, %v42
  %v52 = vmul.f32 %v29, %v42
  %v53 = vmul.f32 %v30, %v42
  %v54 = vmul.f32 %v31, %v42
  %v55 = vmul.f32 %v32, %v42
  %v56 = vmul.f32 %v33, %v42
  %v57 = vmul.f32 %v34, %v42
  %v58 = vmul.f32 %v35, %v42
  %v59 = vmul.f32 %v36, %v42
  %v60 = vld [vmem:[%s2] sm:$0x1]
  %v62 = vlaneseq
  %v63 = vshrl.u32 %v62, 7
  %v64 = vsub.s32 0, %v63
  %v65 = vrot.slane %v60, %v64
  %v67 = vadd.f32 %v44, %v65
  %v68 = vadd.f32 %v45, %v65
  %v69 = vadd.f32 %v46, %v65
  %v70 = vadd.f32 %v47, %v65
  %v71 = vadd.f32 %v48, %v65
  %v72 = vadd.f32 %v49, %v65
  %v73 = vadd.f32 %v50, %v65
  %v74 = vadd.f32 %v51, %v65
  %v75 = vadd.f32 %v52, %v65
  %v76 = vadd.f32 %v53, %v65
  %v77 = vadd.f32 %v54, %v65
  %v78 = vadd.f32 %v55, %v65
  %v79 = vadd.f32 %v56, %v65
  %v80 = vadd.f32 %v57, %v65
  %v81 = vadd.f32 %v58, %v65
  %v82 = vadd.f32 %v59, %v65
  %v83 = vmax.f32 %v67, 0.0
  %v84 = vmax.f32 %v68, 0.0
  %v85 = vmax.f32 %v69, 0.0
  %v86 = vmax.f32 %v70, 0.0
  %v87 = vmax.f32 %v71, 0.0
  %v88 = vmax.f32 %v72, 0.0
  %v89 = vmax.f32 %v73, 0.0
  %v90 = vmax.f32 %v74, 0.0
  %v91 = vmax.f32 %v75, 0.0
  %v92 = vmax.f32 %v76, 0.0
  %v93 = vmax.f32 %v77, 0.0
  %v94 = vmax.f32 %v78, 0.0
  %v95 = vmax.f32 %v79, 0.0
  %v96 = vmax.f32 %v80, 0.0
  %v97 = vmax.f32 %v81, 0.0
  %v98 = vmax.f32 %v82, 0.0
  %v99 = vpack.c.bf16 %v84, %v83
  %v100 = vpack.c.bf16 %v86, %v85
  %v101 = vpack.c.bf16 %v88, %v87
  %v102 = vpack.c.bf16 %v90, %v89
  %v103 = vpack.c.bf16 %v92, %v91
  %v104 = vpack.c.bf16 %v94, %v93
  %v105 = vpack.c.bf16 %v96, %v95
  %v106 = vpack.c.bf16 %v98, %v97
  %v107 = vld [vmem:[%s3] sm:$0xff]
  %v108 = vld [vmem:[%s3 + $0x8] sm:$0xff]
  %v109 = vld [vmem:[%s3 + $0x10] sm:$0xff]
  %v110 = vld [vmem:[%s3 + $0x18] sm:$0xff]
  %v111 = vld [vmem:[%s3 + $0x20] sm:$0xff]
  %v112 = vld [vmem:[%s3 + $0x28] sm:$0xff]
  %v113 = vld [vmem:[%s3 + $0x30] sm:$0xff]
  %v114 = vld [vmem:[%s3 + $0x38] sm:$0xff]
  %v115 = vld [vmem:[%s3 + $0x40] sm:$0xff]
  %v116 = vld [vmem:[%s3 + $0x48] sm:$0xff]
  %v117 = vld [vmem:[%s3 + $0x50] sm:$0xff]
  %v118 = vld [vmem:[%s3 + $0x58] sm:$0xff]
  %v119 = vld [vmem:[%s3 + $0x60] sm:$0xff]
  %v120 = vld [vmem:[%s3 + $0x68] sm:$0xff]
  %v121 = vld [vmem:[%s3 + $0x70] sm:$0xff]
  %v122 = vld [vmem:[%s3 + $0x78] sm:$0xff]
  %v123 = vpack.c.bf16 %v108, %v107
  %v124 = vpack.c.bf16 %v110, %v109
  %v125 = vpack.c.bf16 %v112, %v111
  %v126 = vpack.c.bf16 %v114, %v113
  %v127 = vpack.c.bf16 %v116, %v115
  %v128 = vpack.c.bf16 %v118, %v117
  %v129 = vpack.c.bf16 %v120, %v119
  %v130 = vpack.c.bf16 %v122, %v121
  %131 = vmatprep.subr.bf16.mxu0 0
  %132 = vmatpush1.bf16.msra.mxu0 %v130
  %133 = vmatprep.subr.bf16.mxu0 0
  %134 = vmatpush1.bf16.msra.mxu0 %v129
  %135 = vmatprep.subr.bf16.mxu0 0
  %136 = vmatpush1.bf16.msra.mxu0 %v128
  %137 = vmatprep.subr.bf16.mxu0 0
  %138 = vmatpush1.bf16.msra.mxu0 %v127
  %139 = vmatprep.subr.bf16.mxu0 0
  %140 = vmatpush1.bf16.msra.mxu0 %v126
  %141 = vmatprep.subr.bf16.mxu0 0
  %142 = vmatpush1.bf16.msra.mxu0 %v125
  %143 = vmatprep.subr.bf16.mxu0 0
  %144 = vmatpush1.bf16.msra.mxu0 %v124
  %145 = vmatprep.subr.bf16.mxu0 0
  %146 = vmatpush1.bf16.msra.mxu0 %v123
  %147 = vmatprep.subr.bf16.mxu0 0
  %148 = vmatpush2.bf16.msra.mxu0 0
  %149 = vmatprep.subr.bf16.mxu0 0
  %150 = vmatpush2.bf16.msra.mxu0 0
  %151 = vmatprep.subr.bf16.mxu0 0
  %152 = vmatpush2.bf16.msra.mxu0 0
  %153 = vmatprep.subr.bf16.mxu0 0
  %154 = vmatpush2.bf16.msra.mxu0 0
  %155 = vmatprep.subr.bf16.mxu0 0
  %156 = vmatpush2.bf16.msra.mxu0 0
  %157 = vmatprep.subr.bf16.mxu0 0
  %158 = vmatpush2.bf16.msra.mxu0 0
  %159 = vmatprep.subr.bf16.mxu0 0
  %160 = vmatpush2.bf16.msra.mxu0 0
  %161 = vmatprep.subr.bf16.mxu0 0
  %162 = vmatpush2.bf16.msra.mxu0 0
  %163 = vmatprep.mubr.bf16.mxu0 0
  %164 = vmatmul.mubr.bf16.gmra.mxu0 %v99
  %v165 = vpop.f32.mrf.mxu0
  %v166 = vadd.f32 0.0, %v165
  %v167 = vpop.f32.mrf.mxu0
  %v168 = vpop.f32.mrf.mxu0
  %v169 = vadd.f32 0.0, %v168
  %v170 = vpop.f32.mrf.mxu0
  %171 = vmatprep.mubr.bf16.mxu0 0
  %172 = vmatmul.mubr.bf16.gmra.mxu0 %v100
  %v173 = vpop.f32.mrf.mxu0
  %v174 = vadd.f32 0.0, %v173
  %v175 = vpop.f32.mrf.mxu0
  %v176 = vpop.f32.mrf.mxu0
  %v177 = vadd.f32 0.0, %v176
  %v178 = vpop.f32.mrf.mxu0
  %179 = vmatprep.mubr.bf16.mxu0 0
  %180 = vmatmul.mubr.bf16.gmra.mxu0 %v101
  %v181 = vpop.f32.mrf.mxu0
  %v182 = vadd.f32 0.0, %v181
  %v183 = vpop.f32.mrf.mxu0
  %v184 = vpop.f32.mrf.mxu0
  %v185 = vadd.f32 0.0, %v184
  %v186 = vpop.f32.mrf.mxu0
  %187 = vmatprep.mubr.bf16.mxu0 0
  %188 = vmatmul.mubr.bf16.gmra.mxu0 %v102
  %v189 = vpop.f32.mrf.mxu0
  %v190 = vadd.f32 0.0, %v189
  %v191 = vpop.f32.mrf.mxu0
  %v192 = vpop.f32.mrf.mxu0
  %v193 = vadd.f32 0.0, %v192
  %v194 = vpop.f32.mrf.mxu0
  %195 = vmatprep.mubr.bf16.mxu0 0
  %196 = vmatmul.mubr.bf16.gmra.mxu0 %v103
  %v197 = vpop.f32.mrf.mxu0
  %v198 = vadd.f32 0.0, %v197
  %v199 = vpop.f32.mrf.mxu0
  %v200 = vpop.f32.mrf.mxu0
  %v201 = vadd.f32 0.0, %v200
  %v202 = vpop.f32.mrf.mxu0
  %203 = vmatprep.mubr.bf16.mxu0 0
  %204 = vmatmul.mubr.bf16.gmra.mxu0 %v104
  %v205 = vpop.f32.mrf.mxu0
  %v206 = vadd.f32 0.0, %v205
  %v207 = vpop.f32.mrf.mxu0
  %v208 = vpop.f32.mrf.mxu0
  %v209 = vadd.f32 0.0, %v208
  %v210 = vpop.f32.mrf.mxu0
  %211 = vmatprep.mubr.bf16.mxu0 0
  %212 = vmatmul.mubr.bf16.gmra.mxu0 %v105
  %v213 = vpop.f32.mrf.mxu0
  %v214 = vadd.f32 0.0, %v213
  %v215 = vpop.f32.mrf.mxu0
  %v216 = vpop.f32.mrf.mxu0
  %v217 = vadd.f32 0.0, %v216
  %v218 = vpop.f32.mrf.mxu0
  %219 = vmatprep.mubr.bf16.mxu0 0
  %220 = vmatmul.mubr.bf16.gmra.mxu0 %v106
  %v221 = vpop.f32.mrf.mxu0
  %v222 = vadd.f32 0.0, %v221
  %v223 = vpop.f32.mrf.mxu0
  %v224 = vpop.f32.mrf.mxu0
  %v225 = vadd.f32 0.0, %v224
  %v226 = vpop.f32.mrf.mxu0
  %227 = vdwg.mxu0
  %228 = vst [vmem:[%s4] sm:$0xff] %v166
  %229 = vst [vmem:[%s4 + $0x8] sm:$0xff] %v169
  %230 = vst [vmem:[%s4 + $0x10] sm:$0xff] %v174
  %231 = vst [vmem:[%s4 + $0x18] sm:$0xff] %v177
  %232 = vst [vmem:[%s4 + $0x20] sm:$0xff] %v182
  %233 = vst [vmem:[%s4 + $0x28] sm:$0xff] %v185
  %234 = vst [vmem:[%s4 + $0x30] sm:$0xff] %v190
  %235 = vst [vmem:[%s4 + $0x38] sm:$0xff] %v193
  %236 = vst [vmem:[%s4 + $0x40] sm:$0xff] %v198
  %237 = vst [vmem:[%s4 + $0x48] sm:$0xff] %v201
  %238 = vst [vmem:[%s4 + $0x50] sm:$0xff] %v206
  %239 = vst [vmem:[%s4 + $0x58] sm:$0xff] %v209
  %240 = vst [vmem:[%s4 + $0x60] sm:$0xff] %v214
  %241 = vst [vmem:[%s4 + $0x68] sm:$0xff] %v217
  %242 = vst [vmem:[%s4 + $0x70] sm:$0xff] %v222
  %243 = vst [vmem:[%s4 + $0x78] sm:$0xff] %v225
  %v244 = vadd.f32 %v166, %v169
  %v245 = vadd.f32 %v244, %v174
  %v246 = vadd.f32 %v245, %v177
  %v247 = vadd.f32 %v246, %v182
  %v248 = vadd.f32 %v247, %v185
  %v249 = vadd.f32 %v248, %v190
  %v250 = vadd.f32 %v249, %v193
  %v251 = vadd.f32 %v250, %v198
  %v252 = vadd.f32 %v251, %v201
  %v253 = vadd.f32 %v252, %v206
  %v254 = vadd.f32 %v253, %v209
  %v255 = vadd.f32 %v254, %v214
  %v256 = vadd.f32 %v255, %v217
  %v257 = vadd.f32 %v256, %v222
  %v258 = vadd.f32 %v257, %v225
  %v259 = vrot.slane %v258, 4
  %v260 = vadd.f32 %v258, %v259
  %v261 = vrot.slane %v260, 2
  %v262 = vadd.f32 %v260, %v261
  %v263 = vrot.slane %v262, 1
  %v264 = vadd.f32 %v262, %v263
  %v265 = vmul.f32 %v166, %v166
  %v266 = vmul.f32 %v169, %v169
  %v267 = vmul.f32 %v174, %v174
  %v268 = vmul.f32 %v177, %v177
  %v269 = vmul.f32 %v182, %v182
  %v270 = vmul.f32 %v185, %v185
  %v271 = vmul.f32 %v190, %v190
  %v272 = vmul.f32 %v193, %v193
  %v273 = vmul.f32 %v198, %v198
  %v274 = vmul.f32 %v201, %v201
  %v275 = vmul.f32 %v206, %v206
  %v276 = vmul.f32 %v209, %v209
  %v277 = vmul.f32 %v214, %v214
  %v278 = vmul.f32 %v217, %v217
  %v279 = vmul.f32 %v222, %v222
  %v280 = vmul.f32 %v225, %v225
  %v281 = vadd.f32 %v265, %v266
  %v282 = vadd.f32 %v281, %v267
  %v283 = vadd.f32 %v282, %v268
  %v284 = vadd.f32 %v283, %v269
  %v285 = vadd.f32 %v284, %v270
  %v286 = vadd.f32 %v285, %v271
  %v287 = vadd.f32 %v286, %v272
  %v288 = vadd.f32 %v287, %v273
  %v289 = vadd.f32 %v288, %v274
  %v290 = vadd.f32 %v289, %v275
  %v291 = vadd.f32 %v290, %v276
  %v292 = vadd.f32 %v291, %v277
  %v293 = vadd.f32 %v292, %v278
  %v294 = vadd.f32 %v293, %v279
  %v295 = vadd.f32 %v294, %v280
  %v296 = vrot.slane %v295, 4
  %v297 = vadd.f32 %v295, %v296
  %v298 = vrot.slane %v297, 2
  %v299 = vadd.f32 %v297, %v298
  %v300 = vrot.slane %v299, 1
  %v301 = vadd.f32 %v299, %v300
  %302 = vst [vmem:[%s5] sm:$0x1] %v264
  %303 = vst [vmem:[%s6] sm:$0x1] %v301
  // Predicated region
  $region18: #{encoder_block_forward.7} parent=0 // pred_check
    _
  $region19: #{encoder_block_forward.7} parent=0 // pred_check_branch
    %305 = sbr.rel (0) target = $region21
  $region20: #{encoder_block_forward.7} parent=0 // pred_region
    _
  $region21: #{encoder_block_forward.7} parent=0 // pred_fallthru
    _
  // Predicated region
  $region22: #{encoder_block_forward.7} parent=0 // pred_check
    _
  $region23: #{encoder_block_forward.7} parent=0 // pred_check_branch
    %307 = sbr.rel (0) target = $region25
  $region24: #{encoder_block_forward.7} parent=0 // pred_region
    _
  $region25: #{encoder_block_forward.7} parent=0 // pred_fallthru
    _
  // Predicated region
  $region26: #{encoder_block_forward.7} parent=0 // pred_check
    _
  $region27: #{encoder_block_forward.7} parent=0 // pred_check_branch
    %309 = sbr.rel (0) target = $region29
  $region28: #{encoder_block_forward.7} parent=0 // pred_region
    _
  $region29: #{encoder_block_forward.7} parent=0 // pred_fallthru
    _
  // Predicated region
  $region30: #{encoder_block_forward.7} parent=0 // pred_check
    _
  $region31: #{encoder_block_forward.7} parent=0 // pred_check_branch
    %311 = sbr.rel (0) target = $region33
  $region32: #{encoder_block_forward.7} parent=0 // pred_region
    _
  $region33: #{encoder_block_forward.7} parent=0 // pred_fallthru
    _
  // Predicated region
  $region34: #{encoder_block_forward.7} parent=0 // pred_check
    _
  $region35: #{encoder_block_forward.7} parent=0 // pred_check_branch
    %313 = sbr.rel (0) target = $region37
  $region36: #{encoder_block_forward.7} parent=0 // pred_region
    _
  $region37: #{encoder_block_forward.7} parent=0 // pred_fallthru
    _
  // Predicated region
  $region38: #{encoder_block_forward.7} parent=0 // pred_check
    _
  $region39: #{encoder_block_forward.7} parent=0 // pred_check_branch
    %315 = sbr.rel (0) target = $region41
  $region40: #{encoder_block_forward.7} parent=0 // pred_region
    _
  $region41: #{encoder_block_forward.7} parent=0 // pred_fallthru
    _

// kernel: encoder_block_forward.8
$region0: #{encoder_block_forward.8}
  #allocation0 [shape = 'u32[]', space=smem, size = 0x4, offset = 0x4, fixed_abs, tag = 'smem constant byte address 0x4 - core index']
  #allocation1 [shape = 'u32[144,128]{1,0:T(1,128)}', space=vmem, size = 0x12000, scoped, tag = 'internal scratch']
  %s0 = inlined_call_operand.vmem [shape: f32[128,8], index: 0, kind: input, shape index: {}]
  %s1 = inlined_call_operand.vmem [shape: f32[8,128], index: 1, kind: input, shape index: {}]
  %s2 = inlined_call_operand.vmem [shape: f32[128,128], index: 2, kind: output, shape index: {0}]
  %s3 = inlined_call_operand.vmem [shape: f32[1,1,128], index: 3, kind: output, shape index: {1}]
  %s4 = inlined_call_operand.vmem [shape: f32[1,1,128], index: 4, kind: output, shape index: {2}]
  %5 = xla_tuple %s2, %s3, %s4
  %s6 = sld [smem:[#allocation0]]
  $region34: #{encoder_block_forward.8} parent=0
    _
  %s8 = ssub.s32 1, %s6
  %s9 = scalar_select 0, %s8, %s6
  // Predicated region
  $region2: #{encoder_block_forward.8} parent=0 // pred_check
    _
  $region3: #{encoder_block_forward.8} parent=0 // pred_check_branch
    %11 = sbr.rel (0) target = $region5
  $region4: #{encoder_block_forward.8} parent=0 // pred_region
    _
  $region5: #{encoder_block_forward.8} parent=0 // pred_fallthru
    _
  // Predicated region
  $region6: #{encoder_block_forward.8} parent=0 // pred_check
    _
  $region7: #{encoder_block_forward.8} parent=0 // pred_check_branch
    %13 = sbr.rel (0) target = $region9
  $region8: #{encoder_block_forward.8} parent=0 // pred_region
    _
  $region9: #{encoder_block_forward.8} parent=0 // pred_fallthru
    _
  %v15 = vld [vmem:[%s0] sm:$0xff]
  %v16 = vld [vmem:[%s0 + $0x8] sm:$0xff]
  %v17 = vld [vmem:[%s0 + $0x10] sm:$0xff]
  %v18 = vld [vmem:[%s0 + $0x18] sm:$0xff]
  %v19 = vld [vmem:[%s0 + $0x20] sm:$0xff]
  %v20 = vld [vmem:[%s0 + $0x28] sm:$0xff]
  %v21 = vld [vmem:[%s0 + $0x30] sm:$0xff]
  %v22 = vld [vmem:[%s0 + $0x38] sm:$0xff]
  %v23 = vld [vmem:[%s0 + $0x40] sm:$0xff]
  %v24 = vld [vmem:[%s0 + $0x48] sm:$0xff]
  %v25 = vld [vmem:[%s0 + $0x50] sm:$0xff]
  %v26 = vld [vmem:[%s0 + $0x58] sm:$0xff]
  %v27 = vld [vmem:[%s0 + $0x60] sm:$0xff]
  %v28 = vld [vmem:[%s0 + $0x68] sm:$0xff]
  %v29 = vld [vmem:[%s0 + $0x70] sm:$0xff]
  %v30 = vld [vmem:[%s0 + $0x78] sm:$0xff]
  %v31 = vpack.c.bf16 %v16, %v15
  %v32 = vpack.c.bf16 %v18, %v17
  %v33 = vpack.c.bf16 %v20, %v19
  %v34 = vpack.c.bf16 %v22, %v21
  %v35 = vpack.c.bf16 %v24, %v23
  %v36 = vpack.c.bf16 %v26, %v25
  %v37 = vpack.c.bf16 %v28, %v27
  %v38 = vpack.c.bf16 %v30, %v29
  %v39 = vld [vmem:[%s1] sm:$0xff]
  %v40 = vpack.c.bf16 %v39, %v39
  %vm41 = vcmask 64512
  %v43 = vsel %vm41, %v31, 0
  %v46 = vsel %vm41, %v32, 0
  %v49 = vsel %vm41, %v33, 0
  %v52 = vsel %vm41, %v34, 0
  %v55 = vsel %vm41, %v35, 0
  %v58 = vsel %vm41, %v36, 0
  %v61 = vsel %vm41, %v37, 0
  %v64 = vsel %vm41, %v38, 0
  %vm66 = vcmask 1043456
  %v68 = vsel %vm66, %v40, 0
  %70 = vmatprep.subr.bf16.mxu0 0
  %71 = vmatpush1.bf16.msra.mxu0 0
  %72 = vmatprep.subr.bf16.mxu0 0
  %73 = vmatpush1.bf16.msra.mxu0 0
  %74 = vmatprep.subr.bf16.mxu0 0
  %75 = vmatpush1.bf16.msra.mxu0 0
  %76 = vmatprep.subr.bf16.mxu0 0
  %77 = vmatpush1.bf16.msra.mxu0 0
  %78 = vmatprep.subr.bf16.mxu0 0
  %79 = vmatpush1.bf16.msra.mxu0 0
  %80 = vmatprep.subr.bf16.mxu0 0
  %81 = vmatpush1.bf16.msra.mxu0 0
  %82 = vmatprep.subr.bf16.mxu0 0
  %83 = vmatpush1.bf16.msra.mxu0 0
  %84 = vmatprep.subr.bf16.mxu0 0
  %85 = vmatpush1.bf16.msra.mxu0 %v68
  %86 = vmatprep.subr.bf16.mxu0 0
  %87 = vmatpush2.bf16.msra.mxu0 0
  %88 = vmatprep.subr.bf16.mxu0 0
  %89 = vmatpush2.bf16.msra.mxu0 0
  %90 = vmatprep.subr.bf16.mxu0 0
  %91 = vmatpush2.bf16.msra.mxu0 0
  %92 = vmatprep.subr.bf16.mxu0 0
  %93 = vmatpush2.bf16.msra.mxu0 0
  %94 = vmatprep.subr.bf16.mxu0 0
  %95 = vmatpush2.bf16.msra.mxu0 0
  %96 = vmatprep.subr.bf16.mxu0 0
  %97 = vmatpush2.bf16.msra.mxu0 0
  %98 = vmatprep.subr.bf16.mxu0 0
  %99 = vmatpush2.bf16.msra.mxu0 0
  %100 = vmatprep.subr.bf16.mxu0 0
  %101 = vmatpush2.bf16.msra.mxu0 0
  %102 = vmatprep.mubr.bf16.mxu0 0
  %103 = vmatmul.mubr.bf16.gmra.mxu0 %v43
  %v104 = vpop.f32.mrf.mxu0
  %v105 = vadd.f32 0.0, %v104
  %v106 = vpop.f32.mrf.mxu0
  %v107 = vpop.f32.mrf.mxu0
  %v108 = vadd.f32 0.0, %v107
  %v109 = vpop.f32.mrf.mxu0
  %110 = vmatprep.mubr.bf16.mxu0 0
  %111 = vmatmul.mubr.bf16.gmra.mxu0 %v46
  %v112 = vpop.f32.mrf.mxu0
  %v113 = vadd.f32 0.0, %v112
  %v114 = vpop.f32.mrf.mxu0
  %v115 = vpop.f32.mrf.mxu0
  %v116 = vadd.f32 0.0, %v115
  %v117 = vpop.f32.mrf.mxu0
  %118 = vmatprep.mubr.bf16.mxu0 0
  %119 = vmatmul.mubr.bf16.gmra.mxu0 %v49
  %v120 = vpop.f32.mrf.mxu0
  %v121 = vadd.f32 0.0, %v120
  %v122 = vpop.f32.mrf.mxu0
  %v123 = vpop.f32.mrf.mxu0
  %v124 = vadd.f32 0.0, %v123
  %v125 = vpop.f32.mrf.mxu0
  %126 = vmatprep.mubr.bf16.mxu0 0
  %127 = vmatmul.mubr.bf16.gmra.mxu0 %v52
  %v128 = vpop.f32.mrf.mxu0
  %v129 = vadd.f32 0.0, %v128
  %v130 = vpop.f32.mrf.mxu0
  %v131 = vpop.f32.mrf.mxu0
  %v132 = vadd.f32 0.0, %v131
  %v133 = vpop.f32.mrf.mxu0
  %134 = vmatprep.mubr.bf16.mxu0 0
  %135 = vmatmul.mubr.bf16.gmra.mxu0 %v55
  %v136 = vpop.f32.mrf.mxu0
  %v137 = vadd.f32 0.0, %v136
  %v138 = vpop.f32.mrf.mxu0
  %v139 = vpop.f32.mrf.mxu0
  %v140 = vadd.f32 0.0, %v139
  %v141 = vpop.f32.mrf.mxu0
  %142 = vmatprep.mubr.bf16.mxu0 0
  %143 = vmatmul.mubr.bf16.gmra.mxu0 %v58
  %v144 = vpop.f32.mrf.mxu0
  %v145 = vadd.f32 0.0, %v144
  %v146 = vpop.f32.mrf.mxu0
  %v147 = vpop.f32.mrf.mxu0
  %v148 = vadd.f32 0.0, %v147
  %v149 = vpop.f32.mrf.mxu0
  %150 = vmatprep.mubr.bf16.mxu0 0
  %151 = vmatmul.mubr.bf16.gmra.mxu0 %v61
  %v152 = vpop.f32.mrf.mxu0
  %v153 = vadd.f32 0.0, %v152
  %v154 = vpop.f32.mrf.mxu0
  %v155 = vpop.f32.mrf.mxu0
  %v156 = vadd.f32 0.0, %v155
  %v157 = vpop.f32.mrf.mxu0
  %158 = vmatprep.mubr.bf16.mxu0 0
  %159 = vmatmul.mubr.bf16.gmra.mxu0 %v64
  %v160 = vpop.f32.mrf.mxu0
  %v161 = vadd.f32 0.0, %v160
  %v162 = vpop.f32.mrf.mxu0
  %v163 = vpop.f32.mrf.mxu0
  %v164 = vadd.f32 0.0, %v163
  %v165 = vpop.f32.mrf.mxu0
  %166 = vdwg.mxu0
  %167 = vst [vmem:[%s2] sm:$0xff] %v105
  %168 = vst [vmem:[%s2 + $0x8] sm:$0xff] %v108
  %169 = vst [vmem:[%s2 + $0x10] sm:$0xff] %v113
  %170 = vst [vmem:[%s2 + $0x18] sm:$0xff] %v116
  %171 = vst [vmem:[%s2 + $0x20] sm:$0xff] %v121
  %172 = vst [vmem:[%s2 + $0x28] sm:$0xff] %v124
  %173 = vst [vmem:[%s2 + $0x30] sm:$0xff] %v129
  %174 = vst [vmem:[%s2 + $0x38] sm:$0xff] %v132
  %175 = vst [vmem:[%s2 + $0x40] sm:$0xff] %v137
  %176 = vst [vmem:[%s2 + $0x48] sm:$0xff] %v140
  %177 = vst [vmem:[%s2 + $0x50] sm:$0xff] %v145
  %178 = vst [vmem:[%s2 + $0x58] sm:$0xff] %v148
  %179 = vst [vmem:[%s2 + $0x60] sm:$0xff] %v153
  %180 = vst [vmem:[%s2 + $0x68] sm:$0xff] %v156
  %181 = vst [vmem:[%s2 + $0x70] sm:$0xff] %v161
  %182 = vst [vmem:[%s2 + $0x78] sm:$0xff] %v164
  %v183 = vadd.f32 %v105, %v108
  %v184 = vadd.f32 %v183, %v113
  %v185 = vadd.f32 %v184, %v116
  %v186 = vadd.f32 %v185, %v121
  %v187 = vadd.f32 %v186, %v124
  %v188 = vadd.f32 %v187, %v129
  %v189 = vadd.f32 %v188, %v132
  %v190 = vadd.f32 %v189, %v137
  %v191 = vadd.f32 %v190, %v140
  %v192 = vadd.f32 %v191, %v145
  %v193 = vadd.f32 %v192, %v148
  %v194 = vadd.f32 %v193, %v153
  %v195 = vadd.f32 %v194, %v156
  %v196 = vadd.f32 %v195, %v161
  %v197 = vadd.f32 %v196, %v164
  %v198 = vrot.slane %v197, 4
  %v199 = vadd.f32 %v197, %v198
  %v200 = vrot.slane %v199, 2
  %v201 = vadd.f32 %v199, %v200
  %v202 = vrot.slane %v201, 1
  %v203 = vadd.f32 %v201, %v202
  %v204 = vmul.f32 %v105, %v105
  %v205 = vmul.f32 %v108, %v108
  %v206 = vmul.f32 %v113, %v113
  %v207 = vmul.f32 %v116, %v116
  %v208 = vmul.f32 %v121, %v121
  %v209 = vmul.f32 %v124, %v124
  %v210 = vmul.f32 %v129, %v129
  %v211 = vmul.f32 %v132, %v132
  %v212 = vmul.f32 %v137, %v137
  %v213 = vmul.f32 %v140, %v140
  %v214 = vmul.f32 %v145, %v145
  %v215 = vmul.f32 %v148, %v148
  %v216 = vmul.f32 %v153, %v153
  %v217 = vmul.f32 %v156, %v156
  %v218 = vmul.f32 %v161, %v161
  %v219 = vmul.f32 %v164, %v164
  %v220 = vadd.f32 %v204, %v205
  %v221 = vadd.f32 %v220, %v206
  %v222 = vadd.f32 %v221, %v207
  %v223 = vadd.f32 %v222, %v208
  %v224 = vadd.f32 %v223, %v209
  %v225 = vadd.f32 %v224, %v210
  %v226 = vadd.f32 %v225, %v211
  %v227 = vadd.f32 %v226, %v212
  %v228 = vadd.f32 %v227, %v213
  %v229 = vadd.f32 %v228, %v214
  %v230 = vadd.f32 %v229, %v215
  %v231 = vadd.f32 %v230, %v216
  %v232 = vadd.f32 %v231, %v217
  %v233 = vadd.f32 %v232, %v218
  %v234 = vadd.f32 %v233, %v219
  %v235 = vrot.slane %v234, 4
  %v236 = vadd.f32 %v234, %v235
  %v237 = vrot.slane %v236, 2
  %v238 = vadd.f32 %v236, %v237
  %v239 = vrot.slane %v238, 1
  %v240 = vadd.f32 %v238, %v239
  %241 = vst [vmem:[%s3] sm:$0x1] %v203
  %242 = vst [vmem:[%s4] sm:$0x1] %v240
  // Predicated region
  $region10: #{encoder_block_forward.8} parent=0 // pred_check
    _
  $region11: #{encoder_block_forward.8} parent=0 // pred_check_branch
    %244 = sbr.rel (0) target = $region13
  $region12: #{encoder_block_forward.8} parent=0 // pred_region
    _
  $region13: #{encoder_block_forward.8} parent=0 // pred_fallthru
    _
  // Predicated region
  $region14: #{encoder_block_forward.8} parent=0 // pred_check
    _
  $region15: #{encoder_block_forward.8} parent=0 // pred_check_branch
    %246 = sbr.rel (0) target = $region17
  $region16: #{encoder_block_forward.8} parent=0 // pred_region
    _
  $region17: #{encoder_block_forward.8} parent=0 // pred_fallthru
    _
  // Predicated region
  $region18: #{encoder_block_forward.8} parent=0 // pred_check
    _
  $region19: #{encoder_block_forward.8} parent=0 // pred_check_branch
    %248 = sbr.rel (0) target = $region21
  $region20: #{encoder_block_forward.8} parent=0 // pred_region
    _
  $region21: #{encoder_block_forward.8} parent=0 // pred_fallthru
    _
  // Predicated region
  $region22: #{encoder_block_forward.8} parent=0 // pred_check
    _
  $region23: #{encoder_block_forward.8} parent=0 // pred_check_branch
    %250 = sbr.rel (0) target = $region25
  $region24: #{encoder_block_forward.8} parent=0 // pred_region
    _
  $region25: #{encoder_block_forward.8} parent=0 // pred_fallthru
    _
  // Predicated region
  $region26: #{encoder_block_forward.8} parent=0 // pred_check
    _
  $region27: #{encoder_block_forward.8} parent=0 // pred_check_branch
    %252 = sbr.rel (0) target = $region29
  $region28: #{encoder_block_forward.8} parent=0 // pred_region
    _
  $region29: #{encoder_block_forward.8} parent=0 // pred_fallthru
    _
  // Predicated region
  $region30: #{encoder_block_forward.8} parent=0 // pred_check
    _
  $region31: #{encoder_block_forward.8} parent=0 // pred_check_branch
    %254 = sbr.rel (0) target = $region33
  $region32: #{encoder_block_forward.8} parent=0 // pred_region
    _
  $region33: #{encoder_block_forward.8} parent=0 // pred_fallthru
    _

// kernel: encoder_block_forward.6
$region0: #{encoder_block_forward.6}
  #allocation0 [shape = 'u32[]', space=smem, size = 0x4, offset = 0x4, fixed_abs, tag = 'smem constant byte address 0x4 - core index']
  #allocation1 [shape = 'u32[144,128]{1,0:T(1,128)}', space=vmem, size = 0x12000, scoped, tag = 'internal scratch']
  %s0 = inlined_call_operand.vmem [shape: f32[128,1152], index: 0, kind: input, shape index: {}]
  %s1 = inlined_call_operand.vmem [shape: f32[1152,128], index: 1, kind: input, shape index: {}]
  %s2 = inlined_call_operand.vmem [shape: f32[128,128], index: 2, kind: output, shape index: {0}]
  %s3 = inlined_call_operand.vmem [shape: f32[1,1,128], index: 3, kind: output, shape index: {1}]
  %s4 = inlined_call_operand.vmem [shape: f32[1,1,128], index: 4, kind: output, shape index: {2}]
  %5 = xla_tuple %s2, %s3, %s4
  %s6 = sld [smem:[#allocation0]]
  $region34: #{encoder_block_forward.6} parent=0
    _
  %s8 = ssub.s32 1, %s6
  %s9 = scalar_select 0, %s8, %s6
  // Predicated region
  $region2: #{encoder_block_forward.6} parent=0 // pred_check
    _
  $region3: #{encoder_block_forward.6} parent=0 // pred_check_branch
    %11 = sbr.rel (0) target = $region5
  $region4: #{encoder_block_forward.6} parent=0 // pred_region
    _
  $region5: #{encoder_block_forward.6} parent=0 // pred_fallthru
    _
  // Predicated region
  $region6: #{encoder_block_forward.6} parent=0 // pred_check
    _
  $region7: #{encoder_block_forward.6} parent=0 // pred_check_branch
    %13 = sbr.rel (0) target = $region9
  $region8: #{encoder_block_forward.6} parent=0 // pred_region
    _
  $region9: #{encoder_block_forward.6} parent=0 // pred_fallthru
    _
  %v15 = vld [vmem:[%s0] sm:$0xff]
  %v16 = vld [vmem:[%s0 + $0x8] sm:$0xff]
  %v17 = vld [vmem:[%s0 + $0x10] sm:$0xff]
  %v18 = vld [vmem:[%s0 + $0x18] sm:$0xff]
  %v19 = vld [vmem:[%s0 + $0x20] sm:$0xff]
  %v20 = vld [vmem:[%s0 + $0x28] sm:$0xff]
  %v21 = vld [vmem:[%s0 + $0x30] sm:$0xff]
  %v22 = vld [vmem:[%s0 + $0x38] sm:$0xff]
  %v23 = vld [vmem:[%s0 + $0x40] sm:$0xff]
  %v24 = vld [vmem:[%s0 + $0x48] sm:$0xff]
  %v25 = vld [vmem:[%s0 + $0x50] sm:$0xff]
  %v26 = vld [vmem:[%s0 + $0x58] sm:$0xff]
  %v27 = vld [vmem:[%s0 + $0x60] sm:$0xff]
  %v28 = vld [vmem:[%s0 + $0x68] sm:$0xff]
  %v29 = vld [vmem:[%s0 + $0x70] sm:$0xff]
  %v30 = vld [vmem:[%s0 + $0x78] sm:$0xff]
  %v31 = vld [vmem:[%s0 + $0x80] sm:$0xff]
  %v32 = vld [vmem:[%s0 + $0x88] sm:$0xff]
  %v33 = vld [vmem:[%s0 + $0x90] sm:$0xff]
  %v34 = vld [vmem:[%s0 + $0x98] sm:$0xff]
  %v35 = vld [vmem:[%s0 + $0xa0] sm:$0xff]
  %v36 = vld [vmem:[%s0 + $0xa8] sm:$0xff]
  %v37 = vld [vmem:[%s0 + $0xb0] sm:$0xff]
  %v38 = vld [vmem:[%s0 + $0xb8] sm:$0xff]
  %v39 = vld [vmem:[%s0 + $0xc0] sm:$0xff]
  %v40 = vld [vmem:[%s0 + $0xc8] sm:$0xff]
  %v41 = vld [vmem:[%s0 + $0xd0] sm:$0xff]
  %v42 = vld [vmem:[%s0 + $0xd8] sm:$0xff]
  %v43 = vld [vmem:[%s0 + $0xe0] sm:$0xff]
  %v44 = vld [vmem:[%s0 + $0xe8] sm:$0xff]
  %v45 = vld [vmem:[%s0 + $0xf0] sm:$0xff]
  %v46 = vld [vmem:[%s0 + $0xf8] sm:$0xff]
  %v47 = vld [vmem:[%s0 + $0x100] sm:$0xff]
  %v48 = vld [vmem:[%s0 + $0x108] sm:$0xff]
  %v49 = vld [vmem:[%s0 + $0x110] sm:$0xff]
  %v50 = vld [vmem:[%s0 + $0x118] sm:$0xff]
  %v51 = vld [vmem:[%s0 + $0x120] sm:$0xff]
  %v52 = vld [vmem:[%s0 + $0x128] sm:$0xff]
  %v53 = vld [vmem:[%s0 + $0x130] sm:$0xff]
  %v54 = vld [vmem:[%s0 + $0x138] sm:$0xff]
  %v55 = vld [vmem:[%s0 + $0x140] sm:$0xff]
  %v56 = vld [vmem:[%s0 + $0x148] sm:$0xff]
  %v57 = vld [vmem:[%s0 + $0x150] sm:$0xff]
  %v58 = vld [vmem:[%s0 + $0x158] sm:$0xff]
  %v59 = vld [vmem:[%s0 + $0x160] sm:$0xff]
  %v60 = vld [vmem:[%s0 + $0x168] sm:$0xff]
  %v61 = vld [vmem:[%s0 + $0x170] sm:$0xff]
  %v62 = vld [vmem:[%s0 + $0x178] sm:$0xff]
  %v63 = vld [vmem:[%s0 + $0x180] sm:$0xff]
  %v64 = vld [vmem:[%s0 + $0x188] sm:$0xff]
  %v65 = vld [vmem:[%s0 + $0x190] sm:$0xff]
  %v66 = vld [vmem:[%s0 + $0x198] sm:$0xff]
  %v67 = vld [vmem:[%s0 + $0x1a0] sm:$0xff]
  %v68 = vld [vmem:[%s0 + $0x1a8] sm:$0xff]
  %v69 = vld [vmem:[%s0 + $0x1b0] sm:$0xff]
  %v70 = vld [vmem:[%s0 + $0x1b8] sm:$0xff]
  %v71 = vld [vmem:[%s0 + $0x1c0] sm:$0xff]
  %v72 = vld [vmem:[%s0 + $0x1c8] sm:$0xff]
  %v73 = vld [vmem:[%s0 + $0x1d0] sm:$0xff]
  %v74 = vld [vmem:[%s0 + $0x1d8] sm:$0xff]
  %v75 = vld [vmem:[%s0 + $0x1e0] sm:$0xff]
  %v76 = vld [vmem:[%s0 + $0x1e8] sm:$0xff]
  %v77 = vld [vmem:[%s0 + $0x1f0] sm:$0xff]
  %v78 = vld [vmem:[%s0 + $0x1f8] sm:$0xff]
  %v79 = vld [vmem:[%s0 + $0x200] sm:$0xff]
  %v80 = vld [vmem:[%s0 + $0x208] sm:$0xff]
  %v81 = vld [vmem:[%s0 + $0x210] sm:$0xff]
  %v82 = vld [vmem:[%s0 + $0x218] sm:$0xff]
  %v83 = vld [vmem:[%s0 + $0x220] sm:$0xff]
  %v84 = vld [vmem:[%s0 + $0x228] sm:$0xff]
  %v85 = vld [vmem:[%s0 + $0x230] sm:$0xff]
  %v86 = vld [vmem:[%s0 + $0x238] sm:$0xff]
  %v87 = vld [vmem:[%s0 + $0x240] sm:$0xff]
  %v88 = vld [vmem:[%s0 + $0x248] sm:$0xff]
  %v89 = vld [vmem:[%s0 + $0x250] sm:$0xff]
  %v90 = vld [vmem:[%s0 + $0x258] sm:$0xff]
  %v91 = vld [vmem:[%s0 + $0x260] sm:$0xff]
  %v92 = vld [vmem:[%s0 + $0x268] sm:$0xff]
  %v93 = vld [vmem:[%s0 + $0x270] sm:$0xff]
  %v94 = vld [vmem:[%s0 + $0x278] sm:$0xff]
  %v95 = vld [vmem:[%s0 + $0x280] sm:$0xff]
  %v96 = vld [vmem:[%s0 + $0x288] sm:$0xff]
  %v97 = vld [vmem:[%s0 + $0x290] sm:$0xff]
  %v98 = vld [vmem:[%s0 + $0x298] sm:$0xff]
  %v99 = vld [vmem:[%s0 + $0x2a0] sm:$0xff]
  %v100 = vld [vmem:[%s0 + $0x2a8] sm:$0xff]
  %v101 = vld [vmem:[%s0 + $0x2b0] sm:$0xff]
  %v102 = vld [vmem:[%s0 + $0x2b8] sm:$0xff]
  %v103 = vld [vmem:[%s0 + $0x2c0] sm:$0xff]
  %v104 = vld [vmem:[%s0 + $0x2c8] sm:$0xff]
  %v105 = vld [vmem:[%s0 + $0x2d0] sm:$0xff]
  %v106 = vld [vmem:[%s0 + $0x2d8] sm:$0xff]
  %v107 = vld [vmem:[%s0 + $0x2e0] sm:$0xff]
  %v108 = vld [vmem:[%s0 + $0x2e8] sm:$0xff]
  %v109 = vld [vmem:[%s0 + $0x2f0] sm:$0xff]
  %v110 = vld [vmem:[%s0 + $0x2f8] sm:$0xff]
  %v111 = vld [vmem:[%s0 + $0x300] sm:$0xff]
  %v112 = vld [vmem:[%s0 + $0x308] sm:$0xff]
  %v113 = vld [vmem:[%s0 + $0x310] sm:$0xff]
  %v114 = vld [vmem:[%s0 + $0x318] sm:$0xff]
  %v115 = vld [vmem:[%s0 + $0x320] sm:$0xff]
  %v116 = vld [vmem:[%s0 + $0x328] sm:$0xff]
  %v117 = vld [vmem:[%s0 + $0x330] sm:$0xff]
  %v118 = vld [vmem:[%s0 + $0x338] sm:$0xff]
  %v119 = vld [vmem:[%s0 + $0x340] sm:$0xff]
  %v120 = vld [vmem:[%s0 + $0x348] sm:$0xff]
  %v121 = vld [vmem:[%s0 + $0x350] sm:$0xff]
  %v122 = vld [vmem:[%s0 + $0x358] sm:$0xff]
  %v123 = vld [vmem:[%s0 + $0x360] sm:$0xff]
  %v124 = vld [vmem:[%s0 + $0x368] sm:$0xff]
  %v125 = vld [vmem:[%s0 + $0x370] sm:$0xff]
  %v126 = vld [vmem:[%s0 + $0x378] sm:$0xff]
  %v127 = vld [vmem:[%s0 + $0x380] sm:$0xff]
  %v128 = vld [vmem:[%s0 + $0x388] sm:$0xff]
  %v129 = vld [vmem:[%s0 + $0x390] sm:$0xff]
  %v130 = vld [vmem:[%s0 + $0x398] sm:$0xff]
  %v131 = vld [vmem:[%s0 + $0x3a0] sm:$0xff]
  %v132 = vld [vmem:[%s0 + $0x3a8] sm:$0xff]
  %v133 = vld [vmem:[%s0 + $0x3b0] sm:$0xff]
  %v134 = vld [vmem:[%s0 + $0x3b8] sm:$0xff]
  %v135 = vld [vmem:[%s0 + $0x3c0] sm:$0xff]
  %v136 = vld [vmem:[%s0 + $0x3c8] sm:$0xff]
  %v137 = vld [vmem:[%s0 + $0x3d0] sm:$0xff]
  %v138 = vld [vmem:[%s0 + $0x3d8] sm:$0xff]
  %v139 = vld [vmem:[%s0 + $0x3e0] sm:$0xff]
  %v140 = vld [vmem:[%s0 + $0x3e8] sm:$0xff]
  %v141 = vld [vmem:[%s0 + $0x3f0] sm:$0xff]
  %v142 = vld [vmem:[%s0 + $0x3f8] sm:$0xff]
  %v143 = vld [vmem:[%s0 + $0x400] sm:$0xff]
  %v144 = vld [vmem:[%s0 + $0x408] sm:$0xff]
  %v145 = vld [vmem:[%s0 + $0x410] sm:$0xff]
  %v146 = vld [vmem:[%s0 + $0x418] sm:$0xff]
  %v147 = vld [vmem:[%s0 + $0x420] sm:$0xff]
  %v148 = vld [vmem:[%s0 + $0x428] sm:$0xff]
  %v149 = vld [vmem:[%s0 + $0x430] sm:$0xff]
  %v150 = vld [vmem:[%s0 + $0x438] sm:$0xff]
  %v151 = vld [vmem:[%s0 + $0x440] sm:$0xff]
  %v152 = vld [vmem:[%s0 + $0x448] sm:$0xff]
  %v153 = vld [vmem:[%s0 + $0x450] sm:$0xff]
  %v154 = vld [vmem:[%s0 + $0x458] sm:$0xff]
  %v155 = vld [vmem:[%s0 + $0x460] sm:$0xff]
  %v156 = vld [vmem:[%s0 + $0x468] sm:$0xff]
  %v157 = vld [vmem:[%s0 + $0x470] sm:$0xff]
  %v158 = vld [vmem:[%s0 + $0x478] sm:$0xff]
  %v159 = vpack.c.bf16 %v24, %v15
  %v160 = vpack.c.bf16 %v25, %v16
  %v161 = vpack.c.bf16 %v26, %v17
  %v162 = vpack.c.bf16 %v27, %v18
  %v163 = vpack.c.bf16 %v28, %v19
  %v164 = vpack.c.bf16 %v29, %v20
  %v165 = vpack.c.bf16 %v30, %v21
  %v166 = vpack.c.bf16 %v31, %v22
  %v167 = vpack.c.bf16 %v32, %v23
  %v168 = vpack.c.bf16 %v42, %v33
  %v169 = vpack.c.bf16 %v43, %v34
  %v170 = vpack.c.bf16 %v44, %v35
  %v171 = vpack.c.bf16 %v45, %v36
  %v172 = vpack.c.bf16 %v46, %v37
  %v173 = vpack.c.bf16 %v47, %v38
  %v174 = vpack.c.bf16 %v48, %v39
  %v175 = vpack.c.bf16 %v49, %v40
  %v176 = vpack.c.bf16 %v50, %v41
  %v177 = vpack.c.bf16 %v60, %v51
  %v178 = vpack.c.bf16 %v61, %v52
  %v179 = vpack.c.bf16 %v62, %v53
  %v180 = vpack.c.bf16 %v63, %v54
  %v181 = vpack.c.bf16 %v64, %v55
  %v182 = vpack.c.bf16 %v65, %v56
  %v183 = vpack.c.bf16 %v66, %v57
  %v184 = vpack.c.bf16 %v67, %v58
  %v185 = vpack.c.bf16 %v68, %v59
  %v186 = vpack.c.bf16 %v78, %v69
  %v187 = vpack.c.bf16 %v79, %v70
  %v188 = vpack.c.bf16 %v80, %v71
  %v189 = vpack.c.bf16 %v81, %v72
  %v190 = vpack.c.bf16 %v82, %v73
  %v191 = vpack.c.bf16 %v83, %v74
  %v192 = vpack.c.bf16 %v84, %v75
  %v193 = vpack.c.bf16 %v85, %v76
  %v194 = vpack.c.bf16 %v86, %v77
  %v195 = vpack.c.bf16 %v96, %v87
  %v196 = vpack.c.bf16 %v97, %v88
  %v197 = vpack.c.bf16 %v98, %v89
  %v198 = vpack.c.bf16 %v99, %v90
  %v199 = vpack.c.bf16 %v100, %v91
  %v200 = vpack.c.bf16 %v101, %v92
  %v201 = vpack.c.bf16 %v102, %v93
  %v202 = vpack.c.bf16 %v103, %v94
  %v203 = vpack.c.bf16 %v104, %v95
  %v204 = vpack.c.bf16 %v114, %v105
  %v205 = vpack.c.bf16 %v115, %v106
  %v206 = vpack.c.bf16 %v116, %v107
  %v207 = vpack.c.bf16 %v117, %v108
  %v208 = vpack.c.bf16 %v118, %v109
  %v209 = vpack.c.bf16 %v119, %v110
  %v210 = vpack.c.bf16 %v120, %v111
  %v211 = vpack.c.bf16 %v121, %v112
  %v212 = vpack.c.bf16 %v122, %v113
  %v213 = vpack.c.bf16 %v132, %v123
  %v214 = vpack.c.bf16 %v133, %v124
  %v215 = vpack.c.bf16 %v134, %v125
  %v216 = vpack.c.bf16 %v135, %v126
  %v217 = vpack.c.bf16 %v136, %v127
  %v218 = vpack.c.bf16 %v137, %v128
  %v219 = vpack.c.bf16 %v138, %v129
  %v220 = vpack.c.bf16 %v139, %v130
  %v221 = vpack.c.bf16 %v140, %v131
  %v222 = vpack.c.bf16 %v150, %v141
  %v223 = vpack.c.bf16 %v151, %v142
  %v224 = vpack.c.bf16 %v152, %v143
  %v225 = vpack.c.bf16 %v153, %v144
  %v226 = vpack.c.bf16 %v154, %v145
  %v227 = vpack.c.bf16 %v155, %v146
  %v228 = vpack.c.bf16 %v156, %v147
  %v229 = vpack.c.bf16 %v157, %v148
  %v230 = vpack.c.bf16 %v158, %v149
  %v231 = vld [vmem:[%s1] sm:$0xff]
  %v232 = vld [vmem:[%s1 + $0x8] sm:$0xff]
  %v233 = vld [vmem:[%s1 + $0x10] sm:$0xff]
  %v234 = vld [vmem:[%s1 + $0x18] sm:$0xff]
  %v235 = vld [vmem:[%s1 + $0x20] sm:$0xff]
  %v236 = vld [vmem:[%s1 + $0x28] sm:$0xff]
  %v237 = vld [vmem:[%s1 + $0x30] sm:$0xff]
  %v238 = vld [vmem:[%s1 + $0x38] sm:$0xff]
  %v239 = vld [vmem:[%s1 + $0x40] sm:$0xff]
  %v240 = vld [vmem:[%s1 + $0x48] sm:$0xff]
  %v241 = vld [vmem:[%s1 + $0x50] sm:$0xff]
  %v242 = vld [vmem:[%s1 + $0x58] sm:$0xff]
  %v243 = vld [vmem:[%s1 + $0x60] sm:$0xff]
  %v244 = vld [vmem:[%s1 + $0x68] sm:$0xff]
  %v245 = vld [vmem:[%s1 + $0x70] sm:$0xff]
  %v246 = vld [vmem:[%s1 + $0x78] sm:$0xff]
  %v247 = vld [vmem:[%s1 + $0x80] sm:$0xff]
  %v248 = vld [vmem:[%s1 + $0x88] sm:$0xff]
  %v249 = vld [vmem:[%s1 + $0x90] sm:$0xff]
  %v250 = vld [vmem:[%s1 + $0x98] sm:$0xff]
  %v251 = vld [vmem:[%s1 + $0xa0] sm:$0xff]
  %v252 = vld [vmem:[%s1 + $0xa8] sm:$0xff]
  %v253 = vld [vmem:[%s1 + $0xb0] sm:$0xff]
  %v254 = vld [vmem:[%s1 + $0xb8] sm:$0xff]
  %v255 = vld [vmem:[%s1 + $0xc0] sm:$0xff]
  %v256 = vld [vmem:[%s1 + $0xc8] sm:$0xff]
  %v257 = vld [vmem:[%s1 + $0xd0] sm:$0xff]
  %v258 = vld [vmem:[%s1 + $0xd8] sm:$0xff]
  %v259 = vld [vmem:[%s1 + $0xe0] sm:$0xff]
  %v260 = vld [vmem:[%s1 + $0xe8] sm:$0xff]
  %v261 = vld [vmem:[%s1 + $0xf0] sm:$0xff]
  %v262 = vld [vmem:[%s1 + $0xf8] sm:$0xff]
  %v263 = vld [vmem:[%s1 + $0x100] sm:$0xff]
  %v264 = vld [vmem:[%s1 + $0x108] sm:$0xff]
  %v265 = vld [vmem:[%s1 + $0x110] sm:$0xff]
  %v266 = vld [vmem:[%s1 + $0x118] sm:$0xff]
  %v267 = vld [vmem:[%s1 + $0x120] sm:$0xff]
  %v268 = vld [vmem:[%s1 + $0x128] sm:$0xff]
  %v269 = vld [vmem:[%s1 + $0x130] sm:$0xff]
  %v270 = vld [vmem:[%s1 + $0x138] sm:$0xff]
  %v271 = vld [vmem:[%s1 + $0x140] sm:$0xff]
  %v272 = vld [vmem:[%s1 + $0x148] sm:$0xff]
  %v273 = vld [vmem:[%s1 + $0x150] sm:$0xff]
  %v274 = vld [vmem:[%s1 + $0x158] sm:$0xff]
  %v275 = vld [vmem:[%s1 + $0x160] sm:$0xff]
  %v276 = vld [vmem:[%s1 + $0x168] sm:$0xff]
  %v277 = vld [vmem:[%s1 + $0x170] sm:$0xff]
  %v278 = vld [vmem:[%s1 + $0x178] sm:$0xff]
  %v279 = vld [vmem:[%s1 + $0x180] sm:$0xff]
  %v280 = vld [vmem:[%s1 + $0x188] sm:$0xff]
  %v281 = vld [vmem:[%s1 + $0x190] sm:$0xff]
  %v282 = vld [vmem:[%s1 + $0x198] sm:$0xff]
  %v283 = vld [vmem:[%s1 + $0x1a0] sm:$0xff]
  %v284 = vld [vmem:[%s1 + $0x1a8] sm:$0xff]
  %v285 = vld [vmem:[%s1 + $0x1b0] sm:$0xff]
  %v286 = vld [vmem:[%s1 + $0x1b8] sm:$0xff]
  %v287 = vld [vmem:[%s1 + $0x1c0] sm:$0xff]
  %v288 = vld [vmem:[%s1 + $0x1c8] sm:$0xff]
  %v289 = vld [vmem:[%s1 + $0x1d0] sm:$0xff]
  %v290 = vld [vmem:[%s1 + $0x1d8] sm:$0xff]
  %v291 = vld [vmem:[%s1 + $0x1e0] sm:$0xff]
  %v292 = vld [vmem:[%s1 + $0x1e8] sm:$0xff]
  %v293 = vld [vmem:[%s1 + $0x1f0] sm:$0xff]
  %v294 = vld [vmem:[%s1 + $0x1f8] sm:$0xff]
  %v295 = vld [vmem:[%s1 + $0x200] sm:$0xff]
  %v296 = vld [vmem:[%s1 + $0x208] sm:$0xff]
  %v297 = vld [vmem:[%s1 + $0x210] sm:$0xff]
  %v298 = vld [vmem:[%s1 + $0x218] sm:$0xff]
  %v299 = vld [vmem:[%s1 + $0x220] sm:$0xff]
  %v300 = vld [vmem:[%s1 + $0x228] sm:$0xff]
  %v301 = vld [vmem:[%s1 + $0x230] sm:$0xff]
  %v302 = vld [vmem:[%s1 + $0x238] sm:$0xff]
  %v303 = vld [vmem:[%s1 + $0x240] sm:$0xff]
  %v304 = vld [vmem:[%s1 + $0x248] sm:$0xff]
  %v305 = vld [vmem:[%s1 + $0x250] sm:$0xff]
  %v306 = vld [vmem:[%s1 + $0x258] sm:$0xff]
  %v307 = vld [vmem:[%s1 + $0x260] sm:$0xff]
  %v308 = vld [vmem:[%s1 + $0x268] sm:$0xff]
  %v309 = vld [vmem:[%s1 + $0x270] sm:$0xff]
  %v310 = vld [vmem:[%s1 + $0x278] sm:$0xff]
  %v311 = vld [vmem:[%s1 + $0x280] sm:$0xff]
  %v312 = vld [vmem:[%s1 + $0x288] sm:$0xff]
  %v313 = vld [vmem:[%s1 + $0x290] sm:$0xff]
  %v314 = vld [vmem:[%s1 + $0x298] sm:$0xff]
  %v315 = vld [vmem:[%s1 + $0x2a0] sm:$0xff]
  %v316 = vld [vmem:[%s1 + $0x2a8] sm:$0xff]
  %v317 = vld [vmem:[%s1 + $0x2b0] sm:$0xff]
  %v318 = vld [vmem:[%s1 + $0x2b8] sm:$0xff]
  %v319 = vld [vmem:[%s1 + $0x2c0] sm:$0xff]
  %v320 = vld [vmem:[%s1 + $0x2c8] sm:$0xff]
  %v321 = vld [vmem:[%s1 + $0x2d0] sm:$0xff]
  %v322 = vld [vmem:[%s1 + $0x2d8] sm:$0xff]
  %v323 = vld [vmem:[%s1 + $0x2e0] sm:$0xff]
  %v324 = vld [vmem:[%s1 + $0x2e8] sm:$0xff]
  %v325 = vld [vmem:[%s1 + $0x2f0] sm:$0xff]
  %v326 = vld [vmem:[%s1 + $0x2f8] sm:$0xff]
  %v327 = vld [vmem:[%s1 + $0x300] sm:$0xff]
  %v328 = vld [vmem:[%s1 + $0x308] sm:$0xff]
  %v329 = vld [vmem:[%s1 + $0x310] sm:$0xff]
  %v330 = vld [vmem:[%s1 + $0x318] sm:$0xff]
  %v331 = vld [vmem:[%s1 + $0x320] sm:$0xff]
  %v332 = vld [vmem:[%s1 + $0x328] sm:$0xff]
  %v333 = vld [vmem:[%s1 + $0x330] sm:$0xff]
  %v334 = vld [vmem:[%s1 + $0x338] sm:$0xff]
  %v335 = vld [vmem:[%s1 + $0x340] sm:$0xff]
  %v336 = vld [vmem:[%s1 + $0x348] sm:$0xff]
  %v337 = vld [vmem:[%s1 + $0x350] sm:$0xff]
  %v338 = vld [vmem:[%s1 + $0x358] sm:$0xff]
  %v339 = vld [vmem:[%s1 + $0x360] sm:$0xff]
  %v340 = vld [vmem:[%s1 + $0x368] sm:$0xff]
  %v341 = vld [vmem:[%s1 + $0x370] sm:$0xff]
  %v342 = vld [vmem:[%s1 + $0x378] sm:$0xff]
  %v343 = vld [vmem:[%s1 + $0x380] sm:$0xff]
  %v344 = vld [vmem:[%s1 + $0x388] sm:$0xff]
  %v345 = vld [vmem:[%s1 + $0x390] sm:$0xff]
  %v346 = vld [vmem:[%s1 + $0x398] sm:$0xff]
  %v347 = vld [vmem:[%s1 + $0x3a0] sm:$0xff]
  %v348 = vld [vmem:[%s1 + $0x3a8] sm:$0xff]
  %v349 = vld [vmem:[%s1 + $0x3b0] sm:$0xff]
  %v350 = vld [vmem:[%s1 + $0x3b8] sm:$0xff]
  %v351 = vld [vmem:[%s1 + $0x3c0] sm:$0xff]
  %v352 = vld [vmem:[%s1 + $0x3c8] sm:$0xff]
  %v353 = vld [vmem:[%s1 + $0x3d0] sm:$0xff]
  %v354 = vld [vmem:[%s1 + $0x3d8] sm:$0xff]
  %v355 = vld [vmem:[%s1 + $0x3e0] sm:$0xff]
  %v356 = vld [vmem:[%s1 + $0x3e8] sm:$0xff]
  %v357 = vld [vmem:[%s1 + $0x3f0] sm:$0xff]
  %v358 = vld [vmem:[%s1 + $0x3f8] sm:$0xff]
  %v359 = vld [vmem:[%s1 + $0x400] sm:$0xff]
  %v360 = vld [vmem:[%s1 + $0x408] sm:$0xff]
  %v361 = vld [vmem:[%s1 + $0x410] sm:$0xff]
  %v362 = vld [vmem:[%s1 + $0x418] sm:$0xff]
  %v363 = vld [vmem:[%s1 + $0x420] sm:$0xff]
  %v364 = vld [vmem:[%s1 + $0x428] sm:$0xff]
  %v365 = vld [vmem:[%s1 + $0x430] sm:$0xff]
  %v366 = vld [vmem:[%s1 + $0x438] sm:$0xff]
  %v367 = vld [vmem:[%s1 + $0x440] sm:$0xff]
  %v368 = vld [vmem:[%s1 + $0x448] sm:$0xff]
  %v369 = vld [vmem:[%s1 + $0x450] sm:$0xff]
  %v370 = vld [vmem:[%s1 + $0x458] sm:$0xff]
  %v371 = vld [vmem:[%s1 + $0x460] sm:$0xff]
  %v372 = vld [vmem:[%s1 + $0x468] sm:$0xff]
  %v373 = vld [vmem:[%s1 + $0x470] sm:$0xff]
  %v374 = vld [vmem:[%s1 + $0x478] sm:$0xff]
  %v375 = vpack.c.bf16 %v232, %v231
  %v376 = vpack.c.bf16 %v234, %v233
  %v377 = vpack.c.bf16 %v236, %v235
  %v378 = vpack.c.bf16 %v238, %v237
  %v379 = vpack.c.bf16 %v240, %v239
  %v380 = vpack.c.bf16 %v242, %v241
  %v381 = vpack.c.bf16 %v244, %v243
  %v382 = vpack.c.bf16 %v246, %v245
  %v383 = vpack.c.bf16 %v248, %v247
  %v384 = vpack.c.bf16 %v250, %v249
  %v385 = vpack.c.bf16 %v252, %v251
  %v386 = vpack.c.bf16 %v254, %v253
  %v387 = vpack.c.bf16 %v256, %v255
  %v388 = vpack.c.bf16 %v258, %v257
  %v389 = vpack.c.bf16 %v260, %v259
  %v390 = vpack.c.bf16 %v262, %v261
  %v391 = vpack.c.bf16 %v264, %v263
  %v392 = vpack.c.bf16 %v266, %v265
  %v393 = vpack.c.bf16 %v268, %v267
  %v394 = vpack.c.bf16 %v270, %v269
  %v395 = vpack.c.bf16 %v272, %v271
  %v396 = vpack.c.bf16 %v274, %v273
  %v397 = vpack.c.bf16 %v276, %v275
  %v398 = vpack.c.bf16 %v278, %v277
  %v399 = vpack.c.bf16 %v280, %v279
  %v400 = vpack.c.bf16 %v282, %v281
  %v401 = vpack.c.bf16 %v284, %v283
  %v402 = vpack.c.bf16 %v286, %v285
  %v403 = vpack.c.bf16 %v288, %v287
  %v404 = vpack.c.bf16 %v290, %v289
  %v405 = vpack.c.bf16 %v292, %v291
  %v406 = vpack.c.bf16 %v294, %v293
  %v407 = vpack.c.bf16 %v296, %v295
  %v408 = vpack.c.bf16 %v298, %v297
  %v409 = vpack.c.bf16 %v300, %v299
  %v410 = vpack.c.bf16 %v302, %v301
  %v411 = vpack.c.bf16 %v304, %v303
  %v412 = vpack.c.bf16 %v306, %v305
  %v413 = vpack.c.bf16 %v308, %v307
  %v414 = vpack.c.bf16 %v310, %v309
  %v415 = vpack.c.bf16 %v312, %v311
  %v416 = vpack.c.bf16 %v314, %v313
  %v417 = vpack.c.bf16 %v316, %v315
  %v418 = vpack.c.bf16 %v318, %v317
  %v419 = vpack.c.bf16 %v320, %v319
  %v420 = vpack.c.bf16 %v322, %v321
  %v421 = vpack.c.bf16 %v324, %v323
  %v422 = vpack.c.bf16 %v326, %v325
  %v423 = vpack.c.bf16 %v328, %v327
  %v424 = vpack.c.bf16 %v330, %v329
  %v425 = vpack.c.bf16 %v332, %v331
  %v426 = vpack.c.bf16 %v334, %v333
  %v427 = vpack.c.bf16 %v336, %v335
  %v428 = vpack.c.bf16 %v338, %v337
  %v429 = vpack.c.bf16 %v340, %v339
  %v430 = vpack.c.bf16 %v342, %v341
  %v431 = vpack.c.bf16 %v344, %v343
  %v432 = vpack.c.bf16 %v346, %v345
  %v433 = vpack.c.bf16 %v348, %v347
  %v434 = vpack.c.bf16 %v350, %v349
  %v435 = vpack.c.bf16 %v352, %v351
  %v436 = vpack.c.bf16 %v354, %v353
  %v437 = vpack.c.bf16 %v356, %v355
  %v438 = vpack.c.bf16 %v358, %v357
  %v439 = vpack.c.bf16 %v360, %v359
  %v440 = vpack.c.bf16 %v362, %v361
  %v441 = vpack.c.bf16 %v364, %v363
  %v442 = vpack.c.bf16 %v366, %v365
  %v443 = vpack.c.bf16 %v368, %v367
  %v444 = vpack.c.bf16 %v370, %v369
  %v445 = vpack.c.bf16 %v372, %v371
  %v446 = vpack.c.bf16 %v374, %v373
  %447 = vmatprep.subr.bf16.mxu0 0
  %448 = vmatpush1.bf16.msra.mxu0 %v382
  %449 = vmatprep.subr.bf16.mxu0 0
  %450 = vmatpush1.bf16.msra.mxu0 %v381
  %451 = vmatprep.subr.bf16.mxu0 0
  %452 = vmatpush1.bf16.msra.mxu0 %v380
  %453 = vmatprep.subr.bf16.mxu0 0
  %454 = vmatpush1.bf16.msra.mxu0 %v379
  %455 = vmatprep.subr.bf16.mxu0 0
  %456 = vmatpush1.bf16.msra.mxu0 %v378
  %457 = vmatprep.subr.bf16.mxu0 0
  %458 = vmatpush1.bf16.msra.mxu0 %v377
  %459 = vmatprep.subr.bf16.mxu0 0
  %460 = vmatpush1.bf16.msra.mxu0 %v376
  %461 = vmatprep.subr.bf16.mxu0 0
  %462 = vmatpush1.bf16.msra.mxu0 %v375
  %463 = vmatprep.subr.bf16.mxu0 0
  %464 = vmatpush2.bf16.msra.mxu0 %v390
  %465 = vmatprep.subr.bf16.mxu0 0
  %466 = vmatpush2.bf16.msra.mxu0 %v389
  %467 = vmatprep.subr.bf16.mxu0 0
  %468 = vmatpush2.bf16.msra.mxu0 %v388
  %469 = vmatprep.subr.bf16.mxu0 0
  %470 = vmatpush2.bf16.msra.mxu0 %v387
  %471 = vmatprep.subr.bf16.mxu0 0
  %472 = vmatpush2.bf16.msra.mxu0 %v386
  %473 = vmatprep.subr.bf16.mxu0 0
  %474 = vmatpush2.bf16.msra.mxu0 %v385
  %475 = vmatprep.subr.bf16.mxu0 0
  %476 = vmatpush2.bf16.msra.mxu0 %v384
  %477 = vmatprep.subr.bf16.mxu0 0
  %478 = vmatpush2.bf16.msra.mxu0 %v383
  %479 = vmatprep.mubr.bf16.mxu0 %v160
  %480 = vmatmul.mubr.bf16.gmra.mxu0 %v159
  %v481 = vpop.f32.mrf.mxu0
  %v482 = vadd.f32 0.0, %v481
  %v483 = vpop.f32.mrf.mxu0
  %v484 = vpop.f32.mrf.mxu0
  %v485 = vadd.f32 0.0, %v484
  %v486 = vpop.f32.mrf.mxu0
  %487 = vmatprep.mubr.bf16.mxu0 %v169
  %488 = vmatmul.mubr.bf16.gmra.mxu0 %v168
  %v489 = vpop.f32.mrf.mxu0
  %v490 = vadd.f32 0.0, %v489
  %v491 = vpop.f32.mrf.mxu0
  %v492 = vpop.f32.mrf.mxu0
  %v493 = vadd.f32 0.0, %v492
  %v494 = vpop.f32.mrf.mxu0
  %495 = vmatprep.mubr.bf16.mxu0 %v178
  %496 = vmatmul.mubr.bf16.gmra.mxu0 %v177
  %v497 = vpop.f32.mrf.mxu0
  %v498 = vadd.f32 0.0, %v497
  %v499 = vpop.f32.mrf.mxu0
  %v500 = vpop.f32.mrf.mxu0
  %v501 = vadd.f32 0.0, %v500
  %v502 = vpop.f32.mrf.mxu0
  %503 = vmatprep.mubr.bf16.mxu0 %v187
  %504 = vmatmul.mubr.bf16.gmra.mxu0 %v186
  %v505 = vpop.f32.mrf.mxu0
  %v506 = vadd.f32 0.0, %v505
  %v507 = vpop.f32.mrf.mxu0
  %v508 = vpop.f32.mrf.mxu0
  %v509 = vadd.f32 0.0, %v508
  %v510 = vpop.f32.mrf.mxu0
  %511 = vmatprep.mubr.bf16.mxu0 %v196
  %512 = vmatmul.mubr.bf16.gmra.mxu0 %v195
  %v513 = vpop.f32.mrf.mxu0
  %v514 = vadd.f32 0.0, %v513
  %v515 = vpop.f32.mrf.mxu0
  %v516 = vpop.f32.mrf.mxu0
  %v517 = vadd.f32 0.0, %v516
  %v518 = vpop.f32.mrf.mxu0
  %519 = vmatprep.mubr.bf16.mxu0 %v205
  %520 = vmatmul.mubr.bf16.gmra.mxu0 %v204
  %v521 = vpop.f32.mrf.mxu0
  %v522 = vadd.f32 0.0, %v521
  %v523 = vpop.f32.mrf.mxu0
  %v524 = vpop.f32.mrf.mxu0
  %v525 = vadd.f32 0.0, %v524
  %v526 = vpop.f32.mrf.mxu0
  %527 = vmatprep.mubr.bf16.mxu0 %v214
  %528 = vmatmul.mubr.bf16.gmra.mxu0 %v213
  %v529 = vpop.f32.mrf.mxu0
  %v530 = vadd.f32 0.0, %v529
  %v531 = vpop.f32.mrf.mxu0
  %v532 = vpop.f32.mrf.mxu0
  %v533 = vadd.f32 0.0, %v532
  %v534 = vpop.f32.mrf.mxu0
  %535 = vmatprep.mubr.bf16.mxu0 %v223
  %536 = vmatmul.mubr.bf16.gmra.mxu0 %v222
  %v537 = vpop.f32.mrf.mxu0
  %v538 = vadd.f32 0.0, %v537
  %v539 = vpop.f32.mrf.mxu0
  %v540 = vpop.f32.mrf.mxu0
  %v541 = vadd.f32 0.0, %v540
  %v542 = vpop.f32.mrf.mxu0
  %543 = vdwg.mxu0
  %544 = vmatprep.subr.bf16.mxu0 0
  %545 = vmatpush1.bf16.msra.mxu0 %v398
  %546 = vmatprep.subr.bf16.mxu0 0
  %547 = vmatpush1.bf16.msra.mxu0 %v397
  %548 = vmatprep.subr.bf16.mxu0 0
  %549 = vmatpush1.bf16.msra.mxu0 %v396
  %550 = vmatprep.subr.bf16.mxu0 0
  %551 = vmatpush1.bf16.msra.mxu0 %v395
  %552 = vmatprep.subr.bf16.mxu0 0
  %553 = vmatpush1.bf16.msra.mxu0 %v394
  %554 = vmatprep.subr.bf16.mxu0 0
  %555 = vmatpush1.bf16.msra.mxu0 %v393
  %556 = vmatprep.subr.bf16.mxu0 0
  %557 = vmatpush1.bf16.msra.mxu0 %v392
  %558 = vmatprep.subr.bf16.mxu0 0
  %559 = vmatpush1.bf16.msra.mxu0 %v391
  %560 = vmatprep.subr.bf16.mxu0 0
  %561 = vmatpush2.bf16.msra.mxu0 %v406
  %562 = vmatprep.subr.bf16.mxu0 0
  %563 = vmatpush2.bf16.msra.mxu0 %v405
  %564 = vmatprep.subr.bf16.mxu0 0
  %565 = vmatpush2.bf16.msra.mxu0 %v404
  %566 = vmatprep.subr.bf16.mxu0 0
  %567 = vmatpush2.bf16.msra.mxu0 %v403
  %568 = vmatprep.subr.bf16.mxu0 0
  %569 = vmatpush2.bf16.msra.mxu0 %v402
  %570 = vmatprep.subr.bf16.mxu0 0
  %571 = vmatpush2.bf16.msra.mxu0 %v401
  %572 = vmatprep.subr.bf16.mxu0 0
  %573 = vmatpush2.bf16.msra.mxu0 %v400
  %574 = vmatprep.subr.bf16.mxu0 0
  %575 = vmatpush2.bf16.msra.mxu0 %v399
  %576 = vmatprep.mubr.bf16.mxu0 %v162
  %577 = vmatmul.mubr.bf16.gmra.mxu0 %v161
  %v578 = vpop.f32.mrf.mxu0
  %v579 = vadd.f32 %v482, %v578
  %v580 = vpop.f32.mrf.mxu0
  %v581 = vpop.f32.mrf.mxu0
  %v582 = vadd.f32 %v485, %v581
  %v583 = vpop.f32.mrf.mxu0
  %584 = vmatprep.mubr.bf16.mxu0 %v171
  %585 = vmatmul.mubr.bf16.gmra.mxu0 %v170
  %v586 = vpop.f32.mrf.mxu0
  %v587 = vadd.f32 %v490, %v586
  %v588 = vpop.f32.mrf.mxu0
  %v589 = vpop.f32.mrf.mxu0
  %v590 = vadd.f32 %v493, %v589
  %v591 = vpop.f32.mrf.mxu0
  %592 = vmatprep.mubr.bf16.mxu0 %v180
  %593 = vmatmul.mubr.bf16.gmra.mxu0 %v179
  %v594 = vpop.f32.mrf.mxu0
  %v595 = vadd.f32 %v498, %v594
  %v596 = vpop.f32.mrf.mxu0
  %v597 = vpop.f32.mrf.mxu0
  %v598 = vadd.f32 %v501, %v597
  %v599 = vpop.f32.mrf.mxu0
  %600 = vmatprep.mubr.bf16.mxu0 %v189
  %601 = vmatmul.mubr.bf16.gmra.mxu0 %v188
  %v602 = vpop.f32.mrf.mxu0
  %v603 = vadd.f32 %v506, %v602
  %v604 = vpop.f32.mrf.mxu0
  %v605 = vpop.f32.mrf.mxu0
  %v606 = vadd.f32 %v509, %v605
  %v607 = vpop.f32.mrf.mxu0
  %608 = vmatprep.mubr.bf16.mxu0 %v198
  %609 = vmatmul.mubr.bf16.gmra.mxu0 %v197
  %v610 = vpop.f32.mrf.mxu0
  %v611 = vadd.f32 %v514, %v610
  %v612 = vpop.f32.mrf.mxu0
  %v613 = vpop.f32.mrf.mxu0
  %v614 = vadd.f32 %v517, %v613
  %v615 = vpop.f32.mrf.mxu0
  %616 = vmatprep.mubr.bf16.mxu0 %v207
  %617 = vmatmul.mubr.bf16.gmra.mxu0 %v206
  %v618 = vpop.f32.mrf.mxu0
  %v619 = vadd.f32 %v522, %v618
  %v620 = vpop.f32.mrf.mxu0
  %v621 = vpop.f32.mrf.mxu0
  %v622 = vadd.f32 %v525, %v621
  %v623 = vpop.f32.mrf.mxu0
  %624 = vmatprep.mubr.bf16.mxu0 %v216
  %625 = vmatmul.mubr.bf16.gmra.mxu0 %v215
  %v626 = vpop.f32.mrf.mxu0
  %v627 = vadd.f32 %v530, %v626
  %v628 = vpop.f32.mrf.mxu0
  %v629 = vpop.f32.mrf.mxu0
  %v630 = vadd.f32 %v533, %v629
  %v631 = vpop.f32.mrf.mxu0
  %632 = vmatprep.mubr.bf16.mxu0 %v225
  %633 = vmatmul.mubr.bf16.gmra.mxu0 %v224
  %v634 = vpop.f32.mrf.mxu0
  %v635 = vadd.f32 %v538, %v634
  %v636 = vpop.f32.mrf.mxu0
  %v637 = vpop.f32.mrf.mxu0
  %v638 = vadd.f32 %v541, %v637
  %v639 = vpop.f32.mrf.mxu0
  %640 = vdwg.mxu0
  %641 = vmatprep.subr.bf16.mxu0 0
  %642 = vmatpush1.bf16.msra.mxu0 %v414
  %643 = vmatprep.subr.bf16.mxu0 0
  %644 = vmatpush1.bf16.msra.mxu0 %v413
  %645 = vmatprep.subr.bf16.mxu0 0
  %646 = vmatpush1.bf16.msra.mxu0 %v412
  %647 = vmatprep.subr.bf16.mxu0 0
  %648 = vmatpush1.bf16.msra.mxu0 %v411
  %649 = vmatprep.subr.bf16.mxu0 0
  %650 = vmatpush1.bf16.msra.mxu0 %v410
  %651 = vmatprep.subr.bf16.mxu0 0
  %652 = vmatpush1.bf16.msra.mxu0 %v409
  %653 = vmatprep.subr.bf16.mxu0 0
  %654 = vmatpush1.bf16.msra.mxu0 %v408
  %655 = vmatprep.subr.bf16.mxu0 0
  %656 = vmatpush1.bf16.msra.mxu0 %v407
  %657 = vmatprep.subr.bf16.mxu0 0
  %658 = vmatpush2.bf16.msra.mxu0 %v422
  %659 = vmatprep.subr.bf16.mxu0 0
  %660 = vmatpush2.bf16.msra.mxu0 %v421
  %661 = vmatprep.subr.bf16.mxu0 0
  %662 = vmatpush2.bf16.msra.mxu0 %v420
  %663 = vmatprep.subr.bf16.mxu0 0
  %664 = vmatpush2.bf16.msra.mxu0 %v419
  %665 = vmatprep.subr.bf16.mxu0 0
  %666 = vmatpush2.bf16.msra.mxu0 %v418
  %667 = vmatprep.subr.bf16.mxu0 0
  %668 = vmatpush2.bf16.msra.mxu0 %v417
  %669 = vmatprep.subr.bf16.mxu0 0
  %670 = vmatpush2.bf16.msra.mxu0 %v416
  %671 = vmatprep.subr.bf16.mxu0 0
  %672 = vmatpush2.bf16.msra.mxu0 %v415
  %673 = vmatprep.mubr.bf16.mxu0 %v164
  %674 = vmatmul.mubr.bf16.gmra.mxu0 %v163
  %v675 = vpop.f32.mrf.mxu0
  %v676 = vadd.f32 %v579, %v675
  %v677 = vpop.f32.mrf.mxu0
  %v678 = vpop.f32.mrf.mxu0
  %v679 = vadd.f32 %v582, %v678
  %v680 = vpop.f32.mrf.mxu0
  %681 = vmatprep.mubr.bf16.mxu0 %v173
  %682 = vmatmul.mubr.bf16.gmra.mxu0 %v172
  %v683 = vpop.f32.mrf.mxu0
  %v684 = vadd.f32 %v587, %v683
  %v685 = vpop.f32.mrf.mxu0
  %v686 = vpop.f32.mrf.mxu0
  %v687 = vadd.f32 %v590, %v686
  %v688 = vpop.f32.mrf.mxu0
  %689 = vmatprep.mubr.bf16.mxu0 %v182
  %690 = vmatmul.mubr.bf16.gmra.mxu0 %v181
  %v691 = vpop.f32.mrf.mxu0
  %v692 = vadd.f32 %v595, %v691
  %v693 = vpop.f32.mrf.mxu0
  %v694 = vpop.f32.mrf.mxu0
  %v695 = vadd.f32 %v598, %v694
  %v696 = vpop.f32.mrf.mxu0
  %697 = vmatprep.mubr.bf16.mxu0 %v191
  %698 = vmatmul.mubr.bf16.gmra.mxu0 %v190
  %v699 = vpop.f32.mrf.mxu0
  %v700 = vadd.f32 %v603, %v699
  %v701 = vpop.f32.mrf.mxu0
  %v702 = vpop.f32.mrf.mxu0
  %v703 = vadd.f32 %v606, %v702
  %v704 = vpop.f32.mrf.mxu0
  %705 = vmatprep.mubr.bf16.mxu0 %v200
  %706 = vmatmul.mubr.bf16.gmra.mxu0 %v199
  %v707 = vpop.f32.mrf.mxu0
  %v708 = vadd.f32 %v611, %v707
  %v709 = vpop.f32.mrf.mxu0
  %v710 = vpop.f32.mrf.mxu0
  %v711 = vadd.f32 %v614, %v710
  %v712 = vpop.f32.mrf.mxu0
  %713 = vmatprep.mubr.bf16.mxu0 %v209
  %714 = vmatmul.mubr.bf16.gmra.mxu0 %v208
  %v715 = vpop.f32.mrf.mxu0
  %v716 = vadd.f32 %v619, %v715
  %v717 = vpop.f32.mrf.mxu0
  %v718 = vpop.f32.mrf.mxu0
  %v719 = vadd.f32 %v622, %v718
  %v720 = vpop.f32.mrf.mxu0
  %721 = vmatprep.mubr.bf16.mxu0 %v218
  %722 = vmatmul.mubr.bf16.gmra.mxu0 %v217
  %v723 = vpop.f32.mrf.mxu0
  %v724 = vadd.f32 %v627, %v723
  %v725 = vpop.f32.mrf.mxu0
  %v726 = vpop.f32.mrf.mxu0
  %v727 = vadd.f32 %v630, %v726
  %v728 = vpop.f32.mrf.mxu0
  %729 = vmatprep.mubr.bf16.mxu0 %v227
  %730 = vmatmul.mubr.bf16.gmra.mxu0 %v226
  %v731 = vpop.f32.mrf.mxu0
  %v732 = vadd.f32 %v635, %v731
  %v733 = vpop.f32.mrf.mxu0
  %v734 = vpop.f32.mrf.mxu0
  %v735 = vadd.f32 %v638, %v734
  %v736 = vpop.f32.mrf.mxu0
  %737 = vdwg.mxu0
  %738 = vmatprep.subr.bf16.mxu0 0
  %739 = vmatpush1.bf16.msra.mxu0 %v430
  %740 = vmatprep.subr.bf16.mxu0 0
  %741 = vmatpush1.bf16.msra.mxu0 %v429
  %742 = vmatprep.subr.bf16.mxu0 0
  %743 = vmatpush1.bf16.msra.mxu0 %v428
  %744 = vmatprep.subr.bf16.mxu0 0
  %745 = vmatpush1.bf16.msra.mxu0 %v427
  %746 = vmatprep.subr.bf16.mxu0 0
  %747 = vmatpush1.bf16.msra.mxu0 %v426
  %748 = vmatprep.subr.bf16.mxu0 0
  %749 = vmatpush1.bf16.msra.mxu0 %v425
  %750 = vmatprep.subr.bf16.mxu0 0
  %751 = vmatpush1.bf16.msra.mxu0 %v424
  %752 = vmatprep.subr.bf16.mxu0 0
  %753 = vmatpush1.bf16.msra.mxu0 %v423
  %754 = vmatprep.subr.bf16.mxu0 0
  %755 = vmatpush2.bf16.msra.mxu0 %v438
  %756 = vmatprep.subr.bf16.mxu0 0
  %757 = vmatpush2.bf16.msra.mxu0 %v437
  %758 = vmatprep.subr.bf16.mxu0 0
  %759 = vmatpush2.bf16.msra.mxu0 %v436
  %760 = vmatprep.subr.bf16.mxu0 0
  %761 = vmatpush2.bf16.msra.mxu0 %v435
  %762 = vmatprep.subr.bf16.mxu0 0
  %763 = vmatpush2.bf16.msra.mxu0 %v434
  %764 = vmatprep.subr.bf16.mxu0 0
  %765 = vmatpush2.bf16.msra.mxu0 %v433
  %766 = vmatprep.subr.bf16.mxu0 0
  %767 = vmatpush2.bf16.msra.mxu0 %v432
  %768 = vmatprep.subr.bf16.mxu0 0
  %769 = vmatpush2.bf16.msra.mxu0 %v431
  %770 = vmatprep.mubr.bf16.mxu0 %v166
  %771 = vmatmul.mubr.bf16.gmra.mxu0 %v165
  %v772 = vpop.f32.mrf.mxu0
  %v773 = vadd.f32 %v676, %v772
  %v774 = vpop.f32.mrf.mxu0
  %v775 = vpop.f32.mrf.mxu0
  %v776 = vadd.f32 %v679, %v775
  %v777 = vpop.f32.mrf.mxu0
  %778 = vmatprep.mubr.bf16.mxu0 %v175
  %779 = vmatmul.mubr.bf16.gmra.mxu0 %v174
  %v780 = vpop.f32.mrf.mxu0
  %v781 = vadd.f32 %v684, %v780
  %v782 = vpop.f32.mrf.mxu0
  %v783 = vpop.f32.mrf.mxu0
  %v784 = vadd.f32 %v687, %v783
  %v785 = vpop.f32.mrf.mxu0
  %786 = vmatprep.mubr.bf16.mxu0 %v184
  %787 = vmatmul.mubr.bf16.gmra.mxu0 %v183
  %v788 = vpop.f32.mrf.mxu0
  %v789 = vadd.f32 %v692, %v788
  %v790 = vpop.f32.mrf.mxu0
  %v791 = vpop.f32.mrf.mxu0
  %v792 = vadd.f32 %v695, %v791
  %v793 = vpop.f32.mrf.mxu0
  %794 = vmatprep.mubr.bf16.mxu0 %v193
  %795 = vmatmul.mubr.bf16.gmra.mxu0 %v192
  %v796 = vpop.f32.mrf.mxu0
  %v797 = vadd.f32 %v700, %v796
  %v798 = vpop.f32.mrf.mxu0
  %v799 = vpop.f32.mrf.mxu0
  %v800 = vadd.f32 %v703, %v799
  %v801 = vpop.f32.mrf.mxu0
  %802 = vmatprep.mubr.bf16.mxu0 %v202
  %803 = vmatmul.mubr.bf16.gmra.mxu0 %v201
  %v804 = vpop.f32.mrf.mxu0
  %v805 = vadd.f32 %v708, %v804
  %v806 = vpop.f32.mrf.mxu0
  %v807 = vpop.f32.mrf.mxu0
  %v808 = vadd.f32 %v711, %v807
  %v809 = vpop.f32.mrf.mxu0
  %810 = vmatprep.mubr.bf16.mxu0 %v211
  %811 = vmatmul.mubr.bf16.gmra.mxu0 %v210
  %v812 = vpop.f32.mrf.mxu0
  %v813 = vadd.f32 %v716, %v812
  %v814 = vpop.f32.mrf.mxu0
  %v815 = vpop.f32.mrf.mxu0
  %v816 = vadd.f32 %v719, %v815
  %v817 = vpop.f32.mrf.mxu0
  %818 = vmatprep.mubr.bf16.mxu0 %v220
  %819 = vmatmul.mubr.bf16.gmra.mxu0 %v219
  %v820 = vpop.f32.mrf.mxu0
  %v821 = vadd.f32 %v724, %v820
  %v822 = vpop.f32.mrf.mxu0
  %v823 = vpop.f32.mrf.mxu0
  %v824 = vadd.f32 %v727, %v823
  %v825 = vpop.f32.mrf.mxu0
  %826 = vmatprep.mubr.bf16.mxu0 %v229
  %827 = vmatmul.mubr.bf16.gmra.mxu0 %v228
  %v828 = vpop.f32.mrf.mxu0
  %v829 = vadd.f32 %v732, %v828
  %v830 = vpop.f32.mrf.mxu0
  %v831 = vpop.f32.mrf.mxu0
  %v832 = vadd.f32 %v735, %v831
  %v833 = vpop.f32.mrf.mxu0
  %834 = vdwg.mxu0
  %835 = vmatprep.subr.bf16.mxu0 0
  %836 = vmatpush1.bf16.msra.mxu0 %v446
  %837 = vmatprep.subr.bf16.mxu0 0
  %838 = vmatpush1.bf16.msra.mxu0 %v445
  %839 = vmatprep.subr.bf16.mxu0 0
  %840 = vmatpush1.bf16.msra.mxu0 %v444
  %841 = vmatprep.subr.bf16.mxu0 0
  %842 = vmatpush1.bf16.msra.mxu0 %v443
  %843 = vmatprep.subr.bf16.mxu0 0
  %844 = vmatpush1.bf16.msra.mxu0 %v442
  %845 = vmatprep.subr.bf16.mxu0 0
  %846 = vmatpush1.bf16.msra.mxu0 %v441
  %847 = vmatprep.subr.bf16.mxu0 0
  %848 = vmatpush1.bf16.msra.mxu0 %v440
  %849 = vmatprep.subr.bf16.mxu0 0
  %850 = vmatpush1.bf16.msra.mxu0 %v439
  %851 = vmatprep.subr.bf16.mxu0 0
  %852 = vmatpush2.bf16.msra.mxu0 0
  %853 = vmatprep.subr.bf16.mxu0 0
  %854 = vmatpush2.bf16.msra.mxu0 0
  %855 = vmatprep.subr.bf16.mxu0 0
  %856 = vmatpush2.bf16.msra.mxu0 0
  %857 = vmatprep.subr.bf16.mxu0 0
  %858 = vmatpush2.bf16.msra.mxu0 0
  %859 = vmatprep.subr.bf16.mxu0 0
  %860 = vmatpush2.bf16.msra.mxu0 0
  %861 = vmatprep.subr.bf16.mxu0 0
  %862 = vmatpush2.bf16.msra.mxu0 0
  %863 = vmatprep.subr.bf16.mxu0 0
  %864 = vmatpush2.bf16.msra.mxu0 0
  %865 = vmatprep.subr.bf16.mxu0 0
  %866 = vmatpush2.bf16.msra.mxu0 0
  %867 = vmatprep.mubr.bf16.mxu0 0
  %868 = vmatmul.mubr.bf16.gmra.mxu0 %v167
  %v869 = vpop.f32.mrf.mxu0
  %v870 = vadd.f32 %v773, %v869
  %v871 = vpop.f32.mrf.mxu0
  %v872 = vpop.f32.mrf.mxu0
  %v873 = vadd.f32 %v776, %v872
  %v874 = vpop.f32.mrf.mxu0
  %875 = vmatprep.mubr.bf16.mxu0 0
  %876 = vmatmul.mubr.bf16.gmra.mxu0 %v176
  %v877 = vpop.f32.mrf.mxu0
  %v878 = vadd.f32 %v781, %v877
  %v879 = vpop.f32.mrf.mxu0
  %v880 = vpop.f32.mrf.mxu0
  %v881 = vadd.f32 %v784, %v880
  %v882 = vpop.f32.mrf.mxu0
  %883 = vmatprep.mubr.bf16.mxu0 0
  %884 = vmatmul.mubr.bf16.gmra.mxu0 %v185
  %v885 = vpop.f32.mrf.mxu0
  %v886 = vadd.f32 %v789, %v885
  %v887 = vpop.f32.mrf.mxu0
  %v888 = vpop.f32.mrf.mxu0
  %v889 = vadd.f32 %v792, %v888
  %v890 = vpop.f32.mrf.mxu0
  %891 = vmatprep.mubr.bf16.mxu0 0
  %892 = vmatmul.mubr.bf16.gmra.mxu0 %v194
  %v893 = vpop.f32.mrf.mxu0
  %v894 = vadd.f32 %v797, %v893
  %v895 = vpop.f32.mrf.mxu0
  %v896 = vpop.f32.mrf.mxu0
  %v897 = vadd.f32 %v800, %v896
  %v898 = vpop.f32.mrf.mxu0
  %899 = vmatprep.mubr.bf16.mxu0 0
  %900 = vmatmul.mubr.bf16.gmra.mxu0 %v203
  %v901 = vpop.f32.mrf.mxu0
  %v902 = vadd.f32 %v805, %v901
  %v903 = vpop.f32.mrf.mxu0
  %v904 = vpop.f32.mrf.mxu0
  %v905 = vadd.f32 %v808, %v904
  %v906 = vpop.f32.mrf.mxu0
  %907 = vmatprep.mubr.bf16.mxu0 0
  %908 = vmatmul.mubr.bf16.gmra.mxu0 %v212
  %v909 = vpop.f32.mrf.mxu0
  %v910 = vadd.f32 %v813, %v909
  %v911 = vpop.f32.mrf.mxu0
  %v912 = vpop.f32.mrf.mxu0
  %v913 = vadd.f32 %v816, %v912
  %v914 = vpop.f32.mrf.mxu0
  %915 = vmatprep.mubr.bf16.mxu0 0
  %916 = vmatmul.mubr.bf16.gmra.mxu0 %v221
  %v917 = vpop.f32.mrf.mxu0
  %v918 = vadd.f32 %v821, %v917
  %v919 = vpop.f32.mrf.mxu0
  %v920 = vpop.f32.mrf.mxu0
  %v921 = vadd.f32 %v824, %v920
  %v922 = vpop.f32.mrf.mxu0
  %923 = vmatprep.mubr.bf16.mxu0 0
  %924 = vmatmul.mubr.bf16.gmra.mxu0 %v230
  %v925 = vpop.f32.mrf.mxu0
  %v926 = vadd.f32 %v829, %v925
  %v927 = vpop.f32.mrf.mxu0
  %v928 = vpop.f32.mrf.mxu0
  %v929 = vadd.f32 %v832, %v928
  %v930 = vpop.f32.mrf.mxu0
  %931 = vdwg.mxu0
  %932 = vst [vmem:[%s2] sm:$0xff] %v870
  %933 = vst [vmem:[%s2 + $0x8] sm:$0xff] %v873
  %934 = vst [vmem:[%s2 + $0x10] sm:$0xff] %v878
  %935 = vst [vmem:[%s2 + $0x18] sm:$0xff] %v881
  %936 = vst [vmem:[%s2 + $0x20] sm:$0xff] %v886
  %937 = vst [vmem:[%s2 + $0x28] sm:$0xff] %v889
  %938 = vst [vmem:[%s2 + $0x30] sm:$0xff] %v894
  %939 = vst [vmem:[%s2 + $0x38] sm:$0xff] %v897
  %940 = vst [vmem:[%s2 + $0x40] sm:$0xff] %v902
  %941 = vst [vmem:[%s2 + $0x48] sm:$0xff] %v905
  %942 = vst [vmem:[%s2 + $0x50] sm:$0xff] %v910
  %943 = vst [vmem:[%s2 + $0x58] sm:$0xff] %v913
  %944 = vst [vmem:[%s2 + $0x60] sm:$0xff] %v918
  %945 = vst [vmem:[%s2 + $0x68] sm:$0xff] %v921
  %946 = vst [vmem:[%s2 + $0x70] sm:$0xff] %v926
  %947 = vst [vmem:[%s2 + $0x78] sm:$0xff] %v929
  %v948 = vadd.f32 %v870, %v873
  %v949 = vadd.f32 %v948, %v878
  %v950 = vadd.f32 %v949, %v881
  %v951 = vadd.f32 %v950, %v886
  %v952 = vadd.f32 %v951, %v889
  %v953 = vadd.f32 %v952, %v894
  %v954 = vadd.f32 %v953, %v897
  %v955 = vadd.f32 %v954, %v902
  %v956 = vadd.f32 %v955, %v905
  %v957 = vadd.f32 %v956, %v910
  %v958 = vadd.f32 %v957, %v913
  %v959 = vadd.f32 %v958, %v918
  %v960 = vadd.f32 %v959, %v921
  %v961 = vadd.f32 %v960, %v926
  %v962 = vadd.f32 %v961, %v929
  %v963 = vrot.slane %v962, 4
  %v964 = vadd.f32 %v962, %v963
  %v965 = vrot.slane %v964, 2
  %v966 = vadd.f32 %v964, %v965
  %v967 = vrot.slane %v966, 1
  %v968 = vadd.f32 %v966, %v967
  %v969 = vmul.f32 %v870, %v870
  %v970 = vmul.f32 %v873, %v873
  %v971 = vmul.f32 %v878, %v878
  %v972 = vmul.f32 %v881, %v881
  %v973 = vmul.f32 %v886, %v886
  %v974 = vmul.f32 %v889, %v889
  %v975 = vmul.f32 %v894, %v894
  %v976 = vmul.f32 %v897, %v897
  %v977 = vmul.f32 %v902, %v902
  %v978 = vmul.f32 %v905, %v905
  %v979 = vmul.f32 %v910, %v910
  %v980 = vmul.f32 %v913, %v913
  %v981 = vmul.f32 %v918, %v918
  %v982 = vmul.f32 %v921, %v921
  %v983 = vmul.f32 %v926, %v926
  %v984 = vmul.f32 %v929, %v929
  %v985 = vadd.f32 %v969, %v970
  %v986 = vadd.f32 %v985, %v971
  %v987 = vadd.f32 %v986, %v972
  %v988 = vadd.f32 %v987, %v973
  %v989 = vadd.f32 %v988, %v974
  %v990 = vadd.f32 %v989, %v975
  %v991 = vadd.f32 %v990, %v976
  %v992 = vadd.f32 %v991, %v977
  %v993 = vadd.f32 %v992, %v978
  %v994 = vadd.f32 %v993, %v979
  %v995 = vadd.f32 %v994, %v980
  %v996 = vadd.f32 %v995, %v981
  %v997 = vadd.f32 %v996, %v982
  %v998 = vadd.f32 %v997, %v983
  %v999 = vadd.f32 %v998, %v984
  %v1000 = vrot.slane %v999, 4
  %v1001 = vadd.f32 %v999, %v1000
  %v1002 = vrot.slane %v1001, 2
  %v1003 = vadd.f32 %v1001, %v1002
  %v1004 = vrot.slane %v1003, 1
  %v1005 = vadd.f32 %v1003, %v1004
  %1006 = vst [vmem:[%s3] sm:$0x1] %v968
  %1007 = vst [vmem:[%s4] sm:$0x1] %v1005
  // Predicated region
  $region10: #{encoder_block_forward.6} parent=0 // pred_check
    _
  $region11: #{encoder_block_forward.6} parent=0 // pred_check_branch
    %1009 = sbr.rel (0) target = $region13
  $region12: #{encoder_block_forward.6} parent=0 // pred_region
    _
  $region13: #{encoder_block_forward.6} parent=0 // pred_fallthru
    _
  // Predicated region
  $region14: #{encoder_block_forward.6} parent=0 // pred_check
    _
  $region15: #{encoder_block_forward.6} parent=0 // pred_check_branch
    %1011 = sbr.rel (0) target = $region17
  $region16: #{encoder_block_forward.6} parent=0 // pred_region
    _
  $region17: #{encoder_block_forward.6} parent=0 // pred_fallthru
    _
  // Predicated region
  $region18: #{encoder_block_forward.6} parent=0 // pred_check
    _
  $region19: #{encoder_block_forward.6} parent=0 // pred_check_branch
    %1013 = sbr.rel (0) target = $region21
  $region20: #{encoder_block_forward.6} parent=0 // pred_region
    _
  $region21: #{encoder_block_forward.6} parent=0 // pred_fallthru
    _
  // Predicated region
  $region22: #{encoder_block_forward.6} parent=0 // pred_check
    _
  $region23: #{encoder_block_forward.6} parent=0 // pred_check_branch
    %1015 = sbr.rel (0) target = $region25
  $region24: #{encoder_block_forward.6} parent=0 // pred_region
    _
  $region25: #{encoder_block_forward.6} parent=0 // pred_fallthru
    _
  // Predicated region
  $region26: #{encoder_block_forward.6} parent=0 // pred_check
    _
  $region27: #{encoder_block_forward.6} parent=0 // pred_check_branch
    %1017 = sbr.rel (0) target = $region29
  $region28: #{encoder_block_forward.6} parent=0 // pred_region
    _
  $region29: #{encoder_block_forward.6} parent=0 // pred_fallthru
    _
  // Predicated region
  $region30: #{encoder_block_forward.6} parent=0 // pred_check
    _
  $region31: #{encoder_block_forward.6} parent=0 // pred_check_branch
    %1019 = sbr.rel (0) target = $region33
  $region32: #{encoder_block_forward.6} parent=0 // pred_region
    _
  $region33: #{encoder_block_forward.6} parent=0 // pred_fallthru
    _

// kernel: encoder_block_forward.9
$region0: #{encoder_block_forward.9}
  #allocation0 [shape = 'u32[]', space=smem, size = 0x4, offset = 0x4, fixed_abs, tag = 'smem constant byte address 0x4 - core index']
  #allocation1 [shape = 'u32[144,128]{1,0:T(1,128)}', space=vmem, size = 0x12000, scoped, tag = 'internal scratch']
  %s0 = inlined_call_operand.vmem [shape: f32[128,128], index: 0, kind: input, shape index: {}]
  %s1 = inlined_call_operand.vmem [shape: f32[1,128], index: 1, kind: input, shape index: {}]
  %s2 = inlined_call_operand.vmem [shape: f32[1,128], index: 2, kind: input, shape index: {}]
  %s3 = inlined_call_operand.vmem [shape: f32[128,128], index: 3, kind: input, shape index: {}]
  %s4 = inlined_call_operand.vmem [shape: f32[1,128], index: 4, kind: input, shape index: {}]
  %s5 = inlined_call_operand.vmem [shape: f32[1,128], index: 5, kind: input, shape index: {}]
  %s6 = inlined_call_operand.vmem [shape: f32[128,128], index: 6, kind: output, shape index: {}]
  %s7 = sld [smem:[#allocation0]]
  $region34: #{encoder_block_forward.9} parent=0
    _
  %s9 = ssub.s32 1, %s7
  %s10 = scalar_select 0, %s9, %s7
  // Predicated region
  $region2: #{encoder_block_forward.9} parent=0 // pred_check
    _
  $region3: #{encoder_block_forward.9} parent=0 // pred_check_branch
    %12 = sbr.rel (0) target = $region5
  $region4: #{encoder_block_forward.9} parent=0 // pred_region
    _
  $region5: #{encoder_block_forward.9} parent=0 // pred_fallthru
    _
  // Predicated region
  $region6: #{encoder_block_forward.9} parent=0 // pred_check
    _
  $region7: #{encoder_block_forward.9} parent=0 // pred_check_branch
    %14 = sbr.rel (0) target = $region9
  $region8: #{encoder_block_forward.9} parent=0 // pred_region
    _
  $region9: #{encoder_block_forward.9} parent=0 // pred_fallthru
    _
  // Predicated region
  $region10: #{encoder_block_forward.9} parent=0 // pred_check
    _
  $region11: #{encoder_block_forward.9} parent=0 // pred_check_branch
    %16 = sbr.rel (0) target = $region13
  $region12: #{encoder_block_forward.9} parent=0 // pred_region
    _
  $region13: #{encoder_block_forward.9} parent=0 // pred_fallthru
    _
  // Predicated region
  $region14: #{encoder_block_forward.9} parent=0 // pred_check
    _
  $region15: #{encoder_block_forward.9} parent=0 // pred_check_branch
    %18 = sbr.rel (0) target = $region17
  $region16: #{encoder_block_forward.9} parent=0 // pred_region
    _
  $region17: #{encoder_block_forward.9} parent=0 // pred_fallthru
    _
  // Predicated region
  $region18: #{encoder_block_forward.9} parent=0 // pred_check
    _
  $region19: #{encoder_block_forward.9} parent=0 // pred_check_branch
    %20 = sbr.rel (0) target = $region21
  $region20: #{encoder_block_forward.9} parent=0 // pred_region
    _
  $region21: #{encoder_block_forward.9} parent=0 // pred_fallthru
    _
  // Predicated region
  $region22: #{encoder_block_forward.9} parent=0 // pred_check
    _
  $region23: #{encoder_block_forward.9} parent=0 // pred_check_branch
    %22 = sbr.rel (0) target = $region25
  $region24: #{encoder_block_forward.9} parent=0 // pred_region
    _
  $region25: #{encoder_block_forward.9} parent=0 // pred_fallthru
    _
  %v23 = vld [vmem:[%s0] sm:$0xff]
  %v24 = vld [vmem:[%s0 + $0x8] sm:$0xff]
  %v25 = vld [vmem:[%s0 + $0x10] sm:$0xff]
  %v26 = vld [vmem:[%s0 + $0x18] sm:$0xff]
  %v27 = vld [vmem:[%s0 + $0x20] sm:$0xff]
  %v28 = vld [vmem:[%s0 + $0x28] sm:$0xff]
  %v29 = vld [vmem:[%s0 + $0x30] sm:$0xff]
  %v30 = vld [vmem:[%s0 + $0x38] sm:$0xff]
  %v31 = vld [vmem:[%s0 + $0x40] sm:$0xff]
  %v32 = vld [vmem:[%s0 + $0x48] sm:$0xff]
  %v33 = vld [vmem:[%s0 + $0x50] sm:$0xff]
  %v34 = vld [vmem:[%s0 + $0x58] sm:$0xff]
  %v35 = vld [vmem:[%s0 + $0x60] sm:$0xff]
  %v36 = vld [vmem:[%s0 + $0x68] sm:$0xff]
  %v37 = vld [vmem:[%s0 + $0x70] sm:$0xff]
  %v38 = vld [vmem:[%s0 + $0x78] sm:$0xff]
  %v39 = vld [vmem:[%s1] sm:$0x1]
  %v41 = vlaneseq
  %v42 = vshrl.u32 %v41, 7
  %v43 = vsub.s32 0, %v42
  %v44 = vrot.slane %v39, %v43
  %v46 = vmul.f32 %v23, %v44
  %v47 = vmul.f32 %v24, %v44
  %v48 = vmul.f32 %v25, %v44
  %v49 = vmul.f32 %v26, %v44
  %v50 = vmul.f32 %v27, %v44
  %v51 = vmul.f32 %v28, %v44
  %v52 = vmul.f32 %v29, %v44
  %v53 = vmul.f32 %v30, %v44
  %v54 = vmul.f32 %v31, %v44
  %v55 = vmul.f32 %v32, %v44
  %v56 = vmul.f32 %v33, %v44
  %v57 = vmul.f32 %v34, %v44
  %v58 = vmul.f32 %v35, %v44
  %v59 = vmul.f32 %v36, %v44
  %v60 = vmul.f32 %v37, %v44
  %v61 = vmul.f32 %v38, %v44
  %v62 = vld [vmem:[%s2] sm:$0x1]
  %v64 = vlaneseq
  %v65 = vshrl.u32 %v64, 7
  %v66 = vsub.s32 0, %v65
  %v67 = vrot.slane %v62, %v66
  %v69 = vadd.f32 %v46, %v67
  %v70 = vadd.f32 %v47, %v67
  %v71 = vadd.f32 %v48, %v67
  %v72 = vadd.f32 %v49, %v67
  %v73 = vadd.f32 %v50, %v67
  %v74 = vadd.f32 %v51, %v67
  %v75 = vadd.f32 %v52, %v67
  %v76 = vadd.f32 %v53, %v67
  %v77 = vadd.f32 %v54, %v67
  %v78 = vadd.f32 %v55, %v67
  %v79 = vadd.f32 %v56, %v67
  %v80 = vadd.f32 %v57, %v67
  %v81 = vadd.f32 %v58, %v67
  %v82 = vadd.f32 %v59, %v67
  %v83 = vadd.f32 %v60, %v67
  %v84 = vadd.f32 %v61, %v67
  %v85 = vld [vmem:[%s3] sm:$0xff]
  %v86 = vld [vmem:[%s3 + $0x8] sm:$0xff]
  %v87 = vld [vmem:[%s3 + $0x10] sm:$0xff]
  %v88 = vld [vmem:[%s3 + $0x18] sm:$0xff]
  %v89 = vld [vmem:[%s3 + $0x20] sm:$0xff]
  %v90 = vld [vmem:[%s3 + $0x28] sm:$0xff]
  %v91 = vld [vmem:[%s3 + $0x30] sm:$0xff]
  %v92 = vld [vmem:[%s3 + $0x38] sm:$0xff]
  %v93 = vld [vmem:[%s3 + $0x40] sm:$0xff]
  %v94 = vld [vmem:[%s3 + $0x48] sm:$0xff]
  %v95 = vld [vmem:[%s3 + $0x50] sm:$0xff]
  %v96 = vld [vmem:[%s3 + $0x58] sm:$0xff]
  %v97 = vld [vmem:[%s3 + $0x60] sm:$0xff]
  %v98 = vld [vmem:[%s3 + $0x68] sm:$0xff]
  %v99 = vld [vmem:[%s3 + $0x70] sm:$0xff]
  %v100 = vld [vmem:[%s3 + $0x78] sm:$0xff]
  %v101 = vld [vmem:[%s4] sm:$0x1]
  %v103 = vlaneseq
  %v104 = vshrl.u32 %v103, 7
  %v105 = vsub.s32 0, %v104
  %v106 = vrot.slane %v101, %v105
  %v108 = vmul.f32 %v85, %v106
  %v109 = vmul.f32 %v86, %v106
  %v110 = vmul.f32 %v87, %v106
  %v111 = vmul.f32 %v88, %v106
  %v112 = vmul.f32 %v89, %v106
  %v113 = vmul.f32 %v90, %v106
  %v114 = vmul.f32 %v91, %v106
  %v115 = vmul.f32 %v92, %v106
  %v116 = vmul.f32 %v93, %v106
  %v117 = vmul.f32 %v94, %v106
  %v118 = vmul.f32 %v95, %v106
  %v119 = vmul.f32 %v96, %v106
  %v120 = vmul.f32 %v97, %v106
  %v121 = vmul.f32 %v98, %v106
  %v122 = vmul.f32 %v99, %v106
  %v123 = vmul.f32 %v100, %v106
  %v124 = vld [vmem:[%s5] sm:$0x1]
  %v126 = vlaneseq
  %v127 = vshrl.u32 %v126, 7
  %v128 = vsub.s32 0, %v127
  %v129 = vrot.slane %v124, %v128
  %v131 = vadd.f32 %v108, %v129
  %v132 = vadd.f32 %v109, %v129
  %v133 = vadd.f32 %v110, %v129
  %v134 = vadd.f32 %v111, %v129
  %v135 = vadd.f32 %v112, %v129
  %v136 = vadd.f32 %v113, %v129
  %v137 = vadd.f32 %v114, %v129
  %v138 = vadd.f32 %v115, %v129
  %v139 = vadd.f32 %v116, %v129
  %v140 = vadd.f32 %v117, %v129
  %v141 = vadd.f32 %v118, %v129
  %v142 = vadd.f32 %v119, %v129
  %v143 = vadd.f32 %v120, %v129
  %v144 = vadd.f32 %v121, %v129
  %v145 = vadd.f32 %v122, %v129
  %v146 = vadd.f32 %v123, %v129
  %v147 = vadd.f32 %v69, %v131
  %v148 = vadd.f32 %v70, %v132
  %v149 = vadd.f32 %v71, %v133
  %v150 = vadd.f32 %v72, %v134
  %v151 = vadd.f32 %v73, %v135
  %v152 = vadd.f32 %v74, %v136
  %v153 = vadd.f32 %v75, %v137
  %v154 = vadd.f32 %v76, %v138
  %v155 = vadd.f32 %v77, %v139
  %v156 = vadd.f32 %v78, %v140
  %v157 = vadd.f32 %v79, %v141
  %v158 = vadd.f32 %v80, %v142
  %v159 = vadd.f32 %v81, %v143
  %v160 = vadd.f32 %v82, %v144
  %v161 = vadd.f32 %v83, %v145
  %v162 = vadd.f32 %v84, %v146
  %v163 = vmax.f32 %v147, 0.0
  %v164 = vmax.f32 %v148, 0.0
  %v165 = vmax.f32 %v149, 0.0
  %v166 = vmax.f32 %v150, 0.0
  %v167 = vmax.f32 %v151, 0.0
  %v168 = vmax.f32 %v152, 0.0
  %v169 = vmax.f32 %v153, 0.0
  %v170 = vmax.f32 %v154, 0.0
  %v171 = vmax.f32 %v155, 0.0
  %v172 = vmax.f32 %v156, 0.0
  %v173 = vmax.f32 %v157, 0.0
  %v174 = vmax.f32 %v158, 0.0
  %v175 = vmax.f32 %v159, 0.0
  %v176 = vmax.f32 %v160, 0.0
  %v177 = vmax.f32 %v161, 0.0
  %v178 = vmax.f32 %v162, 0.0
  %179 = vst [vmem:[%s6] sm:$0xff] %v163
  %180 = vst [vmem:[%s6 + $0x8] sm:$0xff] %v164
  %181 = vst [vmem:[%s6 + $0x10] sm:$0xff] %v165
  %182 = vst [vmem:[%s6 + $0x18] sm:$0xff] %v166
  %183 = vst [vmem:[%s6 + $0x20] sm:$0xff] %v167
  %184 = vst [vmem:[%s6 + $0x28] sm:$0xff] %v168
  %185 = vst [vmem:[%s6 + $0x30] sm:$0xff] %v169
  %186 = vst [vmem:[%s6 + $0x38] sm:$0xff] %v170
  %187 = vst [vmem:[%s6 + $0x40] sm:$0xff] %v171
  %188 = vst [vmem:[%s6 + $0x48] sm:$0xff] %v172
  %189 = vst [vmem:[%s6 + $0x50] sm:$0xff] %v173
  %190 = vst [vmem:[%s6 + $0x58] sm:$0xff] %v174
  %191 = vst [vmem:[%s6 + $0x60] sm:$0xff] %v175
  %192 = vst [vmem:[%s6 + $0x68] sm:$0xff] %v176
  %193 = vst [vmem:[%s6 + $0x70] sm:$0xff] %v177
  %194 = vst [vmem:[%s6 + $0x78] sm:$0xff] %v178
  // Predicated region
  $region26: #{encoder_block_forward.9} parent=0 // pred_check
    _
  $region27: #{encoder_block_forward.9} parent=0 // pred_check_branch
    %196 = sbr.rel (0) target = $region29
  $region28: #{encoder_block_forward.9} parent=0 // pred_region
    _
  $region29: #{encoder_block_forward.9} parent=0 // pred_fallthru
    _
  // Predicated region
  $region30: #{encoder_block_forward.9} parent=0 // pred_check
    _
  $region31: #{encoder_block_forward.9} parent=0 // pred_check_branch
    %198 = sbr.rel (0) target = $region33
  $region32: #{encoder_block_forward.9} parent=0 // pred_region
    _
  $region33: #{encoder_block_forward.9} parent=0 // pred_fallthru
    _

</llo_original>
